<compile_context>
chip_gen: v7x
topology: tpu7x:2x2x1
jax: 0.10.0
libtpu: 0.0.40
codegen_flags: <defaults>
</compile_context>

<pallas_src>
import functools
import math

import jax
import jax.numpy as jnp
from jax.experimental import pallas as pl
from jax.experimental.pallas import tpu as pltpu


# ---------------------------------------------------------------------------
# Pallas kernels: tiled MXU matmul with fused bias / ReLU / residual epilogue
# ---------------------------------------------------------------------------
def _mm_kernel_multik(x_ref, w_ref, b_ref, o_ref, acc_ref, *, relu):
    """K-streamed matmul: acc += x@w; epilogue out = act(acc + bias)."""
    @pl.when(pl.program_id(2) == 0)
    def _():
        acc_ref[...] = jnp.zeros_like(acc_ref)

    acc_ref[...] += jnp.dot(x_ref[...], w_ref[...],
                            preferred_element_type=jnp.float32)

    @pl.when(pl.program_id(2) == pl.num_programs(2) - 1)
    def _():
        r = acc_ref[...] + b_ref[...]
        if relu:
            r = jnp.maximum(r, 0.0)
        o_ref[...] = r.astype(o_ref.dtype)


def _mm_res_kernel_multik(x_ref, w_ref, b_ref, r_ref, o_ref, acc_ref, *, relu):
    """K-streamed matmul with the bottleneck residual join fused in the
    epilogue: out = act(acc + bias + identity)."""
    @pl.when(pl.program_id(2) == 0)
    def _():
        acc_ref[...] = jnp.zeros_like(acc_ref)

    acc_ref[...] += jnp.dot(x_ref[...], w_ref[...],
                            preferred_element_type=jnp.float32)

    @pl.when(pl.program_id(2) == pl.num_programs(2) - 1)
    def _():
        r = acc_ref[...] + b_ref[...] + r_ref[...].astype(jnp.float32)
        if relu:
            r = jnp.maximum(r, 0.0)
        o_ref[...] = r.astype(o_ref.dtype)


def _mm_kernel_singlek(x_ref, w_ref, b_ref, o_ref, *, relu):
    """Single K step: no accumulator scratch, write dot + epilogue directly."""
    r = jnp.dot(x_ref[...], w_ref[...],
                preferred_element_type=jnp.float32) + b_ref[...]
    if relu:
        r = jnp.maximum(r, 0.0)
    o_ref[...] = r.astype(o_ref.dtype)


def _mm_res_kernel_singlek(x_ref, w_ref, b_ref, r_ref, o_ref, *, relu):
    r = (jnp.dot(x_ref[...], w_ref[...], preferred_element_type=jnp.float32)
         + b_ref[...] + r_ref[...].astype(jnp.float32))
    if relu:
        r = jnp.maximum(r, 0.0)
    o_ref[...] = r.astype(o_ref.dtype)


# ---------------------------------------------------------------------------
# Tile pickers (review: never shrink M below 128 to chase divisibility; a
# single full-dim M block for M <= 2048 and a 2048-deep ladder above that).
# Full-dim blocks are always tiling-legal, so no activation padding is needed.
# ---------------------------------------------------------------------------
def _round_up(x, m):
    return -(-x // m) * m


def _pick_m_tile(m):
    if m <= 2048:
        return m                       # single full-dim block: weight read once
    for t in range(2048, 127, -8):     # largest multiple-of-8 divisor <= 2048
        if m % t == 0:
            return t
    return 2048                        # cdiv fallback (masked last block)


def _pick_n_tile(n):
    # All conv output widths are multiples of 128 (64-ch outputs are padded),
    # so stores are always lane-dense / unmasked.
    return n if n <= 256 else 256


def _pick_k_tile(k):
    if k <= 512:
        return k                       # single K step, full-dim block
    for t in (512, 384, 256, 128):
        if k % t == 0:
            return t
    return k                           # fallback: one full-dim K block


@functools.partial(jax.jit, static_argnames=("relu",))
def matmul_bias_act(x, w, b, relu=True, res=None):
    """out = act((M,K)@(K,N) + b [+ res]) -- bf16 MXU inputs, f32 accumulation.

    `res` (optional, shape (M,N)) is fused into the epilogue.  Output bf16.
    All shapes arrive pre-conditioned (N and K multiples of 128, except the
    always-single-block full-dim cases), so no padding copies are made here.
    """
    M, K = x.shape
    Kw, N = w.shape
    assert K == Kw, (K, Kw)
    assert N % 128 == 0, N

    tm = _pick_m_tile(M)
    tn = _pick_n_tile(N)
    tk = _pick_k_tile(K)
    gm = pl.cdiv(M, tm)
    if gm == 1 and N >= 256:
        tn = 128                        # keep >=2 blocks on a parallel axis (v7x)
    gn = pl.cdiv(N, tn)
    gk = pl.cdiv(K, tk)

    xp = x.astype(jnp.bfloat16)
    wp = w.astype(jnp.bfloat16)
    bp = b.reshape(1, N).astype(jnp.float32)
    out_shape = jax.ShapeDtypeStruct((M, N), jnp.bfloat16)

    if gk == 1:
        # ---- single K step: 2-D grid, no f32 scratch -----------------------
        grid = (gm, gn)
        x_spec = pl.BlockSpec((tm, K), lambda i, j: (i, 0))
        w_spec = pl.BlockSpec((K, tn), lambda i, j: (0, j))
        b_spec = pl.BlockSpec((1, tn), lambda i, j: (0, j))
        o_spec = pl.BlockSpec((tm, tn), lambda i, j: (i, j))
        cparams = pltpu.CompilerParams(
            dimension_semantics=("parallel", "parallel"))
        if res is None:
            return pl.pallas_call(
                functools.partial(_mm_kernel_singlek, relu=relu),
                out_shape=out_shape,
                grid_spec=pltpu.PrefetchScalarGridSpec(
                    num_scalar_prefetch=0, grid=grid,
                    in_specs=[x_spec, w_spec, b_spec], out_specs=o_spec),
                compiler_params=cparams,
            )(xp, wp, bp)
        rp = res.astype(jnp.bfloat16)
        r_spec = pl.BlockSpec((tm, tn), lambda i, j: (i, j))
        return pl.pallas_call(
            functools.partial(_mm_res_kernel_singlek, relu=relu),
            out_shape=out_shape,
            grid_spec=pltpu.PrefetchScalarGridSpec(
                num_scalar_prefetch=0, grid=grid,
                in_specs=[x_spec, w_spec, b_spec, r_spec], out_specs=o_spec),
            compiler_params=cparams,
        )(xp, wp, bp, rp)

    # ---- K-streamed reduction: 3-D grid, f32 accumulator, K innermost ------
    grid = (gm, gn, gk)
    x_spec = pl.BlockSpec((tm, tk), lambda i, j, k: (i, k))
    w_spec = pl.BlockSpec((tk, tn), lambda i, j, k: (k, j))
    b_spec = pl.BlockSpec((1, tn), lambda i, j, k: (0, j))
    o_spec = pl.BlockSpec((tm, tn), lambda i, j, k: (i, j))
    scratch = [pltpu.VMEM((tm, tn), jnp.float32)]
    cparams = pltpu.CompilerParams(
        dimension_semantics=("parallel", "parallel", "arbitrary"))
    if res is None:
        return pl.pallas_call(
            functools.partial(_mm_kernel_multik, relu=relu),
            out_shape=out_shape,
            grid_spec=pltpu.PrefetchScalarGridSpec(
                num_scalar_prefetch=0, grid=grid,
                in_specs=[x_spec, w_spec, b_spec], out_specs=o_spec,
                scratch_shapes=scratch),
            compiler_params=cparams,
        )(xp, wp, bp)
    rp = res.astype(jnp.bfloat16)
    r_spec = pl.BlockSpec((tm, tn), lambda i, j, k: (i, j))
    return pl.pallas_call(
        functools.partial(_mm_res_kernel_multik, relu=relu),
        out_shape=out_shape,
        grid_spec=pltpu.PrefetchScalarGridSpec(
            num_scalar_prefetch=0, grid=grid,
            in_specs=[x_spec, w_spec, b_spec, r_spec], out_specs=o_spec,
            scratch_shapes=scratch),
        compiler_params=cparams,
    )(xp, wp, bp, rp)


# ---------------------------------------------------------------------------
# Conv / pooling built on the Pallas matmul (NHWC, bf16 activations)
# ---------------------------------------------------------------------------
def _im2col_nhwc(x, k, stride, pad, k_total):
    """NHWC patch matrix; feature order (kh, kw, C) matches the weight layout.
    `k_total` >= k*k*C: a zero tap is appended at creation time (inside the one
    concat, no extra copy) so K is a multiple of 128 (only conv1 needs it)."""
    N, H, W, C = x.shape
    if pad:
        x = jnp.pad(x, ((0, 0), (pad, pad), (pad, pad), (0, 0)))
    Hp, Wp = H + 2 * pad, W + 2 * pad
    Ho = (Hp - k) // stride + 1
    Wo = (Wp - k) // stride + 1
    taps = []
    for i in range(k):
        for j in range(k):
            taps.append(x[:, i:i + stride * (Ho - 1) + 1:stride,
                             j:j + stride * (Wo - 1) + 1:stride, :])
    assert k_total >= k * k * C
    if k_total > k * k * C:
        taps.append(jnp.zeros((N, Ho, Wo, k_total - k * k * C), x.dtype))
    # TODO(synk): this im2col buffer is still materialized in HBM; implicit
    # GEMM (taps folded into the K grid) would remove the write + re-read.
    cols = jnp.concatenate(taps, axis=-1)            # (N, Ho, Wo, k_total)
    return cols.reshape(N * Ho * Wo, k_total), Ho, Wo


def conv2d_bn(x, p, *, ksize, stride, pad, relu, res=None):
    """NHWC conv (eval-mode BN folded into p) via the Pallas matmul.

    `res` (NHWC, same output shape) is fused into the matmul epilogue as
    act(conv(x) + res) -- the bottleneck residual join."""
    N = x.shape[0]
    Kw = p["w"].shape[0]
    if ksize == 1 and pad == 0:
        xs = x[:, ::stride, ::stride, :] if stride > 1 else x
        Ho, Wo = xs.shape[1], xs.shape[2]
        cols = xs.reshape(N * Ho * Wo, xs.shape[3])
    else:
        cols, Ho, Wo = _im2col_nhwc(x, ksize, stride, pad, k_total=Kw)
    assert cols.shape[1] == Kw, (cols.shape, Kw)
    res_mat = None if res is None else res.reshape(N * Ho * Wo, -1)
    out = matmul_bias_act(cols, p["w"], p["b"], relu=relu, res=res_mat)
    return out.reshape(N, Ho, Wo, -1)


def maxpool_3x3_s2_nhwc(x):
    # TODO(synk): pooling kept as a plain-JAX strided-slice max tree (could be
    # fused into a small NHWC Pallas kernel for a few %).  Zero-padded lane
    # channels stay exactly zero (every window contains a real zero pixel).
    x = jnp.pad(x, ((0, 0), (1, 1), (1, 1), (0, 0)), constant_values=-jnp.inf)
    _, Hp, Wp, _ = x.shape
    Ho = (Hp - 3) // 2 + 1
    Wo = (Wp - 3) // 2 + 1
    out = None
    for i in range(3):
        for j in range(3):
            s = x[:, i:i + 2 * (Ho - 1) + 1:2, j:j + 2 * (Wo - 1) + 1:2, :]
            out = s if out is None else jnp.maximum(out, s)
    return out


# ---------------------------------------------------------------------------
# ResNet-50 (Baseline backbone, fc -> Linear(2048, 1)); deterministic init.
# 64-wide channels are padded to a physical width of 128 (lane-dense stores);
# the padded channels carry exact zeros and zero weight rows downstream.
# ---------------------------------------------------------------------------
_RESNET50_CFG = [(3, 64, 1), (4, 128, 2), (6, 256, 2), (3, 512, 2)]
_BN_EPS = 1e-5


def _conv_bn_params(key, cout, cin, ksz, cin_phys=None, cout_phys=None):
    """He-init conv with eval-mode BN (PyTorch default running stats) folded
    in, pre-reshaped once to the NHWC im2col (k*k*cin_phys_pad, cout_phys)
    bf16 matrix.  Physical (padded) channels get zero rows/columns; the K-row
    count is rounded up to a multiple of 128 (only conv1's 147 -> 256)."""
    std = math.sqrt(2.0 / (cin * ksz * ksz))
    w = jax.random.normal(key, (ksz, ksz, cin, cout), jnp.float32) * std
    w = w * (1.0 / math.sqrt(1.0 + _BN_EPS))          # fold BN (default stats)
    cin_p = cin if cin_phys is None else cin_phys
    cout_p = cout if cout_phys is None else cout_phys
    if cin_p != cin or cout_p != cout:
        w = jnp.pad(w, ((0, 0), (0, 0), (0, cin_p - cin), (0, cout_p - cout)))
    wm = w.reshape(ksz * ksz * cin_p, cout_p)
    k_rows = wm.shape[0]
    k_pad = _round_up(k_rows, 128)
    if k_pad != k_rows:
        wm = jnp.pad(wm, ((0, k_pad - k_rows), (0, 0)))
    return {"w": wm.astype(jnp.bfloat16),
            "b": jnp.zeros((cout_p,), jnp.float32)}


def init_params(key):
    # TODO(synk): the reference loads pretrained BL_release.pt weights; here we
    # use deterministic random init with the same architecture / BN folding.
    keys = iter(jax.random.split(key, 64))
    params = {"conv1": _conv_bn_params(next(keys), 64, 3, 7,
                                       cin_phys=3, cout_phys=128)}
    inplanes, inplanes_p = 64, 128
    for li, (blocks, planes, _) in enumerate(_RESNET50_CFG):
        planes_p = max(planes, 128)
        for bi in range(blocks):
            blk = {
                "c1": _conv_bn_params(next(keys), planes, inplanes, 1,
                                      cin_phys=inplanes_p, cout_phys=planes_p),
                "c2": _conv_bn_params(next(keys), planes, planes, 3,
                                      cin_phys=planes_p, cout_phys=planes_p),
                "c3": _conv_bn_params(next(keys), planes * 4, planes, 1,
                                      cin_phys=planes_p, cout_phys=planes * 4),
            }
            if bi == 0:
                blk["down"] = _conv_bn_params(next(keys), planes * 4, inplanes,
                                              1, cin_phys=inplanes_p,
                                              cout_phys=planes * 4)
            params[f"layer{li + 1}_{bi}"] = blk
            inplanes, inplanes_p = planes * 4, planes * 4
    bound = 1.0 / math.sqrt(2048.0)
    params["fc_w"] = jax.random.uniform(next(keys), (1, 2048), jnp.float32,
                                        -bound, bound)
    params["fc_b"] = jax.random.uniform(next(keys), (1,), jnp.float32,
                                        -bound, bound)
    return params


def resnet50_scores(params, x_nchw):
    """ResNet-50 (fc -> Linear(2048,1)) over a batch of patches (NCHW float)."""
    x = jnp.transpose(x_nchw, (0, 2, 3, 1)).astype(jnp.bfloat16)   # NHWC once
    x = conv2d_bn(x, params["conv1"], ksize=7, stride=2, pad=3, relu=True)
    x = maxpool_3x3_s2_nhwc(x)
    for li, (blocks, _, stride) in enumerate(_RESNET50_CFG):
        for bi in range(blocks):
            blk = params[f"layer{li + 1}_{bi}"]
            s = stride if bi == 0 else 1
            if "down" in blk:
                identity = conv2d_bn(x, blk["down"], ksize=1, stride=s, pad=0,
                                     relu=False)
            else:
                identity = x
            out = conv2d_bn(x, blk["c1"], ksize=1, stride=1, pad=0, relu=True)
            out = conv2d_bn(out, blk["c2"], ksize=3, stride=s, pad=1, relu=True)
            # residual add + ReLU fused into the c3 matmul epilogue
            # (identity is carried as bf16; tiny deviation vs f32 reference).
            x = conv2d_bn(out, blk["c3"], ksize=1, stride=1, pad=0, relu=True,
                          res=identity)
    feats = jnp.mean(x.astype(jnp.float32), axis=(1, 2))      # global avg-pool
    # Tiny (P,2048)@(2048,1): plain dot -- padding it to MXU tiles wastes >98%.
    return feats @ params["fc_w"].T + params["fc_b"]           # (P, 1)


# ---------------------------------------------------------------------------
# SPAQ front-end: Resize(smaller edge) + generate_patches_custom
# ---------------------------------------------------------------------------
def resize_smaller_edge(x, size):
    """transforms.Resize(size): scale so the smaller edge == size (bilinear)."""
    N, C, H, W = x.shape
    if H <= W:
        nh, nw = size, int(size * W / H)
    else:
        nh, nw = int(size * H / W), size
    return jax.image.resize(x, (N, C, nh, nw), method="bilinear")


def generate_patches_custom(image, input_size):
    """Image_load.generate_patches_custom: 50%-overlapping square patches."""
    img = image.astype(jnp.float32)[0]               # (3, H, W)
    _, H, W = img.shape
    stride = input_size // 2
    h_max, w_max = H - input_size, W - input_size
    h_idx = [i * stride for i in range(int(h_max / stride) + 1)]
    if h_max != h_idx[-1]:
        h_idx.append(h_max)
    w_idx = [i * stride for i in range(int(w_max / stride) + 1)]
    if w_max != w_idx[-1]:
        w_idx.append(w_max)
    patches = [img[:, h:h + input_size, w:w + input_size]
               for h in h_idx for w in w_idx]
    return jnp.stack(patches, axis=0)                # (P, 3, size, size)


def spaq_forward(params, tensor, *, size=512, patch=224):
    """SPAQ.forward: Resize(size) -> patches -> ResNet50(fc->1) -> mean."""
    resized = resize_smaller_edge(tensor, size)
    patches = generate_patches_custom(resized, patch)
    scores = resnet50_scores(params, patches)
    return jnp.mean(scores)


if __name__ == "__main__":
    key = jax.random.PRNGKey(0)
    pkey, xkey = jax.random.split(key)
    params = init_params(pkey)
    # Small demo: the real SPAQ pipeline uses size=512 / patch=224 (identical
    # code path); here we run it at a reduced scale (resize smaller edge to 96,
    # four 64x64 patches) so the script compiles and runs in seconds.
    x = jax.random.uniform(xkey, (1, 3, 48, 48), dtype=jnp.float32)
    out = spaq_forward(params, x, size=96, patch=64)
    out = jax.block_until_ready(out)
    assert out.shape == () and out.dtype == jnp.float32
    print("KERNEL_OK")
</pallas_src>

<mosaic_0001>
module attributes {stable_mosaic.version = 11 : i64} {
  func.func @_mm_kernel_singlek(%arg0: i32, %arg1: i32, %arg2: memref<2048x256xbf16, #tpu.memory_space<vmem>>, %arg3: memref<256x128xbf16, #tpu.memory_space<vmem>>, %arg4: memref<1x128xf32, #tpu.memory_space<vmem>>, %arg5: memref<2048x128xbf16, #tpu.memory_space<vmem>>) attributes {dimension_semantics = [#tpu.dimension_semantics<parallel>, #tpu.dimension_semantics<parallel>], iteration_bounds = array<i64: 2, 1>, scalar_prefetch = 0 : i64, scratch_operands = 0 : i64, tpu.core_type = #tpu.core_type<tc>, window_params = [{transform_indices = @transform_0, window_bounds = array<i64: 2048, 256>}, {transform_indices = @transform_1, window_bounds = array<i64: 256, 128>}, {transform_indices = @transform_2, window_bounds = array<i64: 1, 128>}, {transform_indices = @transform_3, window_bounds = array<i64: 2048, 128>}]} {
    %c0 = arith.constant 0 : index
    %c0_0 = arith.constant 0 : index
    %0 = vector.load %arg2[%c0, %c0_0] : memref<2048x256xbf16, #tpu.memory_space<vmem>>, vector<2048x256xbf16>
    %c0_1 = arith.constant 0 : index
    %c0_2 = arith.constant 0 : index
    %1 = vector.load %arg3[%c0_1, %c0_2] : memref<256x128xbf16, #tpu.memory_space<vmem>>, vector<256x128xbf16>
    %cst = arith.constant dense<0.000000e+00> : vector<2048x128xf32>
    %2 = tpu.matmul %0, %1, %cst {dimension_numbers = #tpu.dot_dimension_numbers<[1], [0], [0], [1], [0, 0, 1, 1], [], []>} : vector<2048x256xbf16>, vector<256x128xbf16>, vector<2048x128xf32> -> vector<2048x128xf32>
    %c0_3 = arith.constant 0 : index
    %c0_4 = arith.constant 0 : index
    %3 = vector.load %arg4[%c0_3, %c0_4] : memref<1x128xf32, #tpu.memory_space<vmem>>, vector<1x128xf32>
    %4 = vector.broadcast %3 : vector<1x128xf32> to vector<2048x128xf32>
    %5 = arith.addf %2, %4 : vector<2048x128xf32>
    %cst_5 = arith.constant 0.000000e+00 : f32
    %6 = vector.broadcast %cst_5 : f32 to vector<2048x128xf32>
    %7 = arith.maximumf %5, %6 : vector<2048x128xf32>
    %8 = arith.truncf %7 : vector<2048x128xf32> to vector<2048x128xbf16>
    %c0_6 = arith.constant 0 : index
    %c0_7 = arith.constant 0 : index
    %9 = vector.load %arg5[%c0_6, %c0_7] : memref<2048x128xbf16, #tpu.memory_space<vmem>>, vector<2048x128xbf16>
    tpu.vector_store %arg5[%c0_6, %c0_7], %8 {strides = array<i32>} : memref<2048x128xbf16, #tpu.memory_space<vmem>>, vector<2048x128xbf16>,
    return
  }
  func.func @transform_0(%arg0: i32, %arg1: i32) -> (i32, i32) {
    %c0_i32 = arith.constant 0 : i32
    %c0_i32_0 = arith.constant 0 : i32
    return %arg0, %c0_i32 : i32, i32
  }
  func.func @transform_1(%arg0: i32, %arg1: i32) -> (i32, i32) {
    %c0_i32 = arith.constant 0 : i32
    %c0_i32_0 = arith.constant 0 : i32
    return %c0_i32, %arg1 : i32, i32
  }
  func.func @transform_2(%arg0: i32, %arg1: i32) -> (i32, i32) {
    %c0_i32 = arith.constant 0 : i32
    %c0_i32_0 = arith.constant 0 : i32
    return %c0_i32, %arg1 : i32, i32
  }
  func.func @transform_3(%arg0: i32, %arg1: i32) -> (i32, i32) {
    %c0_i32 = arith.constant 0 : i32
    return %arg0, %arg1 : i32, i32
  }
}

</mosaic_0001>

<llo_original>
// kernel: matmul_bias_act.1
$region0: #{matmul_bias_act.1}
  #allocation0 [shape = 'u32[]', space=smem, size = 0x4, offset = 0x4, fixed_abs, tag = 'smem constant byte address 0x4 - core index']
  #allocation1 [shape = 'u32[144,128]{1,0:T(1,128)}', space=vmem, size = 0x12000, scoped, tag = 'internal scratch']
  %s0 = inlined_call_operand.hbm [shape: bf16[4096,256], index: 0, kind: input, shape index: {}]
  %s1 = inlined_call_operand.hbm [shape: bf16[256,128], index: 1, kind: input, shape index: {}]
  %s2 = inlined_call_operand.hbm [shape: f32[1,128], index: 2, kind: input, shape index: {}]
  %s3 = inlined_call_operand.hbm [shape: bf16[4096,128], index: 3, kind: output, shape index: {}]
  %s4 = sld [smem:[#allocation0]]
  $region57: #{matmul_bias_act.1} parent=0
    _
  %s6 = ssub.s32 1, %s4
  %s7 = scalar_select 0, %s6, %s4
  $region1: #{matmul_bias_act.1} parent=0
    #allocation2 [shape = 'u8[2097152]{0}', space=vmem, size = 0x200000, scoped, tag = 'input window, operand 0']
    #allocation3 [shape = 's32[2]{0}', space=sflag, size = 0x8, scoped, tag = 'scoped memory for matmul_bias_act.1']
    #allocation4 [shape = 's32[2]{0}', space=sflag, size = 0x8, scoped, tag = 'scoped memory for matmul_bias_act.1']
    #allocation5 [shape = 'u8[65536]{0}', space=vmem, size = 0x10000, scoped, tag = 'input window, operand 1, single buffered']
    #allocation6 [shape = 's32[1]{0}', space=sflag, size = 0x4, scoped, tag = 'scoped memory for matmul_bias_act.1']
    #allocation7 [shape = 'u8[512]{0}', space=vmem, size = 0x400, scoped, tag = 'input window, operand 2, single buffered']
    #allocation8 [shape = 'u8[1048576]{0}', space=vmem, size = 0x100000, scoped, tag = 'output window, operand 0']
    %8 = vsyncpa [#allocation3], 0
    %s9 = scalar_lea.sflag [#allocation3], 1
    %10 = vsyncpa %s9, 0
    %11 = vsyncpa [#allocation6], 0
    %12 = vsyncpa [#allocation4], 0
    %s13 = scalar_lea.sflag [#allocation4], 1
    %14 = vsyncpa %s13, 0
    loop: start=0, step=1, limit=4
    $region2: #{matmul_bias_act.1} parent=1 // loop_pre_header
      _
    $region3: #{matmul_bias_act.1} parent=1 // loop_header
      %s16 = sphi 0, %s20
      %p17 = scmp.ge.s32.totalorder %s16, 4
      %s23 = sphi 0, %s35
      %s24 = sphi 0, %s31
      %s25 = sphi 0, %s23
      %s26 = sphi 0, %s24
      %s27 = sphi 0, %s25
      %s28 = sphi 0, %s26
      %s38 = sphi 0, %s40
      %s41 = sphi 0, %s38
      %s42 = sphi 0, %s41
      %s58 = sphi 0, %s42
      %s64 = sphi 0, %s66
      %s67 = sphi 0, %s64
      %s68 = sphi 0, %s67
      %s84 = sphi 0, %s68
      %s90 = sphi 0, %s92
      %s93 = sphi 0, %s90
      %s94 = sphi 0, %s93
      %s110 = sphi 0, %s94
      %s118 = sphi 0, %s120
      %s121 = sphi 0, %s118
      %s122 = sphi 0, %s121
      %s138 = sphi 0, %s122
    $region4: #{matmul_bias_act.1} parent=1 // loop_header_branch
      %19 = sbr.rel (%p17) target = $region8
    $region5: #{matmul_bias_act.1} parent=1 // loop_body
      %s21 = ssub.s32 %s16, 1
      %s22 = ssub.s32 %s16, 2
      %s29 = sadd.s32 1, %s24
      %p30 = scmp.ge.s32.totalorder %s29, 1
      %s31 = scalar_select %p30, 0, %s29
      %s32 = sadd.s32 1, %s23
      %s33 = scalar_select %p30, %s32, %s23
      %p34 = scmp.ge.s32.totalorder %s33, 2
      %s35 = scalar_select %p34, 0, %s33
      %s36 = ssub.s32 %s23, %s35
      %p37 = scmp.eq.s32.totalorder %s36, 0
      %s39 = sadd.s32 %s38, 1
      %s40 = scalar_select %p37, %s38, %s39
      %p43 = pneg %p37
      %p44 = scmp.eq.s32.totalorder %s16, 1
      %p45 = por %p43, %p44
      %p46 = scmp.ne.s32.totalorder %s38, %s41
      %p47 = scmp.eq.s32.totalorder %s16, 0
      %p48 = por %p46, %p47
      %p49 = scmp.ne.s32.totalorder %s38, %s41
      %p50 = scmp.eq.s32.totalorder %s21, 1
      %p51 = por %p49, %p50
      %p52 = scmp.ne.s32.totalorder %s41, %s42
      %p53 = scmp.eq.s32.totalorder %s21, 0
      %p54 = por %p52, %p53
      %p55 = scmp.ne.s32.totalorder %s41, %s42
      %p56 = scmp.eq.s32.totalorder %s22, 1
      %p57 = por %p55, %p56
      %p59 = scmp.ne.s32.totalorder %s42, %s58
      %p60 = scmp.eq.s32.totalorder %s22, 0
      %p61 = por %p59, %p60
      %s62 = ssub.s32 %s24, %s31
      %p63 = scmp.eq.s32.totalorder %s62, 0
      %s65 = sadd.s32 %s64, 1
      %s66 = scalar_select %p63, %s64, %s65
      %p69 = pneg %p63
      %p70 = scmp.eq.s32.totalorder %s16, 1
      %p71 = por %p69, %p70
      %p72 = scmp.ne.s32.totalorder %s64, %s67
      %p73 = scmp.eq.s32.totalorder %s16, 0
      %p74 = por %p72, %p73
      %p75 = scmp.ne.s32.totalorder %s64, %s67
      %p76 = scmp.eq.s32.totalorder %s21, 1
      %p77 = por %p75, %p76
      %p78 = scmp.ne.s32.totalorder %s67, %s68
      %p79 = scmp.eq.s32.totalorder %s21, 0
      %p80 = por %p78, %p79
      %p81 = scmp.ne.s32.totalorder %s67, %s68
      %p82 = scmp.eq.s32.totalorder %s22, 1
      %p83 = por %p81, %p82
      %p85 = scmp.ne.s32.totalorder %s68, %s84
      %p86 = scmp.eq.s32.totalorder %s22, 0
      %p87 = por %p85, %p86
      %s88 = ssub.s32 %s24, %s31
      %p89 = scmp.eq.s32.totalorder %s88, 0
      %s91 = sadd.s32 %s90, 1
      %s92 = scalar_select %p89, %s90, %s91
      %p95 = pneg %p89
      %p96 = scmp.eq.s32.totalorder %s16, 1
      %p97 = por %p95, %p96
      %p98 = scmp.ne.s32.totalorder %s90, %s93
      %p99 = scmp.eq.s32.totalorder %s16, 0
      %p100 = por %p98, %p99
      %p101 = scmp.ne.s32.totalorder %s90, %s93
      %p102 = scmp.eq.s32.totalorder %s21, 1
      %p103 = por %p101, %p102
      %p104 = scmp.ne.s32.totalorder %s93, %s94
      %p105 = scmp.eq.s32.totalorder %s21, 0
      %p106 = por %p104, %p105
      %p107 = scmp.ne.s32.totalorder %s93, %s94
      %p108 = scmp.eq.s32.totalorder %s22, 1
      %p109 = por %p107, %p108
      %p111 = scmp.ne.s32.totalorder %s94, %s110
      %p112 = scmp.eq.s32.totalorder %s22, 0
      %p113 = por %p111, %p112
      %s114 = ssub.s32 %s23, %s35
      %s115 = ssub.s32 %s24, %s31
      %s116 = sor.u32 %s114, %s115
      %p117 = scmp.eq.s32.totalorder %s116, 0
      %s119 = sadd.s32 %s118, 1
      %s120 = scalar_select %p117, %s118, %s119
      %p123 = pneg %p117
      %p124 = scmp.eq.s32.totalorder %s16, 1
      %p125 = por %p123, %p124
      %p126 = scmp.ne.s32.totalorder %s118, %s121
      %p127 = scmp.eq.s32.totalorder %s16, 0
      %p128 = por %p126, %p127
      %p129 = scmp.ne.s32.totalorder %s118, %s121
      %p130 = scmp.eq.s32.totalorder %s21, 1
      %p131 = por %p129, %p130
      %p132 = scmp.ne.s32.totalorder %s121, %s122
      %p133 = scmp.eq.s32.totalorder %s21, 0
      %p134 = por %p132, %p133
      %p135 = scmp.ne.s32.totalorder %s121, %s122
      %p136 = scmp.eq.s32.totalorder %s22, 1
      %p137 = por %p135, %p136
      %p139 = scmp.ne.s32.totalorder %s122, %s138
      %p140 = scmp.eq.s32.totalorder %s22, 0
      %p141 = por %p139, %p140
      %p142 = scmp.le.s32.totalorder 1, %s16
      %p143 = scmp.lt.s32.totalorder %s16, 3
      %p144 = pnand %p142, %p143
      %p145 = pneg %p144
      // Predicated region
      $region9: #{matmul_bias_act.1} parent=5 // pred_check
        _
      $region10: #{matmul_bias_act.1} parent=5 // pred_check_branch
        %147 = sbr.rel (%p144) target = $region12
      $region11: #{matmul_bias_act.1} parent=5 // pred_region
        %s148 = ssub.s32 %s16, 1
        // Predicated region
        $region13: #{matmul_bias_act.1} parent=11 // pred_check
          %p149 = pneg %p80
        $region14: #{matmul_bias_act.1} parent=11 // pred_check_branch
          %151 = sbr.rel (%p149) target = $region16
        $region15: #{matmul_bias_act.1} parent=11 // pred_region
          %s153 = ssub.s32 2048, 2048
          %154 = vsyncadd [#allocation6], %s153
          %s155 = smul.addr %s26, 64
          %s156 = scalar_lea.hbm %s1, %s155
          %s157 = sshll.u32 [#allocation5], 4
          %s158 = int_to_ptr.vmem [resolvable:$true] %s157
          %163 = dma.hbm_to_vmem [thread:$0]  %s156, 2048, %s158, [#allocation6], 64, 64, 4
        $region16: #{matmul_bias_act.1} parent=11 // pred_fallthru
          _
        // Predicated region
        $region17: #{matmul_bias_act.1} parent=11 // pred_check
          %p164 = pneg %p106
        $region18: #{matmul_bias_act.1} parent=11 // pred_check_branch
          %166 = sbr.rel (%p164) target = $region20
        $region19: #{matmul_bias_act.1} parent=11 // pred_region
          %s168 = ssub.s32 16, 16
          %169 = vsyncadd [#allocation6], %s168
          %s170 = smul.addr %s26, 16
          %s171 = scalar_lea.hbm %s2, %s170
          %s173 = sshll.u32 [#allocation7], 4
          %s174 = int_to_ptr.vmem [resolvable:$true] %s173
          %176 = dma.hbm_to_vmem [thread:$0]  %s171, 16, %s174, [#allocation6]
        $region20: #{matmul_bias_act.1} parent=11 // pred_fallthru
          _
      $region12: #{matmul_bias_act.1} parent=5 // pred_fallthru
        _
      %p177 = scmp.lt.s32.totalorder %s16, 2
      // Predicated region
      $region21: #{matmul_bias_act.1} parent=5 // pred_check
        %p178 = pneg %p177
      $region22: #{matmul_bias_act.1} parent=5 // pred_check_branch
        %180 = sbr.rel (%p178) target = $region24
      $region23: #{matmul_bias_act.1} parent=5 // pred_region
        // Predicated region
        $region25: #{matmul_bias_act.1} parent=23 // pred_check
          %p181 = pneg %p48
        $region26: #{matmul_bias_act.1} parent=23 // pred_check_branch
          %183 = sbr.rel (%p181) target = $region28
        $region27: #{matmul_bias_act.1} parent=23 // pred_region
          %s184 = sand.u32 %s38, 1
          %s185 = scalar_lea.sflag [#allocation3], %s184
          %s186 = sand.u32 %s38, 1
          %s187 = smul.addr %s186, 2048
          %s188 = scalar_lea.vmem [#allocation2], %s187
          %s189 = smul.u32 256, %s23
          %s191 = ssub.s32 32768, 32768
          %192 = vsyncadd %s185, %s191
          %s193 = smul.addr %s189, 2
          %s194 = smul.addr %s193, 64
          %s195 = scalar_lea.hbm %s0, %s194
          %s196 = sshll.u32 %s188, 4
          %s197 = int_to_ptr.vmem [resolvable:$true] %s196
          %202 = dma.hbm_to_vmem [thread:$0]  %s195, 32768, %s197, %s185, 128, 128, 8
        $region28: #{matmul_bias_act.1} parent=23 // pred_fallthru
          _
      $region24: #{matmul_bias_act.1} parent=5 // pred_fallthru
        _
      %p203 = scmp.le.s32.totalorder 1, %s16
      %p204 = scmp.lt.s32.totalorder %s16, 3
      %p205 = pnand %p203, %p204
      %p206 = pneg %p205
      // Predicated region
      $region29: #{matmul_bias_act.1} parent=5 // pred_check
        _
      $region30: #{matmul_bias_act.1} parent=5 // pred_check_branch
        %208 = sbr.rel (%p205) target = $region32
      $region31: #{matmul_bias_act.1} parent=5 // pred_region
        %s209 = ssub.s32 %s16, 1
        %s210 = sand.u32 %s41, 1
        %s211 = scalar_lea.sflag [#allocation3], %s210
        %s212 = sand.u32 %s41, 1
        %s213 = smul.addr %s212, 2048
        %s214 = scalar_lea.vmem [#allocation2], %s213
        // Predicated region
        $region33: #{matmul_bias_act.1} parent=31 // pred_check
          %p215 = pneg %p54
        $region34: #{matmul_bias_act.1} parent=31 // pred_check_branch
          %217 = sbr.rel (%p215) target = $region36
        $region35: #{matmul_bias_act.1} parent=31 // pred_region
          %218 = dma.done %s211, 32768
        $region36: #{matmul_bias_act.1} parent=31 // pred_fallthru
          _
        // Predicated region
        $region37: #{matmul_bias_act.1} parent=31 // pred_check
          %p219 = pneg %p80
        $region38: #{matmul_bias_act.1} parent=31 // pred_check_branch
          %221 = sbr.rel (%p219) target = $region40
        $region39: #{matmul_bias_act.1} parent=31 // pred_region
          %222 = dma.done [#allocation6], 2048
        $region40: #{matmul_bias_act.1} parent=31 // pred_fallthru
          _
        // Predicated region
        $region41: #{matmul_bias_act.1} parent=31 // pred_check
          %p223 = pneg %p106
        $region42: #{matmul_bias_act.1} parent=31 // pred_check_branch
          %225 = sbr.rel (%p223) target = $region44
        $region43: #{matmul_bias_act.1} parent=31 // pred_region
          %226 = dma.done [#allocation6], 16
        $region44: #{matmul_bias_act.1} parent=31 // pred_fallthru
          _
        %s227 = sand.u32 %s41, 1
        %s228 = scalar_lea.sflag [#allocation3], %s227
        %s229 = sand.u32 %s41, 1
        %s230 = smul.addr %s229, 2048
        %s231 = scalar_lea.vmem [#allocation2], %s230
        %p232 = pneg %p54
        %p233 = pneg %p51
        %p234 = pneg %p80
        %p235 = pneg %p77
        %p236 = pneg %p106
        %p237 = pneg %p103
        %p238 = pneg %p134
        %p239 = pneg %p131
        %s240 = sand.u32 %s121, 1
        %s241 = scalar_lea.sflag [#allocation4], %s240
        %s242 = sand.u32 %s121, 1
        %s243 = smul.addr %s242, 1024
        %s244 = scalar_lea.vmem [#allocation8], %s243
        %s245 = smul.u32 256, %s25
        %s246 = smul.u32 256, %s25
        %v248 = vld [vmem:[%s214] sm:$0xff]
        %v249 = vld [vmem:[%s214 + $0x8] sm:$0xff]
        %v250 = vld [vmem:[%s214 + $0x10] sm:$0xff]
        %v251 = vld [vmem:[%s214 + $0x18] sm:$0xff]
        %v252 = vld [vmem:[%s214 + $0x20] sm:$0xff]
        %v253 = vld [vmem:[%s214 + $0x28] sm:$0xff]
        %v254 = vld [vmem:[%s214 + $0x30] sm:$0xff]
        %v255 = vld [vmem:[%s214 + $0x38] sm:$0xff]
        %v256 = vld [vmem:[%s214 + $0x40] sm:$0xff]
        %v257 = vld [vmem:[%s214 + $0x48] sm:$0xff]
        %v258 = vld [vmem:[%s214 + $0x50] sm:$0xff]
        %v259 = vld [vmem:[%s214 + $0x58] sm:$0xff]
        %v260 = vld [vmem:[%s214 + $0x60] sm:$0xff]
        %v261 = vld [vmem:[%s214 + $0x68] sm:$0xff]
        %v262 = vld [vmem:[%s214 + $0x70] sm:$0xff]
        %v263 = vld [vmem:[%s214 + $0x78] sm:$0xff]
        %v264 = vld [vmem:[%s214 + $0x80] sm:$0xff]
        %v265 = vld [vmem:[%s214 + $0x88] sm:$0xff]
        %v266 = vld [vmem:[%s214 + $0x90] sm:$0xff]
        %v267 = vld [vmem:[%s214 + $0x98] sm:$0xff]
        %v268 = vld [vmem:[%s214 + $0xa0] sm:$0xff]
        %v269 = vld [vmem:[%s214 + $0xa8] sm:$0xff]
        %v270 = vld [vmem:[%s214 + $0xb0] sm:$0xff]
        %v271 = vld [vmem:[%s214 + $0xb8] sm:$0xff]
        %v272 = vld [vmem:[%s214 + $0xc0] sm:$0xff]
        %v273 = vld [vmem:[%s214 + $0xc8] sm:$0xff]
        %v274 = vld [vmem:[%s214 + $0xd0] sm:$0xff]
        %v275 = vld [vmem:[%s214 + $0xd8] sm:$0xff]
        %v276 = vld [vmem:[%s214 + $0xe0] sm:$0xff]
        %v277 = vld [vmem:[%s214 + $0xe8] sm:$0xff]
        %v278 = vld [vmem:[%s214 + $0xf0] sm:$0xff]
        %v279 = vld [vmem:[%s214 + $0xf8] sm:$0xff]
        %v280 = vld [vmem:[%s214 + $0x100] sm:$0xff]
        %v281 = vld [vmem:[%s214 + $0x108] sm:$0xff]
        %v282 = vld [vmem:[%s214 + $0x110] sm:$0xff]
        %v283 = vld [vmem:[%s214 + $0x118] sm:$0xff]
        %v284 = vld [vmem:[%s214 + $0x120] sm:$0xff]
        %v285 = vld [vmem:[%s214 + $0x128] sm:$0xff]
        %v286 = vld [vmem:[%s214 + $0x130] sm:$0xff]
        %v287 = vld [vmem:[%s214 + $0x138] sm:$0xff]
        %v288 = vld [vmem:[%s214 + $0x140] sm:$0xff]
        %v289 = vld [vmem:[%s214 + $0x148] sm:$0xff]
        %v290 = vld [vmem:[%s214 + $0x150] sm:$0xff]
        %v291 = vld [vmem:[%s214 + $0x158] sm:$0xff]
        %v292 = vld [vmem:[%s214 + $0x160] sm:$0xff]
        %v293 = vld [vmem:[%s214 + $0x168] sm:$0xff]
        %v294 = vld [vmem:[%s214 + $0x170] sm:$0xff]
        %v295 = vld [vmem:[%s214 + $0x178] sm:$0xff]
        %v296 = vld [vmem:[%s214 + $0x180] sm:$0xff]
        %v297 = vld [vmem:[%s214 + $0x188] sm:$0xff]
        %v298 = vld [vmem:[%s214 + $0x190] sm:$0xff]
        %v299 = vld [vmem:[%s214 + $0x198] sm:$0xff]
        %v300 = vld [vmem:[%s214 + $0x1a0] sm:$0xff]
        %v301 = vld [vmem:[%s214 + $0x1a8] sm:$0xff]
        %v302 = vld [vmem:[%s214 + $0x1b0] sm:$0xff]
        %v303 = vld [vmem:[%s214 + $0x1b8] sm:$0xff]
        %v304 = vld [vmem:[%s214 + $0x1c0] sm:$0xff]
        %v305 = vld [vmem:[%s214 + $0x1c8] sm:$0xff]
        %v306 = vld [vmem:[%s214 + $0x1d0] sm:$0xff]
        %v307 = vld [vmem:[%s214 + $0x1d8] sm:$0xff]
        %v308 = vld [vmem:[%s214 + $0x1e0] sm:$0xff]
        %v309 = vld [vmem:[%s214 + $0x1e8] sm:$0xff]
        %v310 = vld [vmem:[%s214 + $0x1f0] sm:$0xff]
        %v311 = vld [vmem:[%s214 + $0x1f8] sm:$0xff]
        %v312 = vld [vmem:[%s214 + $0x200] sm:$0xff]
        %v313 = vld [vmem:[%s214 + $0x208] sm:$0xff]
        %v314 = vld [vmem:[%s214 + $0x210] sm:$0xff]
        %v315 = vld [vmem:[%s214 + $0x218] sm:$0xff]
        %v316 = vld [vmem:[%s214 + $0x220] sm:$0xff]
        %v317 = vld [vmem:[%s214 + $0x228] sm:$0xff]
        %v318 = vld [vmem:[%s214 + $0x230] sm:$0xff]
        %v319 = vld [vmem:[%s214 + $0x238] sm:$0xff]
        %v320 = vld [vmem:[%s214 + $0x240] sm:$0xff]
        %v321 = vld [vmem:[%s214 + $0x248] sm:$0xff]
        %v322 = vld [vmem:[%s214 + $0x250] sm:$0xff]
        %v323 = vld [vmem:[%s214 + $0x258] sm:$0xff]
        %v324 = vld [vmem:[%s214 + $0x260] sm:$0xff]
        %v325 = vld [vmem:[%s214 + $0x268] sm:$0xff]
        %v326 = vld [vmem:[%s214 + $0x270] sm:$0xff]
        %v327 = vld [vmem:[%s214 + $0x278] sm:$0xff]
        %v328 = vld [vmem:[%s214 + $0x280] sm:$0xff]
        %v329 = vld [vmem:[%s214 + $0x288] sm:$0xff]
        %v330 = vld [vmem:[%s214 + $0x290] sm:$0xff]
        %v331 = vld [vmem:[%s214 + $0x298] sm:$0xff]
        %v332 = vld [vmem:[%s214 + $0x2a0] sm:$0xff]
        %v333 = vld [vmem:[%s214 + $0x2a8] sm:$0xff]
        %v334 = vld [vmem:[%s214 + $0x2b0] sm:$0xff]
        %v335 = vld [vmem:[%s214 + $0x2b8] sm:$0xff]
        %v336 = vld [vmem:[%s214 + $0x2c0] sm:$0xff]
        %v337 = vld [vmem:[%s214 + $0x2c8] sm:$0xff]
        %v338 = vld [vmem:[%s214 + $0x2d0] sm:$0xff]
        %v339 = vld [vmem:[%s214 + $0x2d8] sm:$0xff]
        %v340 = vld [vmem:[%s214 + $0x2e0] sm:$0xff]
        %v341 = vld [vmem:[%s214 + $0x2e8] sm:$0xff]
        %v342 = vld [vmem:[%s214 + $0x2f0] sm:$0xff]
        %v343 = vld [vmem:[%s214 + $0x2f8] sm:$0xff]
        %v344 = vld [vmem:[%s214 + $0x300] sm:$0xff]
        %v345 = vld [vmem:[%s214 + $0x308] sm:$0xff]
        %v346 = vld [vmem:[%s214 + $0x310] sm:$0xff]
        %v347 = vld [vmem:[%s214 + $0x318] sm:$0xff]
        %v348 = vld [vmem:[%s214 + $0x320] sm:$0xff]
        %v349 = vld [vmem:[%s214 + $0x328] sm:$0xff]
        %v350 = vld [vmem:[%s214 + $0x330] sm:$0xff]
        %v351 = vld [vmem:[%s214 + $0x338] sm:$0xff]
        %v352 = vld [vmem:[%s214 + $0x340] sm:$0xff]
        %v353 = vld [vmem:[%s214 + $0x348] sm:$0xff]
        %v354 = vld [vmem:[%s214 + $0x350] sm:$0xff]
        %v355 = vld [vmem:[%s214 + $0x358] sm:$0xff]
        %v356 = vld [vmem:[%s214 + $0x360] sm:$0xff]
        %v357 = vld [vmem:[%s214 + $0x368] sm:$0xff]
        %v358 = vld [vmem:[%s214 + $0x370] sm:$0xff]
        %v359 = vld [vmem:[%s214 + $0x378] sm:$0xff]
        %v360 = vld [vmem:[%s214 + $0x380] sm:$0xff]
        %v361 = vld [vmem:[%s214 + $0x388] sm:$0xff]
        %v362 = vld [vmem:[%s214 + $0x390] sm:$0xff]
        %v363 = vld [vmem:[%s214 + $0x398] sm:$0xff]
        %v364 = vld [vmem:[%s214 + $0x3a0] sm:$0xff]
        %v365 = vld [vmem:[%s214 + $0x3a8] sm:$0xff]
        %v366 = vld [vmem:[%s214 + $0x3b0] sm:$0xff]
        %v367 = vld [vmem:[%s214 + $0x3b8] sm:$0xff]
        %v368 = vld [vmem:[%s214 + $0x3c0] sm:$0xff]
        %v369 = vld [vmem:[%s214 + $0x3c8] sm:$0xff]
        %v370 = vld [vmem:[%s214 + $0x3d0] sm:$0xff]
        %v371 = vld [vmem:[%s214 + $0x3d8] sm:$0xff]
        %v372 = vld [vmem:[%s214 + $0x3e0] sm:$0xff]
        %v373 = vld [vmem:[%s214 + $0x3e8] sm:$0xff]
        %v374 = vld [vmem:[%s214 + $0x3f0] sm:$0xff]
        %v375 = vld [vmem:[%s214 + $0x3f8] sm:$0xff]
        %v376 = vld [vmem:[%s214 + $0x400] sm:$0xff]
        %v377 = vld [vmem:[%s214 + $0x408] sm:$0xff]
        %v378 = vld [vmem:[%s214 + $0x410] sm:$0xff]
        %v379 = vld [vmem:[%s214 + $0x418] sm:$0xff]
        %v380 = vld [vmem:[%s214 + $0x420] sm:$0xff]
        %v381 = vld [vmem:[%s214 + $0x428] sm:$0xff]
        %v382 = vld [vmem:[%s214 + $0x430] sm:$0xff]
        %v383 = vld [vmem:[%s214 + $0x438] sm:$0xff]
        %v384 = vld [vmem:[%s214 + $0x440] sm:$0xff]
        %v385 = vld [vmem:[%s214 + $0x448] sm:$0xff]
        %v386 = vld [vmem:[%s214 + $0x450] sm:$0xff]
        %v387 = vld [vmem:[%s214 + $0x458] sm:$0xff]
        %v388 = vld [vmem:[%s214 + $0x460] sm:$0xff]
        %v389 = vld [vmem:[%s214 + $0x468] sm:$0xff]
        %v390 = vld [vmem:[%s214 + $0x470] sm:$0xff]
        %v391 = vld [vmem:[%s214 + $0x478] sm:$0xff]
        %v392 = vld [vmem:[%s214 + $0x480] sm:$0xff]
        %v393 = vld [vmem:[%s214 + $0x488] sm:$0xff]
        %v394 = vld [vmem:[%s214 + $0x490] sm:$0xff]
        %v395 = vld [vmem:[%s214 + $0x498] sm:$0xff]
        %v396 = vld [vmem:[%s214 + $0x4a0] sm:$0xff]
        %v397 = vld [vmem:[%s214 + $0x4a8] sm:$0xff]
        %v398 = vld [vmem:[%s214 + $0x4b0] sm:$0xff]
        %v399 = vld [vmem:[%s214 + $0x4b8] sm:$0xff]
        %v400 = vld [vmem:[%s214 + $0x4c0] sm:$0xff]
        %v401 = vld [vmem:[%s214 + $0x4c8] sm:$0xff]
        %v402 = vld [vmem:[%s214 + $0x4d0] sm:$0xff]
        %v403 = vld [vmem:[%s214 + $0x4d8] sm:$0xff]
        %v404 = vld [vmem:[%s214 + $0x4e0] sm:$0xff]
        %v405 = vld [vmem:[%s214 + $0x4e8] sm:$0xff]
        %v406 = vld [vmem:[%s214 + $0x4f0] sm:$0xff]
        %v407 = vld [vmem:[%s214 + $0x4f8] sm:$0xff]
        %v408 = vld [vmem:[%s214 + $0x500] sm:$0xff]
        %v409 = vld [vmem:[%s214 + $0x508] sm:$0xff]
        %v410 = vld [vmem:[%s214 + $0x510] sm:$0xff]
        %v411 = vld [vmem:[%s214 + $0x518] sm:$0xff]
        %v412 = vld [vmem:[%s214 + $0x520] sm:$0xff]
        %v413 = vld [vmem:[%s214 + $0x528] sm:$0xff]
        %v414 = vld [vmem:[%s214 + $0x530] sm:$0xff]
        %v415 = vld [vmem:[%s214 + $0x538] sm:$0xff]
        %v416 = vld [vmem:[%s214 + $0x540] sm:$0xff]
        %v417 = vld [vmem:[%s214 + $0x548] sm:$0xff]
        %v418 = vld [vmem:[%s214 + $0x550] sm:$0xff]
        %v419 = vld [vmem:[%s214 + $0x558] sm:$0xff]
        %v420 = vld [vmem:[%s214 + $0x560] sm:$0xff]
        %v421 = vld [vmem:[%s214 + $0x568] sm:$0xff]
        %v422 = vld [vmem:[%s214 + $0x570] sm:$0xff]
        %v423 = vld [vmem:[%s214 + $0x578] sm:$0xff]
        %v424 = vld [vmem:[%s214 + $0x580] sm:$0xff]
        %v425 = vld [vmem:[%s214 + $0x588] sm:$0xff]
        %v426 = vld [vmem:[%s214 + $0x590] sm:$0xff]
        %v427 = vld [vmem:[%s214 + $0x598] sm:$0xff]
        %v428 = vld [vmem:[%s214 + $0x5a0] sm:$0xff]
        %v429 = vld [vmem:[%s214 + $0x5a8] sm:$0xff]
        %v430 = vld [vmem:[%s214 + $0x5b0] sm:$0xff]
        %v431 = vld [vmem:[%s214 + $0x5b8] sm:$0xff]
        %v432 = vld [vmem:[%s214 + $0x5c0] sm:$0xff]
        %v433 = vld [vmem:[%s214 + $0x5c8] sm:$0xff]
        %v434 = vld [vmem:[%s214 + $0x5d0] sm:$0xff]
        %v435 = vld [vmem:[%s214 + $0x5d8] sm:$0xff]
        %v436 = vld [vmem:[%s214 + $0x5e0] sm:$0xff]
        %v437 = vld [vmem:[%s214 + $0x5e8] sm:$0xff]
        %v438 = vld [vmem:[%s214 + $0x5f0] sm:$0xff]
        %v439 = vld [vmem:[%s214 + $0x5f8] sm:$0xff]
        %v440 = vld [vmem:[%s214 + $0x600] sm:$0xff]
        %v441 = vld [vmem:[%s214 + $0x608] sm:$0xff]
        %v442 = vld [vmem:[%s214 + $0x610] sm:$0xff]
        %v443 = vld [vmem:[%s214 + $0x618] sm:$0xff]
        %v444 = vld [vmem:[%s214 + $0x620] sm:$0xff]
        %v445 = vld [vmem:[%s214 + $0x628] sm:$0xff]
        %v446 = vld [vmem:[%s214 + $0x630] sm:$0xff]
        %v447 = vld [vmem:[%s214 + $0x638] sm:$0xff]
        %v448 = vld [vmem:[%s214 + $0x640] sm:$0xff]
        %v449 = vld [vmem:[%s214 + $0x648] sm:$0xff]
        %v450 = vld [vmem:[%s214 + $0x650] sm:$0xff]
        %v451 = vld [vmem:[%s214 + $0x658] sm:$0xff]
        %v452 = vld [vmem:[%s214 + $0x660] sm:$0xff]
        %v453 = vld [vmem:[%s214 + $0x668] sm:$0xff]
        %v454 = vld [vmem:[%s214 + $0x670] sm:$0xff]
        %v455 = vld [vmem:[%s214 + $0x678] sm:$0xff]
        %v456 = vld [vmem:[%s214 + $0x680] sm:$0xff]
        %v457 = vld [vmem:[%s214 + $0x688] sm:$0xff]
        %v458 = vld [vmem:[%s214 + $0x690] sm:$0xff]
        %v459 = vld [vmem:[%s214 + $0x698] sm:$0xff]
        %v460 = vld [vmem:[%s214 + $0x6a0] sm:$0xff]
        %v461 = vld [vmem:[%s214 + $0x6a8] sm:$0xff]
        %v462 = vld [vmem:[%s214 + $0x6b0] sm:$0xff]
        %v463 = vld [vmem:[%s214 + $0x6b8] sm:$0xff]
        %v464 = vld [vmem:[%s214 + $0x6c0] sm:$0xff]
        %v465 = vld [vmem:[%s214 + $0x6c8] sm:$0xff]
        %v466 = vld [vmem:[%s214 + $0x6d0] sm:$0xff]
        %v467 = vld [vmem:[%s214 + $0x6d8] sm:$0xff]
        %v468 = vld [vmem:[%s214 + $0x6e0] sm:$0xff]
        %v469 = vld [vmem:[%s214 + $0x6e8] sm:$0xff]
        %v470 = vld [vmem:[%s214 + $0x6f0] sm:$0xff]
        %v471 = vld [vmem:[%s214 + $0x6f8] sm:$0xff]
        %v472 = vld [vmem:[%s214 + $0x700] sm:$0xff]
        %v473 = vld [vmem:[%s214 + $0x708] sm:$0xff]
        %v474 = vld [vmem:[%s214 + $0x710] sm:$0xff]
        %v475 = vld [vmem:[%s214 + $0x718] sm:$0xff]
        %v476 = vld [vmem:[%s214 + $0x720] sm:$0xff]
        %v477 = vld [vmem:[%s214 + $0x728] sm:$0xff]
        %v478 = vld [vmem:[%s214 + $0x730] sm:$0xff]
        %v479 = vld [vmem:[%s214 + $0x738] sm:$0xff]
        %v480 = vld [vmem:[%s214 + $0x740] sm:$0xff]
        %v481 = vld [vmem:[%s214 + $0x748] sm:$0xff]
        %v482 = vld [vmem:[%s214 + $0x750] sm:$0xff]
        %v483 = vld [vmem:[%s214 + $0x758] sm:$0xff]
        %v484 = vld [vmem:[%s214 + $0x760] sm:$0xff]
        %v485 = vld [vmem:[%s214 + $0x768] sm:$0xff]
        %v486 = vld [vmem:[%s214 + $0x770] sm:$0xff]
        %v487 = vld [vmem:[%s214 + $0x778] sm:$0xff]
        %v488 = vld [vmem:[%s214 + $0x780] sm:$0xff]
        %v489 = vld [vmem:[%s214 + $0x788] sm:$0xff]
        %v490 = vld [vmem:[%s214 + $0x790] sm:$0xff]
        %v491 = vld [vmem:[%s214 + $0x798] sm:$0xff]
        %v492 = vld [vmem:[%s214 + $0x7a0] sm:$0xff]
        %v493 = vld [vmem:[%s214 + $0x7a8] sm:$0xff]
        %v494 = vld [vmem:[%s214 + $0x7b0] sm:$0xff]
        %v495 = vld [vmem:[%s214 + $0x7b8] sm:$0xff]
        %v496 = vld [vmem:[%s214 + $0x7c0] sm:$0xff]
        %v497 = vld [vmem:[%s214 + $0x7c8] sm:$0xff]
        %v498 = vld [vmem:[%s214 + $0x7d0] sm:$0xff]
        %v499 = vld [vmem:[%s214 + $0x7d8] sm:$0xff]
        %v500 = vld [vmem:[%s214 + $0x7e0] sm:$0xff]
        %v501 = vld [vmem:[%s214 + $0x7e8] sm:$0xff]
        %v502 = vld [vmem:[%s214 + $0x7f0] sm:$0xff]
        %v503 = vld [vmem:[%s214 + $0x7f8] sm:$0xff]
        %v504 = vld [vmem:[#allocation5] sm:$0xf]
        %v505 = vld [vmem:[#allocation5 + $0x4] sm:$0xf]
        %v506 = vld [vmem:[#allocation5 + $0x8] sm:$0xf]
        %v507 = vld [vmem:[#allocation5 + $0xc] sm:$0xf]
        %v508 = vld [vmem:[#allocation5 + $0x10] sm:$0xf]
        %v509 = vld [vmem:[#allocation5 + $0x14] sm:$0xf]
        %v510 = vld [vmem:[#allocation5 + $0x18] sm:$0xf]
        %v511 = vld [vmem:[#allocation5 + $0x1c] sm:$0xf]
        %v512 = vld [vmem:[#allocation5 + $0x20] sm:$0xf]
        %v513 = vld [vmem:[#allocation5 + $0x24] sm:$0xf]
        %v514 = vld [vmem:[#allocation5 + $0x28] sm:$0xf]
        %v515 = vld [vmem:[#allocation5 + $0x2c] sm:$0xf]
        %v516 = vld [vmem:[#allocation5 + $0x30] sm:$0xf]
        %v517 = vld [vmem:[#allocation5 + $0x34] sm:$0xf]
        %v518 = vld [vmem:[#allocation5 + $0x38] sm:$0xf]
        %v519 = vld [vmem:[#allocation5 + $0x3c] sm:$0xf]
        %v520 = vld [vmem:[#allocation5 + $0x40] sm:$0xf]
        %v521 = vld [vmem:[#allocation5 + $0x44] sm:$0xf]
        %v522 = vld [vmem:[#allocation5 + $0x48] sm:$0xf]
        %v523 = vld [vmem:[#allocation5 + $0x4c] sm:$0xf]
        %v524 = vld [vmem:[#allocation5 + $0x50] sm:$0xf]
        %v525 = vld [vmem:[#allocation5 + $0x54] sm:$0xf]
        %v526 = vld [vmem:[#allocation5 + $0x58] sm:$0xf]
        %v527 = vld [vmem:[#allocation5 + $0x5c] sm:$0xf]
        %v528 = vld [vmem:[#allocation5 + $0x60] sm:$0xf]
        %v529 = vld [vmem:[#allocation5 + $0x64] sm:$0xf]
        %v530 = vld [vmem:[#allocation5 + $0x68] sm:$0xf]
        %v531 = vld [vmem:[#allocation5 + $0x6c] sm:$0xf]
        %v532 = vld [vmem:[#allocation5 + $0x70] sm:$0xf]
        %v533 = vld [vmem:[#allocation5 + $0x74] sm:$0xf]
        %v534 = vld [vmem:[#allocation5 + $0x78] sm:$0xf]
        %v535 = vld [vmem:[#allocation5 + $0x7c] sm:$0xf]
        %v536 = vld [vmem:[#allocation7] sm:$0x1]
        %v538 = vlaneseq
        %v539 = vshrl.u32 %v538, 7
        %v540 = vsub.s32 0, %v539
        %v541 = vrot.slane %v536, %v540
        %v799 = vunpack.c.l.b16 %v248
        %v800 = vunpack.c.h.b16 %v248
        %v801 = vunpack.c.l.b16 %v249
        %v802 = vunpack.c.h.b16 %v249
        %v803 = vunpack.c.l.b16 %v250
        %v804 = vunpack.c.h.b16 %v250
        %v805 = vunpack.c.l.b16 %v251
        %v806 = vunpack.c.h.b16 %v251
        %v807 = vunpack.c.l.b16 %v252
        %v808 = vunpack.c.h.b16 %v252
        %v809 = vunpack.c.l.b16 %v253
        %v810 = vunpack.c.h.b16 %v253
        %v811 = vunpack.c.l.b16 %v254
        %v812 = vunpack.c.h.b16 %v254
        %v813 = vunpack.c.l.b16 %v255
        %v814 = vunpack.c.h.b16 %v255
        %v815 = vunpack.c.l.b16 %v256
        %v816 = vunpack.c.h.b16 %v256
        %v817 = vunpack.c.l.b16 %v257
        %v818 = vunpack.c.h.b16 %v257
        %v819 = vunpack.c.l.b16 %v258
        %v820 = vunpack.c.h.b16 %v258
        %v821 = vunpack.c.l.b16 %v259
        %v822 = vunpack.c.h.b16 %v259
        %v823 = vunpack.c.l.b16 %v260
        %v824 = vunpack.c.h.b16 %v260
        %v825 = vunpack.c.l.b16 %v261
        %v826 = vunpack.c.h.b16 %v261
        %v827 = vunpack.c.l.b16 %v262
        %v828 = vunpack.c.h.b16 %v262
        %v829 = vunpack.c.l.b16 %v263
        %v830 = vunpack.c.h.b16 %v263
        %v831 = vunpack.c.l.b16 %v264
        %v832 = vunpack.c.h.b16 %v264
        %v833 = vunpack.c.l.b16 %v265
        %v834 = vunpack.c.h.b16 %v265
        %v835 = vunpack.c.l.b16 %v266
        %v836 = vunpack.c.h.b16 %v266
        %v837 = vunpack.c.l.b16 %v267
        %v838 = vunpack.c.h.b16 %v267
        %v839 = vunpack.c.l.b16 %v268
        %v840 = vunpack.c.h.b16 %v268
        %v841 = vunpack.c.l.b16 %v269
        %v842 = vunpack.c.h.b16 %v269
        %v843 = vunpack.c.l.b16 %v270
        %v844 = vunpack.c.h.b16 %v270
        %v845 = vunpack.c.l.b16 %v271
        %v846 = vunpack.c.h.b16 %v271
        %v847 = vunpack.c.l.b16 %v272
        %v848 = vunpack.c.h.b16 %v272
        %v849 = vunpack.c.l.b16 %v273
        %v850 = vunpack.c.h.b16 %v273
        %v851 = vunpack.c.l.b16 %v274
        %v852 = vunpack.c.h.b16 %v274
        %v853 = vunpack.c.l.b16 %v275
        %v854 = vunpack.c.h.b16 %v275
        %v855 = vunpack.c.l.b16 %v276
        %v856 = vunpack.c.h.b16 %v276
        %v857 = vunpack.c.l.b16 %v277
        %v858 = vunpack.c.h.b16 %v277
        %v859 = vunpack.c.l.b16 %v278
        %v860 = vunpack.c.h.b16 %v278
        %v861 = vunpack.c.l.b16 %v279
        %v862 = vunpack.c.h.b16 %v279
        %v863 = vunpack.c.l.b16 %v280
        %v864 = vunpack.c.h.b16 %v280
        %v865 = vunpack.c.l.b16 %v281
        %v866 = vunpack.c.h.b16 %v281
        %v867 = vunpack.c.l.b16 %v282
        %v868 = vunpack.c.h.b16 %v282
        %v869 = vunpack.c.l.b16 %v283
        %v870 = vunpack.c.h.b16 %v283
        %v871 = vunpack.c.l.b16 %v284
        %v872 = vunpack.c.h.b16 %v284
        %v873 = vunpack.c.l.b16 %v285
        %v874 = vunpack.c.h.b16 %v285
        %v875 = vunpack.c.l.b16 %v286
        %v876 = vunpack.c.h.b16 %v286
        %v877 = vunpack.c.l.b16 %v287
        %v878 = vunpack.c.h.b16 %v287
        %v879 = vunpack.c.l.b16 %v288
        %v880 = vunpack.c.h.b16 %v288
        %v881 = vunpack.c.l.b16 %v289
        %v882 = vunpack.c.h.b16 %v289
        %v883 = vunpack.c.l.b16 %v290
        %v884 = vunpack.c.h.b16 %v290
        %v885 = vunpack.c.l.b16 %v291
        %v886 = vunpack.c.h.b16 %v291
        %v887 = vunpack.c.l.b16 %v292
        %v888 = vunpack.c.h.b16 %v292
        %v889 = vunpack.c.l.b16 %v293
        %v890 = vunpack.c.h.b16 %v293
        %v891 = vunpack.c.l.b16 %v294
        %v892 = vunpack.c.h.b16 %v294
        %v893 = vunpack.c.l.b16 %v295
        %v894 = vunpack.c.h.b16 %v295
        %v895 = vunpack.c.l.b16 %v296
        %v896 = vunpack.c.h.b16 %v296
        %v897 = vunpack.c.l.b16 %v297
        %v898 = vunpack.c.h.b16 %v297
        %v899 = vunpack.c.l.b16 %v298
        %v900 = vunpack.c.h.b16 %v298
        %v901 = vunpack.c.l.b16 %v299
        %v902 = vunpack.c.h.b16 %v299
        %v903 = vunpack.c.l.b16 %v300
        %v904 = vunpack.c.h.b16 %v300
        %v905 = vunpack.c.l.b16 %v301
        %v906 = vunpack.c.h.b16 %v301
        %v907 = vunpack.c.l.b16 %v302
        %v908 = vunpack.c.h.b16 %v302
        %v909 = vunpack.c.l.b16 %v303
        %v910 = vunpack.c.h.b16 %v303
        %v911 = vunpack.c.l.b16 %v304
        %v912 = vunpack.c.h.b16 %v304
        %v913 = vunpack.c.l.b16 %v305
        %v914 = vunpack.c.h.b16 %v305
        %v915 = vunpack.c.l.b16 %v306
        %v916 = vunpack.c.h.b16 %v306
        %v917 = vunpack.c.l.b16 %v307
        %v918 = vunpack.c.h.b16 %v307
        %v919 = vunpack.c.l.b16 %v308
        %v920 = vunpack.c.h.b16 %v308
        %v921 = vunpack.c.l.b16 %v309
        %v922 = vunpack.c.h.b16 %v309
        %v923 = vunpack.c.l.b16 %v310
        %v924 = vunpack.c.h.b16 %v310
        %v925 = vunpack.c.l.b16 %v311
        %v926 = vunpack.c.h.b16 %v311
        %v927 = vunpack.c.l.b16 %v312
        %v928 = vunpack.c.h.b16 %v312
        %v929 = vunpack.c.l.b16 %v313
        %v930 = vunpack.c.h.b16 %v313
        %v931 = vunpack.c.l.b16 %v314
        %v932 = vunpack.c.h.b16 %v314
        %v933 = vunpack.c.l.b16 %v315
        %v934 = vunpack.c.h.b16 %v315
        %v935 = vunpack.c.l.b16 %v316
        %v936 = vunpack.c.h.b16 %v316
        %v937 = vunpack.c.l.b16 %v317
        %v938 = vunpack.c.h.b16 %v317
        %v939 = vunpack.c.l.b16 %v318
        %v940 = vunpack.c.h.b16 %v318
        %v941 = vunpack.c.l.b16 %v319
        %v942 = vunpack.c.h.b16 %v319
        %v943 = vunpack.c.l.b16 %v320
        %v944 = vunpack.c.h.b16 %v320
        %v945 = vunpack.c.l.b16 %v321
        %v946 = vunpack.c.h.b16 %v321
        %v947 = vunpack.c.l.b16 %v322
        %v948 = vunpack.c.h.b16 %v322
        %v949 = vunpack.c.l.b16 %v323
        %v950 = vunpack.c.h.b16 %v323
        %v951 = vunpack.c.l.b16 %v324
        %v952 = vunpack.c.h.b16 %v324
        %v953 = vunpack.c.l.b16 %v325
        %v954 = vunpack.c.h.b16 %v325
        %v955 = vunpack.c.l.b16 %v326
        %v956 = vunpack.c.h.b16 %v326
        %v957 = vunpack.c.l.b16 %v327
        %v958 = vunpack.c.h.b16 %v327
        %v959 = vunpack.c.l.b16 %v328
        %v960 = vunpack.c.h.b16 %v328
        %v961 = vunpack.c.l.b16 %v329
        %v962 = vunpack.c.h.b16 %v329
        %v963 = vunpack.c.l.b16 %v330
        %v964 = vunpack.c.h.b16 %v330
        %v965 = vunpack.c.l.b16 %v331
        %v966 = vunpack.c.h.b16 %v331
        %v967 = vunpack.c.l.b16 %v332
        %v968 = vunpack.c.h.b16 %v332
        %v969 = vunpack.c.l.b16 %v333
        %v970 = vunpack.c.h.b16 %v333
        %v971 = vunpack.c.l.b16 %v334
        %v972 = vunpack.c.h.b16 %v334
        %v973 = vunpack.c.l.b16 %v335
        %v974 = vunpack.c.h.b16 %v335
        %v975 = vunpack.c.l.b16 %v336
        %v976 = vunpack.c.h.b16 %v336
        %v977 = vunpack.c.l.b16 %v337
        %v978 = vunpack.c.h.b16 %v337
        %v979 = vunpack.c.l.b16 %v338
        %v980 = vunpack.c.h.b16 %v338
        %v981 = vunpack.c.l.b16 %v339
        %v982 = vunpack.c.h.b16 %v339
        %v983 = vunpack.c.l.b16 %v340
        %v984 = vunpack.c.h.b16 %v340
        %v985 = vunpack.c.l.b16 %v341
        %v986 = vunpack.c.h.b16 %v341
        %v987 = vunpack.c.l.b16 %v342
        %v988 = vunpack.c.h.b16 %v342
        %v989 = vunpack.c.l.b16 %v343
        %v990 = vunpack.c.h.b16 %v343
        %v991 = vunpack.c.l.b16 %v344
        %v992 = vunpack.c.h.b16 %v344
        %v993 = vunpack.c.l.b16 %v345
        %v994 = vunpack.c.h.b16 %v345
        %v995 = vunpack.c.l.b16 %v346
        %v996 = vunpack.c.h.b16 %v346
        %v997 = vunpack.c.l.b16 %v347
        %v998 = vunpack.c.h.b16 %v347
        %v999 = vunpack.c.l.b16 %v348
        %v1000 = vunpack.c.h.b16 %v348
        %v1001 = vunpack.c.l.b16 %v349
        %v1002 = vunpack.c.h.b16 %v349
        %v1003 = vunpack.c.l.b16 %v350
        %v1004 = vunpack.c.h.b16 %v350
        %v1005 = vunpack.c.l.b16 %v351
        %v1006 = vunpack.c.h.b16 %v351
        %v1007 = vunpack.c.l.b16 %v352
        %v1008 = vunpack.c.h.b16 %v352
        %v1009 = vunpack.c.l.b16 %v353
        %v1010 = vunpack.c.h.b16 %v353
        %v1011 = vunpack.c.l.b16 %v354
        %v1012 = vunpack.c.h.b16 %v354
        %v1013 = vunpack.c.l.b16 %v355
        %v1014 = vunpack.c.h.b16 %v355
        %v1015 = vunpack.c.l.b16 %v356
        %v1016 = vunpack.c.h.b16 %v356
        %v1017 = vunpack.c.l.b16 %v357
        %v1018 = vunpack.c.h.b16 %v357
        %v1019 = vunpack.c.l.b16 %v358
        %v1020 = vunpack.c.h.b16 %v358
        %v1021 = vunpack.c.l.b16 %v359
        %v1022 = vunpack.c.h.b16 %v359
        %v1023 = vunpack.c.l.b16 %v360
        %v1024 = vunpack.c.h.b16 %v360
        %v1025 = vunpack.c.l.b16 %v361
        %v1026 = vunpack.c.h.b16 %v361
        %v1027 = vunpack.c.l.b16 %v362
        %v1028 = vunpack.c.h.b16 %v362
        %v1029 = vunpack.c.l.b16 %v363
        %v1030 = vunpack.c.h.b16 %v363
        %v1031 = vunpack.c.l.b16 %v364
        %v1032 = vunpack.c.h.b16 %v364
        %v1033 = vunpack.c.l.b16 %v365
        %v1034 = vunpack.c.h.b16 %v365
        %v1035 = vunpack.c.l.b16 %v366
        %v1036 = vunpack.c.h.b16 %v366
        %v1037 = vunpack.c.l.b16 %v367
        %v1038 = vunpack.c.h.b16 %v367
        %v1039 = vunpack.c.l.b16 %v368
        %v1040 = vunpack.c.h.b16 %v368
        %v1041 = vunpack.c.l.b16 %v369
        %v1042 = vunpack.c.h.b16 %v369
        %v1043 = vunpack.c.l.b16 %v370
        %v1044 = vunpack.c.h.b16 %v370
        %v1045 = vunpack.c.l.b16 %v371
        %v1046 = vunpack.c.h.b16 %v371
        %v1047 = vunpack.c.l.b16 %v372
        %v1048 = vunpack.c.h.b16 %v372
        %v1049 = vunpack.c.l.b16 %v373
        %v1050 = vunpack.c.h.b16 %v373
        %v1051 = vunpack.c.l.b16 %v374
        %v1052 = vunpack.c.h.b16 %v374
        %v1053 = vunpack.c.l.b16 %v375
        %v1054 = vunpack.c.h.b16 %v375
        %v1055 = vunpack.c.l.b16 %v376
        %v1056 = vunpack.c.h.b16 %v376
        %v1057 = vunpack.c.l.b16 %v377
        %v1058 = vunpack.c.h.b16 %v377
        %v1059 = vunpack.c.l.b16 %v378
        %v1060 = vunpack.c.h.b16 %v378
        %v1061 = vunpack.c.l.b16 %v379
        %v1062 = vunpack.c.h.b16 %v379
        %v1063 = vunpack.c.l.b16 %v380
        %v1064 = vunpack.c.h.b16 %v380
        %v1065 = vunpack.c.l.b16 %v381
        %v1066 = vunpack.c.h.b16 %v381
        %v1067 = vunpack.c.l.b16 %v382
        %v1068 = vunpack.c.h.b16 %v382
        %v1069 = vunpack.c.l.b16 %v383
        %v1070 = vunpack.c.h.b16 %v383
        %v1071 = vunpack.c.l.b16 %v384
        %v1072 = vunpack.c.h.b16 %v384
        %v1073 = vunpack.c.l.b16 %v385
        %v1074 = vunpack.c.h.b16 %v385
        %v1075 = vunpack.c.l.b16 %v386
        %v1076 = vunpack.c.h.b16 %v386
        %v1077 = vunpack.c.l.b16 %v387
        %v1078 = vunpack.c.h.b16 %v387
        %v1079 = vunpack.c.l.b16 %v388
        %v1080 = vunpack.c.h.b16 %v388
        %v1081 = vunpack.c.l.b16 %v389
        %v1082 = vunpack.c.h.b16 %v389
        %v1083 = vunpack.c.l.b16 %v390
        %v1084 = vunpack.c.h.b16 %v390
        %v1085 = vunpack.c.l.b16 %v391
        %v1086 = vunpack.c.h.b16 %v391
        %v1087 = vunpack.c.l.b16 %v392
        %v1088 = vunpack.c.h.b16 %v392
        %v1089 = vunpack.c.l.b16 %v393
        %v1090 = vunpack.c.h.b16 %v393
        %v1091 = vunpack.c.l.b16 %v394
        %v1092 = vunpack.c.h.b16 %v394
        %v1093 = vunpack.c.l.b16 %v395
        %v1094 = vunpack.c.h.b16 %v395
        %v1095 = vunpack.c.l.b16 %v396
        %v1096 = vunpack.c.h.b16 %v396
        %v1097 = vunpack.c.l.b16 %v397
        %v1098 = vunpack.c.h.b16 %v397
        %v1099 = vunpack.c.l.b16 %v398
        %v1100 = vunpack.c.h.b16 %v398
        %v1101 = vunpack.c.l.b16 %v399
        %v1102 = vunpack.c.h.b16 %v399
        %v1103 = vunpack.c.l.b16 %v400
        %v1104 = vunpack.c.h.b16 %v400
        %v1105 = vunpack.c.l.b16 %v401
        %v1106 = vunpack.c.h.b16 %v401
        %v1107 = vunpack.c.l.b16 %v402
        %v1108 = vunpack.c.h.b16 %v402
        %v1109 = vunpack.c.l.b16 %v403
        %v1110 = vunpack.c.h.b16 %v403
        %v1111 = vunpack.c.l.b16 %v404
        %v1112 = vunpack.c.h.b16 %v404
        %v1113 = vunpack.c.l.b16 %v405
        %v1114 = vunpack.c.h.b16 %v405
        %v1115 = vunpack.c.l.b16 %v406
        %v1116 = vunpack.c.h.b16 %v406
        %v1117 = vunpack.c.l.b16 %v407
        %v1118 = vunpack.c.h.b16 %v407
        %v1119 = vunpack.c.l.b16 %v408
        %v1120 = vunpack.c.h.b16 %v408
        %v1121 = vunpack.c.l.b16 %v409
        %v1122 = vunpack.c.h.b16 %v409
        %v1123 = vunpack.c.l.b16 %v410
        %v1124 = vunpack.c.h.b16 %v410
        %v1125 = vunpack.c.l.b16 %v411
        %v1126 = vunpack.c.h.b16 %v411
        %v1127 = vunpack.c.l.b16 %v412
        %v1128 = vunpack.c.h.b16 %v412
        %v1129 = vunpack.c.l.b16 %v413
        %v1130 = vunpack.c.h.b16 %v413
        %v1131 = vunpack.c.l.b16 %v414
        %v1132 = vunpack.c.h.b16 %v414
        %v1133 = vunpack.c.l.b16 %v415
        %v1134 = vunpack.c.h.b16 %v415
        %v1135 = vunpack.c.l.b16 %v416
        %v1136 = vunpack.c.h.b16 %v416
        %v1137 = vunpack.c.l.b16 %v417
        %v1138 = vunpack.c.h.b16 %v417
        %v1139 = vunpack.c.l.b16 %v418
        %v1140 = vunpack.c.h.b16 %v418
        %v1141 = vunpack.c.l.b16 %v419
        %v1142 = vunpack.c.h.b16 %v419
        %v1143 = vunpack.c.l.b16 %v420
        %v1144 = vunpack.c.h.b16 %v420
        %v1145 = vunpack.c.l.b16 %v421
        %v1146 = vunpack.c.h.b16 %v421
        %v1147 = vunpack.c.l.b16 %v422
        %v1148 = vunpack.c.h.b16 %v422
        %v1149 = vunpack.c.l.b16 %v423
        %v1150 = vunpack.c.h.b16 %v423
        %v1151 = vunpack.c.l.b16 %v424
        %v1152 = vunpack.c.h.b16 %v424
        %v1153 = vunpack.c.l.b16 %v425
        %v1154 = vunpack.c.h.b16 %v425
        %v1155 = vunpack.c.l.b16 %v426
        %v1156 = vunpack.c.h.b16 %v426
        %v1157 = vunpack.c.l.b16 %v427
        %v1158 = vunpack.c.h.b16 %v427
        %v1159 = vunpack.c.l.b16 %v428
        %v1160 = vunpack.c.h.b16 %v428
        %v1161 = vunpack.c.l.b16 %v429
        %v1162 = vunpack.c.h.b16 %v429
        %v1163 = vunpack.c.l.b16 %v430
        %v1164 = vunpack.c.h.b16 %v430
        %v1165 = vunpack.c.l.b16 %v431
        %v1166 = vunpack.c.h.b16 %v431
        %v1167 = vunpack.c.l.b16 %v432
        %v1168 = vunpack.c.h.b16 %v432
        %v1169 = vunpack.c.l.b16 %v433
        %v1170 = vunpack.c.h.b16 %v433
        %v1171 = vunpack.c.l.b16 %v434
        %v1172 = vunpack.c.h.b16 %v434
        %v1173 = vunpack.c.l.b16 %v435
        %v1174 = vunpack.c.h.b16 %v435
        %v1175 = vunpack.c.l.b16 %v436
        %v1176 = vunpack.c.h.b16 %v436
        %v1177 = vunpack.c.l.b16 %v437
        %v1178 = vunpack.c.h.b16 %v437
        %v1179 = vunpack.c.l.b16 %v438
        %v1180 = vunpack.c.h.b16 %v438
        %v1181 = vunpack.c.l.b16 %v439
        %v1182 = vunpack.c.h.b16 %v439
        %v1183 = vunpack.c.l.b16 %v440
        %v1184 = vunpack.c.h.b16 %v440
        %v1185 = vunpack.c.l.b16 %v441
        %v1186 = vunpack.c.h.b16 %v441
        %v1187 = vunpack.c.l.b16 %v442
        %v1188 = vunpack.c.h.b16 %v442
        %v1189 = vunpack.c.l.b16 %v443
        %v1190 = vunpack.c.h.b16 %v443
        %v1191 = vunpack.c.l.b16 %v444
        %v1192 = vunpack.c.h.b16 %v444
        %v1193 = vunpack.c.l.b16 %v445
        %v1194 = vunpack.c.h.b16 %v445
        %v1195 = vunpack.c.l.b16 %v446
        %v1196 = vunpack.c.h.b16 %v446
        %v1197 = vunpack.c.l.b16 %v447
        %v1198 = vunpack.c.h.b16 %v447
        %v1199 = vunpack.c.l.b16 %v448
        %v1200 = vunpack.c.h.b16 %v448
        %v1201 = vunpack.c.l.b16 %v449
        %v1202 = vunpack.c.h.b16 %v449
        %v1203 = vunpack.c.l.b16 %v450
        %v1204 = vunpack.c.h.b16 %v450
        %v1205 = vunpack.c.l.b16 %v451
        %v1206 = vunpack.c.h.b16 %v451
        %v1207 = vunpack.c.l.b16 %v452
        %v1208 = vunpack.c.h.b16 %v452
        %v1209 = vunpack.c.l.b16 %v453
        %v1210 = vunpack.c.h.b16 %v453
        %v1211 = vunpack.c.l.b16 %v454
        %v1212 = vunpack.c.h.b16 %v454
        %v1213 = vunpack.c.l.b16 %v455
        %v1214 = vunpack.c.h.b16 %v455
        %v1215 = vunpack.c.l.b16 %v456
        %v1216 = vunpack.c.h.b16 %v456
        %v1217 = vunpack.c.l.b16 %v457
        %v1218 = vunpack.c.h.b16 %v457
        %v1219 = vunpack.c.l.b16 %v458
        %v1220 = vunpack.c.h.b16 %v458
        %v1221 = vunpack.c.l.b16 %v459
        %v1222 = vunpack.c.h.b16 %v459
        %v1223 = vunpack.c.l.b16 %v460
        %v1224 = vunpack.c.h.b16 %v460
        %v1225 = vunpack.c.l.b16 %v461
        %v1226 = vunpack.c.h.b16 %v461
        %v1227 = vunpack.c.l.b16 %v462
        %v1228 = vunpack.c.h.b16 %v462
        %v1229 = vunpack.c.l.b16 %v463
        %v1230 = vunpack.c.h.b16 %v463
        %v1231 = vunpack.c.l.b16 %v464
        %v1232 = vunpack.c.h.b16 %v464
        %v1233 = vunpack.c.l.b16 %v465
        %v1234 = vunpack.c.h.b16 %v465
        %v1235 = vunpack.c.l.b16 %v466
        %v1236 = vunpack.c.h.b16 %v466
        %v1237 = vunpack.c.l.b16 %v467
        %v1238 = vunpack.c.h.b16 %v467
        %v1239 = vunpack.c.l.b16 %v468
        %v1240 = vunpack.c.h.b16 %v468
        %v1241 = vunpack.c.l.b16 %v469
        %v1242 = vunpack.c.h.b16 %v469
        %v1243 = vunpack.c.l.b16 %v470
        %v1244 = vunpack.c.h.b16 %v470
        %v1245 = vunpack.c.l.b16 %v471
        %v1246 = vunpack.c.h.b16 %v471
        %v1247 = vunpack.c.l.b16 %v472
        %v1248 = vunpack.c.h.b16 %v472
        %v1249 = vunpack.c.l.b16 %v473
        %v1250 = vunpack.c.h.b16 %v473
        %v1251 = vunpack.c.l.b16 %v474
        %v1252 = vunpack.c.h.b16 %v474
        %v1253 = vunpack.c.l.b16 %v475
        %v1254 = vunpack.c.h.b16 %v475
        %v1255 = vunpack.c.l.b16 %v476
        %v1256 = vunpack.c.h.b16 %v476
        %v1257 = vunpack.c.l.b16 %v477
        %v1258 = vunpack.c.h.b16 %v477
        %v1259 = vunpack.c.l.b16 %v478
        %v1260 = vunpack.c.h.b16 %v478
        %v1261 = vunpack.c.l.b16 %v479
        %v1262 = vunpack.c.h.b16 %v479
        %v1263 = vunpack.c.l.b16 %v480
        %v1264 = vunpack.c.h.b16 %v480
        %v1265 = vunpack.c.l.b16 %v481
        %v1266 = vunpack.c.h.b16 %v481
        %v1267 = vunpack.c.l.b16 %v482
        %v1268 = vunpack.c.h.b16 %v482
        %v1269 = vunpack.c.l.b16 %v483
        %v1270 = vunpack.c.h.b16 %v483
        %v1271 = vunpack.c.l.b16 %v484
        %v1272 = vunpack.c.h.b16 %v484
        %v1273 = vunpack.c.l.b16 %v485
        %v1274 = vunpack.c.h.b16 %v485
        %v1275 = vunpack.c.l.b16 %v486
        %v1276 = vunpack.c.h.b16 %v486
        %v1277 = vunpack.c.l.b16 %v487
        %v1278 = vunpack.c.h.b16 %v487
        %v1279 = vunpack.c.l.b16 %v488
        %v1280 = vunpack.c.h.b16 %v488
        %v1281 = vunpack.c.l.b16 %v489
        %v1282 = vunpack.c.h.b16 %v489
        %v1283 = vunpack.c.l.b16 %v490
        %v1284 = vunpack.c.h.b16 %v490
        %v1285 = vunpack.c.l.b16 %v491
        %v1286 = vunpack.c.h.b16 %v491
        %v1287 = vunpack.c.l.b16 %v492
        %v1288 = vunpack.c.h.b16 %v492
        %v1289 = vunpack.c.l.b16 %v493
        %v1290 = vunpack.c.h.b16 %v493
        %v1291 = vunpack.c.l.b16 %v494
        %v1292 = vunpack.c.h.b16 %v494
        %v1293 = vunpack.c.l.b16 %v495
        %v1294 = vunpack.c.h.b16 %v495
        %v1295 = vunpack.c.l.b16 %v496
        %v1296 = vunpack.c.h.b16 %v496
        %v1297 = vunpack.c.l.b16 %v497
        %v1298 = vunpack.c.h.b16 %v497
        %v1299 = vunpack.c.l.b16 %v498
        %v1300 = vunpack.c.h.b16 %v498
        %v1301 = vunpack.c.l.b16 %v499
        %v1302 = vunpack.c.h.b16 %v499
        %v1303 = vunpack.c.l.b16 %v500
        %v1304 = vunpack.c.h.b16 %v500
        %v1305 = vunpack.c.l.b16 %v501
        %v1306 = vunpack.c.h.b16 %v501
        %v1307 = vunpack.c.l.b16 %v502
        %v1308 = vunpack.c.h.b16 %v502
        %v1309 = vunpack.c.l.b16 %v503
        %v1310 = vunpack.c.h.b16 %v503
        %v1311 = vpack.c.b16 %v801, %v799
        %v1312 = vpack.c.b16 %v802, %v800
        %v1313 = vpack.c.b16 %v805, %v803
        %v1314 = vpack.c.b16 %v806, %v804
        %v1315 = vpack.c.b16 %v809, %v807
        %v1316 = vpack.c.b16 %v810, %v808
        %v1317 = vpack.c.b16 %v813, %v811
        %v1318 = vpack.c.b16 %v814, %v812
        %v1319 = vpack.c.b16 %v817, %v815
        %v1320 = vpack.c.b16 %v818, %v816
        %v1321 = vpack.c.b16 %v821, %v819
        %v1322 = vpack.c.b16 %v822, %v820
        %v1323 = vpack.c.b16 %v825, %v823
        %v1324 = vpack.c.b16 %v826, %v824
        %v1325 = vpack.c.b16 %v829, %v827
        %v1326 = vpack.c.b16 %v830, %v828
        %v1327 = vpack.c.b16 %v833, %v831
        %v1328 = vpack.c.b16 %v834, %v832
        %v1329 = vpack.c.b16 %v837, %v835
        %v1330 = vpack.c.b16 %v838, %v836
        %v1331 = vpack.c.b16 %v841, %v839
        %v1332 = vpack.c.b16 %v842, %v840
        %v1333 = vpack.c.b16 %v845, %v843
        %v1334 = vpack.c.b16 %v846, %v844
        %v1335 = vpack.c.b16 %v849, %v847
        %v1336 = vpack.c.b16 %v850, %v848
        %v1337 = vpack.c.b16 %v853, %v851
        %v1338 = vpack.c.b16 %v854, %v852
        %v1339 = vpack.c.b16 %v857, %v855
        %v1340 = vpack.c.b16 %v858, %v856
        %v1341 = vpack.c.b16 %v861, %v859
        %v1342 = vpack.c.b16 %v862, %v860
        %v1343 = vpack.c.b16 %v865, %v863
        %v1344 = vpack.c.b16 %v866, %v864
        %v1345 = vpack.c.b16 %v869, %v867
        %v1346 = vpack.c.b16 %v870, %v868
        %v1347 = vpack.c.b16 %v873, %v871
        %v1348 = vpack.c.b16 %v874, %v872
        %v1349 = vpack.c.b16 %v877, %v875
        %v1350 = vpack.c.b16 %v878, %v876
        %v1351 = vpack.c.b16 %v881, %v879
        %v1352 = vpack.c.b16 %v882, %v880
        %v1353 = vpack.c.b16 %v885, %v883
        %v1354 = vpack.c.b16 %v886, %v884
        %v1355 = vpack.c.b16 %v889, %v887
        %v1356 = vpack.c.b16 %v890, %v888
        %v1357 = vpack.c.b16 %v893, %v891
        %v1358 = vpack.c.b16 %v894, %v892
        %v1359 = vpack.c.b16 %v897, %v895
        %v1360 = vpack.c.b16 %v898, %v896
        %v1361 = vpack.c.b16 %v901, %v899
        %v1362 = vpack.c.b16 %v902, %v900
        %v1363 = vpack.c.b16 %v905, %v903
        %v1364 = vpack.c.b16 %v906, %v904
        %v1365 = vpack.c.b16 %v909, %v907
        %v1366 = vpack.c.b16 %v910, %v908
        %v1367 = vpack.c.b16 %v913, %v911
        %v1368 = vpack.c.b16 %v914, %v912
        %v1369 = vpack.c.b16 %v917, %v915
        %v1370 = vpack.c.b16 %v918, %v916
        %v1371 = vpack.c.b16 %v921, %v919
        %v1372 = vpack.c.b16 %v922, %v920
        %v1373 = vpack.c.b16 %v925, %v923
        %v1374 = vpack.c.b16 %v926, %v924
        %v1375 = vpack.c.b16 %v929, %v927
        %v1376 = vpack.c.b16 %v930, %v928
        %v1377 = vpack.c.b16 %v933, %v931
        %v1378 = vpack.c.b16 %v934, %v932
        %v1379 = vpack.c.b16 %v937, %v935
        %v1380 = vpack.c.b16 %v938, %v936
        %v1381 = vpack.c.b16 %v941, %v939
        %v1382 = vpack.c.b16 %v942, %v940
        %v1383 = vpack.c.b16 %v945, %v943
        %v1384 = vpack.c.b16 %v946, %v944
        %v1385 = vpack.c.b16 %v949, %v947
        %v1386 = vpack.c.b16 %v950, %v948
        %v1387 = vpack.c.b16 %v953, %v951
        %v1388 = vpack.c.b16 %v954, %v952
        %v1389 = vpack.c.b16 %v957, %v955
        %v1390 = vpack.c.b16 %v958, %v956
        %v1391 = vpack.c.b16 %v961, %v959
        %v1392 = vpack.c.b16 %v962, %v960
        %v1393 = vpack.c.b16 %v965, %v963
        %v1394 = vpack.c.b16 %v966, %v964
        %v1395 = vpack.c.b16 %v969, %v967
        %v1396 = vpack.c.b16 %v970, %v968
        %v1397 = vpack.c.b16 %v973, %v971
        %v1398 = vpack.c.b16 %v974, %v972
        %v1399 = vpack.c.b16 %v977, %v975
        %v1400 = vpack.c.b16 %v978, %v976
        %v1401 = vpack.c.b16 %v981, %v979
        %v1402 = vpack.c.b16 %v982, %v980
        %v1403 = vpack.c.b16 %v985, %v983
        %v1404 = vpack.c.b16 %v986, %v984
        %v1405 = vpack.c.b16 %v989, %v987
        %v1406 = vpack.c.b16 %v990, %v988
        %v1407 = vpack.c.b16 %v993, %v991
        %v1408 = vpack.c.b16 %v994, %v992
        %v1409 = vpack.c.b16 %v997, %v995
        %v1410 = vpack.c.b16 %v998, %v996
        %v1411 = vpack.c.b16 %v1001, %v999
        %v1412 = vpack.c.b16 %v1002, %v1000
        %v1413 = vpack.c.b16 %v1005, %v1003
        %v1414 = vpack.c.b16 %v1006, %v1004
        %v1415 = vpack.c.b16 %v1009, %v1007
        %v1416 = vpack.c.b16 %v1010, %v1008
        %v1417 = vpack.c.b16 %v1013, %v1011
        %v1418 = vpack.c.b16 %v1014, %v1012
        %v1419 = vpack.c.b16 %v1017, %v1015
        %v1420 = vpack.c.b16 %v1018, %v1016
        %v1421 = vpack.c.b16 %v1021, %v1019
        %v1422 = vpack.c.b16 %v1022, %v1020
        %v1423 = vpack.c.b16 %v1025, %v1023
        %v1424 = vpack.c.b16 %v1026, %v1024
        %v1425 = vpack.c.b16 %v1029, %v1027
        %v1426 = vpack.c.b16 %v1030, %v1028
        %v1427 = vpack.c.b16 %v1033, %v1031
        %v1428 = vpack.c.b16 %v1034, %v1032
        %v1429 = vpack.c.b16 %v1037, %v1035
        %v1430 = vpack.c.b16 %v1038, %v1036
        %v1431 = vpack.c.b16 %v1041, %v1039
        %v1432 = vpack.c.b16 %v1042, %v1040
        %v1433 = vpack.c.b16 %v1045, %v1043
        %v1434 = vpack.c.b16 %v1046, %v1044
        %v1435 = vpack.c.b16 %v1049, %v1047
        %v1436 = vpack.c.b16 %v1050, %v1048
        %v1437 = vpack.c.b16 %v1053, %v1051
        %v1438 = vpack.c.b16 %v1054, %v1052
        %v1439 = vpack.c.b16 %v1057, %v1055
        %v1440 = vpack.c.b16 %v1058, %v1056
        %v1441 = vpack.c.b16 %v1061, %v1059
        %v1442 = vpack.c.b16 %v1062, %v1060
        %v1443 = vpack.c.b16 %v1065, %v1063
        %v1444 = vpack.c.b16 %v1066, %v1064
        %v1445 = vpack.c.b16 %v1069, %v1067
        %v1446 = vpack.c.b16 %v1070, %v1068
        %v1447 = vpack.c.b16 %v1073, %v1071
        %v1448 = vpack.c.b16 %v1074, %v1072
        %v1449 = vpack.c.b16 %v1077, %v1075
        %v1450 = vpack.c.b16 %v1078, %v1076
        %v1451 = vpack.c.b16 %v1081, %v1079
        %v1452 = vpack.c.b16 %v1082, %v1080
        %v1453 = vpack.c.b16 %v1085, %v1083
        %v1454 = vpack.c.b16 %v1086, %v1084
        %v1455 = vpack.c.b16 %v1089, %v1087
        %v1456 = vpack.c.b16 %v1090, %v1088
        %v1457 = vpack.c.b16 %v1093, %v1091
        %v1458 = vpack.c.b16 %v1094, %v1092
        %v1459 = vpack.c.b16 %v1097, %v1095
        %v1460 = vpack.c.b16 %v1098, %v1096
        %v1461 = vpack.c.b16 %v1101, %v1099
        %v1462 = vpack.c.b16 %v1102, %v1100
        %v1463 = vpack.c.b16 %v1105, %v1103
        %v1464 = vpack.c.b16 %v1106, %v1104
        %v1465 = vpack.c.b16 %v1109, %v1107
        %v1466 = vpack.c.b16 %v1110, %v1108
        %v1467 = vpack.c.b16 %v1113, %v1111
        %v1468 = vpack.c.b16 %v1114, %v1112
        %v1469 = vpack.c.b16 %v1117, %v1115
        %v1470 = vpack.c.b16 %v1118, %v1116
        %v1471 = vpack.c.b16 %v1121, %v1119
        %v1472 = vpack.c.b16 %v1122, %v1120
        %v1473 = vpack.c.b16 %v1125, %v1123
        %v1474 = vpack.c.b16 %v1126, %v1124
        %v1475 = vpack.c.b16 %v1129, %v1127
        %v1476 = vpack.c.b16 %v1130, %v1128
        %v1477 = vpack.c.b16 %v1133, %v1131
        %v1478 = vpack.c.b16 %v1134, %v1132
        %v1479 = vpack.c.b16 %v1137, %v1135
        %v1480 = vpack.c.b16 %v1138, %v1136
        %v1481 = vpack.c.b16 %v1141, %v1139
        %v1482 = vpack.c.b16 %v1142, %v1140
        %v1483 = vpack.c.b16 %v1145, %v1143
        %v1484 = vpack.c.b16 %v1146, %v1144
        %v1485 = vpack.c.b16 %v1149, %v1147
        %v1486 = vpack.c.b16 %v1150, %v1148
        %v1487 = vpack.c.b16 %v1153, %v1151
        %v1488 = vpack.c.b16 %v1154, %v1152
        %v1489 = vpack.c.b16 %v1157, %v1155
        %v1490 = vpack.c.b16 %v1158, %v1156
        %v1491 = vpack.c.b16 %v1161, %v1159
        %v1492 = vpack.c.b16 %v1162, %v1160
        %v1493 = vpack.c.b16 %v1165, %v1163
        %v1494 = vpack.c.b16 %v1166, %v1164
        %v1495 = vpack.c.b16 %v1169, %v1167
        %v1496 = vpack.c.b16 %v1170, %v1168
        %v1497 = vpack.c.b16 %v1173, %v1171
        %v1498 = vpack.c.b16 %v1174, %v1172
        %v1499 = vpack.c.b16 %v1177, %v1175
        %v1500 = vpack.c.b16 %v1178, %v1176
        %v1501 = vpack.c.b16 %v1181, %v1179
        %v1502 = vpack.c.b16 %v1182, %v1180
        %v1503 = vpack.c.b16 %v1185, %v1183
        %v1504 = vpack.c.b16 %v1186, %v1184
        %v1505 = vpack.c.b16 %v1189, %v1187
        %v1506 = vpack.c.b16 %v1190, %v1188
        %v1507 = vpack.c.b16 %v1193, %v1191
        %v1508 = vpack.c.b16 %v1194, %v1192
        %v1509 = vpack.c.b16 %v1197, %v1195
        %v1510 = vpack.c.b16 %v1198, %v1196
        %v1511 = vpack.c.b16 %v1201, %v1199
        %v1512 = vpack.c.b16 %v1202, %v1200
        %v1513 = vpack.c.b16 %v1205, %v1203
        %v1514 = vpack.c.b16 %v1206, %v1204
        %v1515 = vpack.c.b16 %v1209, %v1207
        %v1516 = vpack.c.b16 %v1210, %v1208
        %v1517 = vpack.c.b16 %v1213, %v1211
        %v1518 = vpack.c.b16 %v1214, %v1212
        %v1519 = vpack.c.b16 %v1217, %v1215
        %v1520 = vpack.c.b16 %v1218, %v1216
        %v1521 = vpack.c.b16 %v1221, %v1219
        %v1522 = vpack.c.b16 %v1222, %v1220
        %v1523 = vpack.c.b16 %v1225, %v1223
        %v1524 = vpack.c.b16 %v1226, %v1224
        %v1525 = vpack.c.b16 %v1229, %v1227
        %v1526 = vpack.c.b16 %v1230, %v1228
        %v1527 = vpack.c.b16 %v1233, %v1231
        %v1528 = vpack.c.b16 %v1234, %v1232
        %v1529 = vpack.c.b16 %v1237, %v1235
        %v1530 = vpack.c.b16 %v1238, %v1236
        %v1531 = vpack.c.b16 %v1241, %v1239
        %v1532 = vpack.c.b16 %v1242, %v1240
        %v1533 = vpack.c.b16 %v1245, %v1243
        %v1534 = vpack.c.b16 %v1246, %v1244
        %v1535 = vpack.c.b16 %v1249, %v1247
        %v1536 = vpack.c.b16 %v1250, %v1248
        %v1537 = vpack.c.b16 %v1253, %v1251
        %v1538 = vpack.c.b16 %v1254, %v1252
        %v1539 = vpack.c.b16 %v1257, %v1255
        %v1540 = vpack.c.b16 %v1258, %v1256
        %v1541 = vpack.c.b16 %v1261, %v1259
        %v1542 = vpack.c.b16 %v1262, %v1260
        %v1543 = vpack.c.b16 %v1265, %v1263
        %v1544 = vpack.c.b16 %v1266, %v1264
        %v1545 = vpack.c.b16 %v1269, %v1267
        %v1546 = vpack.c.b16 %v1270, %v1268
        %v1547 = vpack.c.b16 %v1273, %v1271
        %v1548 = vpack.c.b16 %v1274, %v1272
        %v1549 = vpack.c.b16 %v1277, %v1275
        %v1550 = vpack.c.b16 %v1278, %v1276
        %v1551 = vpack.c.b16 %v1281, %v1279
        %v1552 = vpack.c.b16 %v1282, %v1280
        %v1553 = vpack.c.b16 %v1285, %v1283
        %v1554 = vpack.c.b16 %v1286, %v1284
        %v1555 = vpack.c.b16 %v1289, %v1287
        %v1556 = vpack.c.b16 %v1290, %v1288
        %v1557 = vpack.c.b16 %v1293, %v1291
        %v1558 = vpack.c.b16 %v1294, %v1292
        %v1559 = vpack.c.b16 %v1297, %v1295
        %v1560 = vpack.c.b16 %v1298, %v1296
        %v1561 = vpack.c.b16 %v1301, %v1299
        %v1562 = vpack.c.b16 %v1302, %v1300
        %v1563 = vpack.c.b16 %v1305, %v1303
        %v1564 = vpack.c.b16 %v1306, %v1304
        %v1565 = vpack.c.b16 %v1309, %v1307
        %v1566 = vpack.c.b16 %v1310, %v1308
        %v1855 = vunpack.c.l.b16 %v504
        %v1856 = vunpack.c.l.b16 %v505
        %v1857 = vunpack.c.l.b16 %v506
        %v1858 = vunpack.c.l.b16 %v507
        %v1859 = vunpack.c.l.b16 %v508
        %v1860 = vunpack.c.l.b16 %v509
        %v1861 = vunpack.c.l.b16 %v510
        %v1862 = vunpack.c.l.b16 %v511
        %v1863 = vunpack.c.l.b16 %v512
        %v1864 = vunpack.c.l.b16 %v513
        %v1865 = vunpack.c.l.b16 %v514
        %v1866 = vunpack.c.l.b16 %v515
        %v1867 = vunpack.c.l.b16 %v516
        %v1868 = vunpack.c.l.b16 %v517
        %v1869 = vunpack.c.l.b16 %v518
        %v1870 = vunpack.c.l.b16 %v519
        %v1871 = vunpack.c.l.b16 %v520
        %v1872 = vunpack.c.l.b16 %v521
        %v1873 = vunpack.c.l.b16 %v522
        %v1874 = vunpack.c.l.b16 %v523
        %v1875 = vunpack.c.l.b16 %v524
        %v1876 = vunpack.c.l.b16 %v525
        %v1877 = vunpack.c.l.b16 %v526
        %v1878 = vunpack.c.l.b16 %v527
        %v1879 = vunpack.c.l.b16 %v528
        %v1880 = vunpack.c.l.b16 %v529
        %v1881 = vunpack.c.l.b16 %v530
        %v1882 = vunpack.c.l.b16 %v531
        %v1883 = vunpack.c.l.b16 %v532
        %v1884 = vunpack.c.l.b16 %v533
        %v1885 = vunpack.c.l.b16 %v534
        %v1886 = vunpack.c.l.b16 %v535
        %v1887 = vpack.c.b16 %v1856, %v1855
        %v1888 = vpack.c.b16 %v1858, %v1857
        %v1889 = vpack.c.b16 %v1860, %v1859
        %v1890 = vpack.c.b16 %v1862, %v1861
        %v1891 = vpack.c.b16 %v1864, %v1863
        %v1892 = vpack.c.b16 %v1866, %v1865
        %v1893 = vpack.c.b16 %v1868, %v1867
        %v1894 = vpack.c.b16 %v1870, %v1869
        %v1895 = vpack.c.b16 %v1872, %v1871
        %v1896 = vpack.c.b16 %v1874, %v1873
        %v1897 = vpack.c.b16 %v1876, %v1875
        %v1898 = vpack.c.b16 %v1878, %v1877
        %v1899 = vpack.c.b16 %v1880, %v1879
        %v1900 = vpack.c.b16 %v1882, %v1881
        %v1901 = vpack.c.b16 %v1884, %v1883
        %v1902 = vpack.c.b16 %v1886, %v1885
        %1919 = vmatprep.subr.bf16.mxu0 0
        %1920 = vmatpush1.bf16.msra.mxu0 %v1887
        %1921 = vmatprep.subr.bf16.mxu0 0
        %1922 = vmatpush1.bf16.msra.mxu0 %v1888
        %1923 = vmatprep.subr.bf16.mxu0 0
        %1924 = vmatpush1.bf16.msra.mxu0 %v1889
        %1925 = vmatprep.subr.bf16.mxu0 0
        %1926 = vmatpush1.bf16.msra.mxu0 %v1890
        %1927 = vmatprep.subr.bf16.mxu0 0
        %1928 = vmatpush1.bf16.msra.mxu0 %v1891
        %1929 = vmatprep.subr.bf16.mxu0 0
        %1930 = vmatpush1.bf16.msra.mxu0 %v1892
        %1931 = vmatprep.subr.bf16.mxu0 0
        %1932 = vmatpush1.bf16.msra.mxu0 %v1893
        %1933 = vmatprep.subr.bf16.mxu0 0
        %1934 = vmatpush1.bf16.msra.mxu0 %v1894
        %1935 = vmatprep.subr.bf16.mxu0 0
        %1936 = vmatpush1.bf16.msra.mxu0 %v1895
        %1937 = vmatprep.subr.bf16.mxu0 0
        %1938 = vmatpush1.bf16.msra.mxu0 %v1896
        %1939 = vmatprep.subr.bf16.mxu0 0
        %1940 = vmatpush1.bf16.msra.mxu0 %v1897
        %1941 = vmatprep.subr.bf16.mxu0 0
        %1942 = vmatpush1.bf16.msra.mxu0 %v1898
        %1943 = vmatprep.subr.bf16.mxu0 0
        %1944 = vmatpush1.bf16.msra.mxu0 %v1899
        %1945 = vmatprep.subr.bf16.mxu0 0
        %1946 = vmatpush1.bf16.msra.mxu0 %v1900
        %1947 = vmatprep.subr.bf16.mxu0 0
        %1948 = vmatpush1.bf16.msra.mxu0 %v1901
        %1949 = vmatprep.subr.bf16.mxu0 0
        %1950 = vmatpush1.bf16.msra.mxu0 %v1902
        %1951 = vmatprep.mubr.bf16.mxu0 %v1312
        %1952 = vmatmul.mubr.bf16.gmra.mrb[0].mxu0 %v1311
        %v1953 = vpop.f32.mrb[0].mxu0
        %v1954 = vadd.f32 %v541, %v1953
        %v1955 = vpop.f32.mrb[0].mxu0
        %v1956 = vpop.f32.mrb[0].mxu0
        %v1957 = vadd.f32 %v541, %v1956
        %v1958 = vpop.f32.mrb[0].mxu0
        %1959 = vmatprep.mubr.bf16.mxu0 %v1314
        %1960 = vmatmul.mubr.bf16.gmra.mrb[0].mxu0 %v1313
        %v1961 = vpop.f32.mrb[0].mxu0
        %v1962 = vadd.f32 %v541, %v1961
        %v1963 = vpop.f32.mrb[0].mxu0
        %v1964 = vpop.f32.mrb[0].mxu0
        %v1965 = vadd.f32 %v541, %v1964
        %v1966 = vpop.f32.mrb[0].mxu0
        %1967 = vmatprep.mubr.bf16.mxu0 %v1316
        %1968 = vmatmul.mubr.bf16.gmra.mrb[0].mxu0 %v1315
        %v1969 = vpop.f32.mrb[0].mxu0
        %v1970 = vadd.f32 %v541, %v1969
        %v1971 = vpop.f32.mrb[0].mxu0
        %v1972 = vpop.f32.mrb[0].mxu0
        %v1973 = vadd.f32 %v541, %v1972
        %v1974 = vpop.f32.mrb[0].mxu0
        %1975 = vmatprep.mubr.bf16.mxu0 %v1318
        %1976 = vmatmul.mubr.bf16.gmra.mrb[0].mxu0 %v1317
        %v1977 = vpop.f32.mrb[0].mxu0
        %v1978 = vadd.f32 %v541, %v1977
        %v1979 = vpop.f32.mrb[0].mxu0
        %v1980 = vpop.f32.mrb[0].mxu0
        %v1981 = vadd.f32 %v541, %v1980
        %v1982 = vpop.f32.mrb[0].mxu0
        %1983 = vmatprep.mubr.bf16.mxu0 %v1320
        %1984 = vmatmul.mubr.bf16.gmra.mrb[0].mxu0 %v1319
        %v1985 = vpop.f32.mrb[0].mxu0
        %v1986 = vadd.f32 %v541, %v1985
        %v1987 = vpop.f32.mrb[0].mxu0
        %v1988 = vpop.f32.mrb[0].mxu0
        %v1989 = vadd.f32 %v541, %v1988
        %v1990 = vpop.f32.mrb[0].mxu0
        %1991 = vmatprep.mubr.bf16.mxu0 %v1322
        %1992 = vmatmul.mubr.bf16.gmra.mrb[0].mxu0 %v1321
        %v1993 = vpop.f32.mrb[0].mxu0
        %v1994 = vadd.f32 %v541, %v1993
        %v1995 = vpop.f32.mrb[0].mxu0
        %v1996 = vpop.f32.mrb[0].mxu0
        %v1997 = vadd.f32 %v541, %v1996
        %v1998 = vpop.f32.mrb[0].mxu0
        %1999 = vmatprep.mubr.bf16.mxu0 %v1324
        %2000 = vmatmul.mubr.bf16.gmra.mrb[0].mxu0 %v1323
        %v2001 = vpop.f32.mrb[0].mxu0
        %v2002 = vadd.f32 %v541, %v2001
        %v2003 = vpop.f32.mrb[0].mxu0
        %v2004 = vpop.f32.mrb[0].mxu0
        %v2005 = vadd.f32 %v541, %v2004
        %v2006 = vpop.f32.mrb[0].mxu0
        %2007 = vmatprep.mubr.bf16.mxu0 %v1326
        %2008 = vmatmul.mubr.bf16.gmra.mrb[0].mxu0 %v1325
        %v2009 = vpop.f32.mrb[0].mxu0
        %v2010 = vadd.f32 %v541, %v2009
        %v2011 = vpop.f32.mrb[0].mxu0
        %v2012 = vpop.f32.mrb[0].mxu0
        %v2013 = vadd.f32 %v541, %v2012
        %v2014 = vpop.f32.mrb[0].mxu0
        %2015 = vmatprep.mubr.bf16.mxu0 %v1328
        %2016 = vmatmul.mubr.bf16.gmra.mrb[0].mxu0 %v1327
        %v2017 = vpop.f32.mrb[0].mxu0
        %v2018 = vadd.f32 %v541, %v2017
        %v2019 = vpop.f32.mrb[0].mxu0
        %v2020 = vpop.f32.mrb[0].mxu0
        %v2021 = vadd.f32 %v541, %v2020
        %v2022 = vpop.f32.mrb[0].mxu0
        %2023 = vmatprep.mubr.bf16.mxu0 %v1330
        %2024 = vmatmul.mubr.bf16.gmra.mrb[0].mxu0 %v1329
        %v2025 = vpop.f32.mrb[0].mxu0
        %v2026 = vadd.f32 %v541, %v2025
        %v2027 = vpop.f32.mrb[0].mxu0
        %v2028 = vpop.f32.mrb[0].mxu0
        %v2029 = vadd.f32 %v541, %v2028
        %v2030 = vpop.f32.mrb[0].mxu0
        %2031 = vmatprep.mubr.bf16.mxu0 %v1332
        %2032 = vmatmul.mubr.bf16.gmra.mrb[0].mxu0 %v1331
        %v2033 = vpop.f32.mrb[0].mxu0
        %v2034 = vadd.f32 %v541, %v2033
        %v2035 = vpop.f32.mrb[0].mxu0
        %v2036 = vpop.f32.mrb[0].mxu0
        %v2037 = vadd.f32 %v541, %v2036
        %v2038 = vpop.f32.mrb[0].mxu0
        %2039 = vmatprep.mubr.bf16.mxu0 %v1334
        %2040 = vmatmul.mubr.bf16.gmra.mrb[0].mxu0 %v1333
        %v2041 = vpop.f32.mrb[0].mxu0
        %v2042 = vadd.f32 %v541, %v2041
        %v2043 = vpop.f32.mrb[0].mxu0
        %v2044 = vpop.f32.mrb[0].mxu0
        %v2045 = vadd.f32 %v541, %v2044
        %v2046 = vpop.f32.mrb[0].mxu0
        %2047 = vmatprep.mubr.bf16.mxu0 %v1336
        %2048 = vmatmul.mubr.bf16.gmra.mrb[0].mxu0 %v1335
        %v2049 = vpop.f32.mrb[0].mxu0
        %v2050 = vadd.f32 %v541, %v2049
        %v2051 = vpop.f32.mrb[0].mxu0
        %v2052 = vpop.f32.mrb[0].mxu0
        %v2053 = vadd.f32 %v541, %v2052
        %v2054 = vpop.f32.mrb[0].mxu0
        %2055 = vmatprep.mubr.bf16.mxu0 %v1338
        %2056 = vmatmul.mubr.bf16.gmra.mrb[0].mxu0 %v1337
        %v2057 = vpop.f32.mrb[0].mxu0
        %v2058 = vadd.f32 %v541, %v2057
        %v2059 = vpop.f32.mrb[0].mxu0
        %v2060 = vpop.f32.mrb[0].mxu0
        %v2061 = vadd.f32 %v541, %v2060
        %v2062 = vpop.f32.mrb[0].mxu0
        %2063 = vmatprep.mubr.bf16.mxu0 %v1340
        %2064 = vmatmul.mubr.bf16.gmra.mrb[0].mxu0 %v1339
        %v2065 = vpop.f32.mrb[0].mxu0
        %v2066 = vadd.f32 %v541, %v2065
        %v2067 = vpop.f32.mrb[0].mxu0
        %v2068 = vpop.f32.mrb[0].mxu0
        %v2069 = vadd.f32 %v541, %v2068
        %v2070 = vpop.f32.mrb[0].mxu0
        %2071 = vmatprep.mubr.bf16.mxu0 %v1342
        %2072 = vmatmul.mubr.bf16.gmra.mrb[0].mxu0 %v1341
        %v2073 = vpop.f32.mrb[0].mxu0
        %v2074 = vadd.f32 %v541, %v2073
        %v2075 = vpop.f32.mrb[0].mxu0
        %v2076 = vpop.f32.mrb[0].mxu0
        %v2077 = vadd.f32 %v541, %v2076
        %v2078 = vpop.f32.mrb[0].mxu0
        %2079 = vmatprep.mubr.bf16.mxu0 %v1344
        %2080 = vmatmul.mubr.bf16.gmra.mrb[0].mxu0 %v1343
        %v2081 = vpop.f32.mrb[0].mxu0
        %v2082 = vadd.f32 %v541, %v2081
        %v2083 = vpop.f32.mrb[0].mxu0
        %v2084 = vpop.f32.mrb[0].mxu0
        %v2085 = vadd.f32 %v541, %v2084
        %v2086 = vpop.f32.mrb[0].mxu0
        %2087 = vmatprep.mubr.bf16.mxu0 %v1346
        %2088 = vmatmul.mubr.bf16.gmra.mrb[0].mxu0 %v1345
        %v2089 = vpop.f32.mrb[0].mxu0
        %v2090 = vadd.f32 %v541, %v2089
        %v2091 = vpop.f32.mrb[0].mxu0
        %v2092 = vpop.f32.mrb[0].mxu0
        %v2093 = vadd.f32 %v541, %v2092
        %v2094 = vpop.f32.mrb[0].mxu0
        %2095 = vmatprep.mubr.bf16.mxu0 %v1348
        %2096 = vmatmul.mubr.bf16.gmra.mrb[0].mxu0 %v1347
        %v2097 = vpop.f32.mrb[0].mxu0
        %v2098 = vadd.f32 %v541, %v2097
        %v2099 = vpop.f32.mrb[0].mxu0
        %v2100 = vpop.f32.mrb[0].mxu0
        %v2101 = vadd.f32 %v541, %v2100
        %v2102 = vpop.f32.mrb[0].mxu0
        %2103 = vmatprep.mubr.bf16.mxu0 %v1350
        %2104 = vmatmul.mubr.bf16.gmra.mrb[0].mxu0 %v1349
        %v2105 = vpop.f32.mrb[0].mxu0
        %v2106 = vadd.f32 %v541, %v2105
        %v2107 = vpop.f32.mrb[0].mxu0
        %v2108 = vpop.f32.mrb[0].mxu0
        %v2109 = vadd.f32 %v541, %v2108
        %v2110 = vpop.f32.mrb[0].mxu0
        %2111 = vmatprep.mubr.bf16.mxu0 %v1352
        %2112 = vmatmul.mubr.bf16.gmra.mrb[0].mxu0 %v1351
        %v2113 = vpop.f32.mrb[0].mxu0
        %v2114 = vadd.f32 %v541, %v2113
        %v2115 = vpop.f32.mrb[0].mxu0
        %v2116 = vpop.f32.mrb[0].mxu0
        %v2117 = vadd.f32 %v541, %v2116
        %v2118 = vpop.f32.mrb[0].mxu0
        %2119 = vmatprep.mubr.bf16.mxu0 %v1354
        %2120 = vmatmul.mubr.bf16.gmra.mrb[0].mxu0 %v1353
        %v2121 = vpop.f32.mrb[0].mxu0
        %v2122 = vadd.f32 %v541, %v2121
        %v2123 = vpop.f32.mrb[0].mxu0
        %v2124 = vpop.f32.mrb[0].mxu0
        %v2125 = vadd.f32 %v541, %v2124
        %v2126 = vpop.f32.mrb[0].mxu0
        %2127 = vmatprep.mubr.bf16.mxu0 %v1356
        %2128 = vmatmul.mubr.bf16.gmra.mrb[0].mxu0 %v1355
        %v2129 = vpop.f32.mrb[0].mxu0
        %v2130 = vadd.f32 %v541, %v2129
        %v2131 = vpop.f32.mrb[0].mxu0
        %v2132 = vpop.f32.mrb[0].mxu0
        %v2133 = vadd.f32 %v541, %v2132
        %v2134 = vpop.f32.mrb[0].mxu0
        %2135 = vmatprep.mubr.bf16.mxu0 %v1358
        %2136 = vmatmul.mubr.bf16.gmra.mrb[0].mxu0 %v1357
        %v2137 = vpop.f32.mrb[0].mxu0
        %v2138 = vadd.f32 %v541, %v2137
        %v2139 = vpop.f32.mrb[0].mxu0
        %v2140 = vpop.f32.mrb[0].mxu0
        %v2141 = vadd.f32 %v541, %v2140
        %v2142 = vpop.f32.mrb[0].mxu0
        %2143 = vmatprep.mubr.bf16.mxu0 %v1360
        %2144 = vmatmul.mubr.bf16.gmra.mrb[0].mxu0 %v1359
        %v2145 = vpop.f32.mrb[0].mxu0
        %v2146 = vadd.f32 %v541, %v2145
        %v2147 = vpop.f32.mrb[0].mxu0
        %v2148 = vpop.f32.mrb[0].mxu0
        %v2149 = vadd.f32 %v541, %v2148
        %v2150 = vpop.f32.mrb[0].mxu0
        %2151 = vmatprep.mubr.bf16.mxu0 %v1362
        %2152 = vmatmul.mubr.bf16.gmra.mrb[0].mxu0 %v1361
        %v2153 = vpop.f32.mrb[0].mxu0
        %v2154 = vadd.f32 %v541, %v2153
        %v2155 = vpop.f32.mrb[0].mxu0
        %v2156 = vpop.f32.mrb[0].mxu0
        %v2157 = vadd.f32 %v541, %v2156
        %v2158 = vpop.f32.mrb[0].mxu0
        %2159 = vmatprep.mubr.bf16.mxu0 %v1364
        %2160 = vmatmul.mubr.bf16.gmra.mrb[0].mxu0 %v1363
        %v2161 = vpop.f32.mrb[0].mxu0
        %v2162 = vadd.f32 %v541, %v2161
        %v2163 = vpop.f32.mrb[0].mxu0
        %v2164 = vpop.f32.mrb[0].mxu0
        %v2165 = vadd.f32 %v541, %v2164
        %v2166 = vpop.f32.mrb[0].mxu0
        %2167 = vmatprep.mubr.bf16.mxu0 %v1366
        %2168 = vmatmul.mubr.bf16.gmra.mrb[0].mxu0 %v1365
        %v2169 = vpop.f32.mrb[0].mxu0
        %v2170 = vadd.f32 %v541, %v2169
        %v2171 = vpop.f32.mrb[0].mxu0
        %v2172 = vpop.f32.mrb[0].mxu0
        %v2173 = vadd.f32 %v541, %v2172
        %v2174 = vpop.f32.mrb[0].mxu0
        %2175 = vmatprep.mubr.bf16.mxu0 %v1368
        %2176 = vmatmul.mubr.bf16.gmra.mrb[0].mxu0 %v1367
        %v2177 = vpop.f32.mrb[0].mxu0
        %v2178 = vadd.f32 %v541, %v2177
        %v2179 = vpop.f32.mrb[0].mxu0
        %v2180 = vpop.f32.mrb[0].mxu0
        %v2181 = vadd.f32 %v541, %v2180
        %v2182 = vpop.f32.mrb[0].mxu0
        %2183 = vmatprep.mubr.bf16.mxu0 %v1370
        %2184 = vmatmul.mubr.bf16.gmra.mrb[0].mxu0 %v1369
        %v2185 = vpop.f32.mrb[0].mxu0
        %v2186 = vadd.f32 %v541, %v2185
        %v2187 = vpop.f32.mrb[0].mxu0
        %v2188 = vpop.f32.mrb[0].mxu0
        %v2189 = vadd.f32 %v541, %v2188
        %v2190 = vpop.f32.mrb[0].mxu0
        %2191 = vmatprep.mubr.bf16.mxu0 %v1372
        %2192 = vmatmul.mubr.bf16.gmra.mrb[0].mxu0 %v1371
        %v2193 = vpop.f32.mrb[0].mxu0
        %v2194 = vadd.f32 %v541, %v2193
        %v2195 = vpop.f32.mrb[0].mxu0
        %v2196 = vpop.f32.mrb[0].mxu0
        %v2197 = vadd.f32 %v541, %v2196
        %v2198 = vpop.f32.mrb[0].mxu0
        %2199 = vmatprep.mubr.bf16.mxu0 %v1374
        %2200 = vmatmul.mubr.bf16.gmra.mrb[0].mxu0 %v1373
        %v2201 = vpop.f32.mrb[0].mxu0
        %v2202 = vadd.f32 %v541, %v2201
        %v2203 = vpop.f32.mrb[0].mxu0
        %v2204 = vpop.f32.mrb[0].mxu0
        %v2205 = vadd.f32 %v541, %v2204
        %v2206 = vpop.f32.mrb[0].mxu0
        %2207 = vmatprep.mubr.bf16.mxu0 %v1376
        %2208 = vmatmul.mubr.bf16.gmra.mrb[0].mxu0 %v1375
        %v2209 = vpop.f32.mrb[0].mxu0
        %v2210 = vadd.f32 %v541, %v2209
        %v2211 = vpop.f32.mrb[0].mxu0
        %v2212 = vpop.f32.mrb[0].mxu0
        %v2213 = vadd.f32 %v541, %v2212
        %v2214 = vpop.f32.mrb[0].mxu0
        %2215 = vmatprep.mubr.bf16.mxu0 %v1378
        %2216 = vmatmul.mubr.bf16.gmra.mrb[0].mxu0 %v1377
        %v2217 = vpop.f32.mrb[0].mxu0
        %v2218 = vadd.f32 %v541, %v2217
        %v2219 = vpop.f32.mrb[0].mxu0
        %v2220 = vpop.f32.mrb[0].mxu0
        %v2221 = vadd.f32 %v541, %v2220
        %v2222 = vpop.f32.mrb[0].mxu0
        %2223 = vmatprep.mubr.bf16.mxu0 %v1380
        %2224 = vmatmul.mubr.bf16.gmra.mrb[0].mxu0 %v1379
        %v2225 = vpop.f32.mrb[0].mxu0
        %v2226 = vadd.f32 %v541, %v2225
        %v2227 = vpop.f32.mrb[0].mxu0
        %v2228 = vpop.f32.mrb[0].mxu0
        %v2229 = vadd.f32 %v541, %v2228
        %v2230 = vpop.f32.mrb[0].mxu0
        %2231 = vmatprep.mubr.bf16.mxu0 %v1382
        %2232 = vmatmul.mubr.bf16.gmra.mrb[0].mxu0 %v1381
        %v2233 = vpop.f32.mrb[0].mxu0
        %v2234 = vadd.f32 %v541, %v2233
        %v2235 = vpop.f32.mrb[0].mxu0
        %v2236 = vpop.f32.mrb[0].mxu0
        %v2237 = vadd.f32 %v541, %v2236
        %v2238 = vpop.f32.mrb[0].mxu0
        %2239 = vmatprep.mubr.bf16.mxu0 %v1384
        %2240 = vmatmul.mubr.bf16.gmra.mrb[0].mxu0 %v1383
        %v2241 = vpop.f32.mrb[0].mxu0
        %v2242 = vadd.f32 %v541, %v2241
        %v2243 = vpop.f32.mrb[0].mxu0
        %v2244 = vpop.f32.mrb[0].mxu0
        %v2245 = vadd.f32 %v541, %v2244
        %v2246 = vpop.f32.mrb[0].mxu0
        %2247 = vmatprep.mubr.bf16.mxu0 %v1386
        %2248 = vmatmul.mubr.bf16.gmra.mrb[0].mxu0 %v1385
        %v2249 = vpop.f32.mrb[0].mxu0
        %v2250 = vadd.f32 %v541, %v2249
        %v2251 = vpop.f32.mrb[0].mxu0
        %v2252 = vpop.f32.mrb[0].mxu0
        %v2253 = vadd.f32 %v541, %v2252
        %v2254 = vpop.f32.mrb[0].mxu0
        %2255 = vmatprep.mubr.bf16.mxu0 %v1388
        %2256 = vmatmul.mubr.bf16.gmra.mrb[0].mxu0 %v1387
        %v2257 = vpop.f32.mrb[0].mxu0
        %v2258 = vadd.f32 %v541, %v2257
        %v2259 = vpop.f32.mrb[0].mxu0
        %v2260 = vpop.f32.mrb[0].mxu0
        %v2261 = vadd.f32 %v541, %v2260
        %v2262 = vpop.f32.mrb[0].mxu0
        %2263 = vmatprep.mubr.bf16.mxu0 %v1390
        %2264 = vmatmul.mubr.bf16.gmra.mrb[0].mxu0 %v1389
        %v2265 = vpop.f32.mrb[0].mxu0
        %v2266 = vadd.f32 %v541, %v2265
        %v2267 = vpop.f32.mrb[0].mxu0
        %v2268 = vpop.f32.mrb[0].mxu0
        %v2269 = vadd.f32 %v541, %v2268
        %v2270 = vpop.f32.mrb[0].mxu0
        %2271 = vmatprep.mubr.bf16.mxu0 %v1392
        %2272 = vmatmul.mubr.bf16.gmra.mrb[0].mxu0 %v1391
        %v2273 = vpop.f32.mrb[0].mxu0
        %v2274 = vadd.f32 %v541, %v2273
        %v2275 = vpop.f32.mrb[0].mxu0
        %v2276 = vpop.f32.mrb[0].mxu0
        %v2277 = vadd.f32 %v541, %v2276
        %v2278 = vpop.f32.mrb[0].mxu0
        %2279 = vmatprep.mubr.bf16.mxu0 %v1394
        %2280 = vmatmul.mubr.bf16.gmra.mrb[0].mxu0 %v1393
        %v2281 = vpop.f32.mrb[0].mxu0
        %v2282 = vadd.f32 %v541, %v2281
        %v2283 = vpop.f32.mrb[0].mxu0
        %v2284 = vpop.f32.mrb[0].mxu0
        %v2285 = vadd.f32 %v541, %v2284
        %v2286 = vpop.f32.mrb[0].mxu0
        %2287 = vmatprep.mubr.bf16.mxu0 %v1396
        %2288 = vmatmul.mubr.bf16.gmra.mrb[0].mxu0 %v1395
        %v2289 = vpop.f32.mrb[0].mxu0
        %v2290 = vadd.f32 %v541, %v2289
        %v2291 = vpop.f32.mrb[0].mxu0
        %v2292 = vpop.f32.mrb[0].mxu0
        %v2293 = vadd.f32 %v541, %v2292
        %v2294 = vpop.f32.mrb[0].mxu0
        %2295 = vmatprep.mubr.bf16.mxu0 %v1398
        %2296 = vmatmul.mubr.bf16.gmra.mrb[0].mxu0 %v1397
        %v2297 = vpop.f32.mrb[0].mxu0
        %v2298 = vadd.f32 %v541, %v2297
        %v2299 = vpop.f32.mrb[0].mxu0
        %v2300 = vpop.f32.mrb[0].mxu0
        %v2301 = vadd.f32 %v541, %v2300
        %v2302 = vpop.f32.mrb[0].mxu0
        %2303 = vmatprep.mubr.bf16.mxu0 %v1400
        %2304 = vmatmul.mubr.bf16.gmra.mrb[0].mxu0 %v1399
        %v2305 = vpop.f32.mrb[0].mxu0
        %v2306 = vadd.f32 %v541, %v2305
        %v2307 = vpop.f32.mrb[0].mxu0
        %v2308 = vpop.f32.mrb[0].mxu0
        %v2309 = vadd.f32 %v541, %v2308
        %v2310 = vpop.f32.mrb[0].mxu0
        %2311 = vmatprep.mubr.bf16.mxu0 %v1402
        %2312 = vmatmul.mubr.bf16.gmra.mrb[0].mxu0 %v1401
        %v2313 = vpop.f32.mrb[0].mxu0
        %v2314 = vadd.f32 %v541, %v2313
        %v2315 = vpop.f32.mrb[0].mxu0
        %v2316 = vpop.f32.mrb[0].mxu0
        %v2317 = vadd.f32 %v541, %v2316
        %v2318 = vpop.f32.mrb[0].mxu0
        %2319 = vmatprep.mubr.bf16.mxu0 %v1404
        %2320 = vmatmul.mubr.bf16.gmra.mrb[0].mxu0 %v1403
        %v2321 = vpop.f32.mrb[0].mxu0
        %v2322 = vadd.f32 %v541, %v2321
        %v2323 = vpop.f32.mrb[0].mxu0
        %v2324 = vpop.f32.mrb[0].mxu0
        %v2325 = vadd.f32 %v541, %v2324
        %v2326 = vpop.f32.mrb[0].mxu0
        %2327 = vmatprep.mubr.bf16.mxu0 %v1406
        %2328 = vmatmul.mubr.bf16.gmra.mrb[0].mxu0 %v1405
        %v2329 = vpop.f32.mrb[0].mxu0
        %v2330 = vadd.f32 %v541, %v2329
        %v2331 = vpop.f32.mrb[0].mxu0
        %v2332 = vpop.f32.mrb[0].mxu0
        %v2333 = vadd.f32 %v541, %v2332
        %v2334 = vpop.f32.mrb[0].mxu0
        %2335 = vmatprep.mubr.bf16.mxu0 %v1408
        %2336 = vmatmul.mubr.bf16.gmra.mrb[0].mxu0 %v1407
        %v2337 = vpop.f32.mrb[0].mxu0
        %v2338 = vadd.f32 %v541, %v2337
        %v2339 = vpop.f32.mrb[0].mxu0
        %v2340 = vpop.f32.mrb[0].mxu0
        %v2341 = vadd.f32 %v541, %v2340
        %v2342 = vpop.f32.mrb[0].mxu0
        %2343 = vmatprep.mubr.bf16.mxu0 %v1410
        %2344 = vmatmul.mubr.bf16.gmra.mrb[0].mxu0 %v1409
        %v2345 = vpop.f32.mrb[0].mxu0
        %v2346 = vadd.f32 %v541, %v2345
        %v2347 = vpop.f32.mrb[0].mxu0
        %v2348 = vpop.f32.mrb[0].mxu0
        %v2349 = vadd.f32 %v541, %v2348
        %v2350 = vpop.f32.mrb[0].mxu0
        %2351 = vmatprep.mubr.bf16.mxu0 %v1412
        %2352 = vmatmul.mubr.bf16.gmra.mrb[0].mxu0 %v1411
        %v2353 = vpop.f32.mrb[0].mxu0
        %v2354 = vadd.f32 %v541, %v2353
        %v2355 = vpop.f32.mrb[0].mxu0
        %v2356 = vpop.f32.mrb[0].mxu0
        %v2357 = vadd.f32 %v541, %v2356
        %v2358 = vpop.f32.mrb[0].mxu0
        %2359 = vmatprep.mubr.bf16.mxu0 %v1414
        %2360 = vmatmul.mubr.bf16.gmra.mrb[0].mxu0 %v1413
        %v2361 = vpop.f32.mrb[0].mxu0
        %v2362 = vadd.f32 %v541, %v2361
        %v2363 = vpop.f32.mrb[0].mxu0
        %v2364 = vpop.f32.mrb[0].mxu0
        %v2365 = vadd.f32 %v541, %v2364
        %v2366 = vpop.f32.mrb[0].mxu0
        %2367 = vmatprep.mubr.bf16.mxu0 %v1416
        %2368 = vmatmul.mubr.bf16.gmra.mrb[0].mxu0 %v1415
        %v2369 = vpop.f32.mrb[0].mxu0
        %v2370 = vadd.f32 %v541, %v2369
        %v2371 = vpop.f32.mrb[0].mxu0
        %v2372 = vpop.f32.mrb[0].mxu0
        %v2373 = vadd.f32 %v541, %v2372
        %v2374 = vpop.f32.mrb[0].mxu0
        %2375 = vmatprep.mubr.bf16.mxu0 %v1418
        %2376 = vmatmul.mubr.bf16.gmra.mrb[0].mxu0 %v1417
        %v2377 = vpop.f32.mrb[0].mxu0
        %v2378 = vadd.f32 %v541, %v2377
        %v2379 = vpop.f32.mrb[0].mxu0
        %v2380 = vpop.f32.mrb[0].mxu0
        %v2381 = vadd.f32 %v541, %v2380
        %v2382 = vpop.f32.mrb[0].mxu0
        %2383 = vmatprep.mubr.bf16.mxu0 %v1420
        %2384 = vmatmul.mubr.bf16.gmra.mrb[0].mxu0 %v1419
        %v2385 = vpop.f32.mrb[0].mxu0
        %v2386 = vadd.f32 %v541, %v2385
        %v2387 = vpop.f32.mrb[0].mxu0
        %v2388 = vpop.f32.mrb[0].mxu0
        %v2389 = vadd.f32 %v541, %v2388
        %v2390 = vpop.f32.mrb[0].mxu0
        %2391 = vmatprep.mubr.bf16.mxu0 %v1422
        %2392 = vmatmul.mubr.bf16.gmra.mrb[0].mxu0 %v1421
        %v2393 = vpop.f32.mrb[0].mxu0
        %v2394 = vadd.f32 %v541, %v2393
        %v2395 = vpop.f32.mrb[0].mxu0
        %v2396 = vpop.f32.mrb[0].mxu0
        %v2397 = vadd.f32 %v541, %v2396
        %v2398 = vpop.f32.mrb[0].mxu0
        %2399 = vmatprep.mubr.bf16.mxu0 %v1424
        %2400 = vmatmul.mubr.bf16.gmra.mrb[0].mxu0 %v1423
        %v2401 = vpop.f32.mrb[0].mxu0
        %v2402 = vadd.f32 %v541, %v2401
        %v2403 = vpop.f32.mrb[0].mxu0
        %v2404 = vpop.f32.mrb[0].mxu0
        %v2405 = vadd.f32 %v541, %v2404
        %v2406 = vpop.f32.mrb[0].mxu0
        %2407 = vmatprep.mubr.bf16.mxu0 %v1426
        %2408 = vmatmul.mubr.bf16.gmra.mrb[0].mxu0 %v1425
        %v2409 = vpop.f32.mrb[0].mxu0
        %v2410 = vadd.f32 %v541, %v2409
        %v2411 = vpop.f32.mrb[0].mxu0
        %v2412 = vpop.f32.mrb[0].mxu0
        %v2413 = vadd.f32 %v541, %v2412
        %v2414 = vpop.f32.mrb[0].mxu0
        %2415 = vmatprep.mubr.bf16.mxu0 %v1428
        %2416 = vmatmul.mubr.bf16.gmra.mrb[0].mxu0 %v1427
        %v2417 = vpop.f32.mrb[0].mxu0
        %v2418 = vadd.f32 %v541, %v2417
        %v2419 = vpop.f32.mrb[0].mxu0
        %v2420 = vpop.f32.mrb[0].mxu0
        %v2421 = vadd.f32 %v541, %v2420
        %v2422 = vpop.f32.mrb[0].mxu0
        %2423 = vmatprep.mubr.bf16.mxu0 %v1430
        %2424 = vmatmul.mubr.bf16.gmra.mrb[0].mxu0 %v1429
        %v2425 = vpop.f32.mrb[0].mxu0
        %v2426 = vadd.f32 %v541, %v2425
        %v2427 = vpop.f32.mrb[0].mxu0
        %v2428 = vpop.f32.mrb[0].mxu0
        %v2429 = vadd.f32 %v541, %v2428
        %v2430 = vpop.f32.mrb[0].mxu0
        %2431 = vmatprep.mubr.bf16.mxu0 %v1432
        %2432 = vmatmul.mubr.bf16.gmra.mrb[0].mxu0 %v1431
        %v2433 = vpop.f32.mrb[0].mxu0
        %v2434 = vadd.f32 %v541, %v2433
        %v2435 = vpop.f32.mrb[0].mxu0
        %v2436 = vpop.f32.mrb[0].mxu0
        %v2437 = vadd.f32 %v541, %v2436
        %v2438 = vpop.f32.mrb[0].mxu0
        %2439 = vmatprep.mubr.bf16.mxu0 %v1434
        %2440 = vmatmul.mubr.bf16.gmra.mrb[0].mxu0 %v1433
        %v2441 = vpop.f32.mrb[0].mxu0
        %v2442 = vadd.f32 %v541, %v2441
        %v2443 = vpop.f32.mrb[0].mxu0
        %v2444 = vpop.f32.mrb[0].mxu0
        %v2445 = vadd.f32 %v541, %v2444
        %v2446 = vpop.f32.mrb[0].mxu0
        %2447 = vmatprep.mubr.bf16.mxu0 %v1436
        %2448 = vmatmul.mubr.bf16.gmra.mrb[0].mxu0 %v1435
        %v2449 = vpop.f32.mrb[0].mxu0
        %v2450 = vadd.f32 %v541, %v2449
        %v2451 = vpop.f32.mrb[0].mxu0
        %v2452 = vpop.f32.mrb[0].mxu0
        %v2453 = vadd.f32 %v541, %v2452
        %v2454 = vpop.f32.mrb[0].mxu0
        %2455 = vmatprep.mubr.bf16.mxu0 %v1438
        %2456 = vmatmul.mubr.bf16.gmra.mrb[0].mxu0 %v1437
        %v2457 = vpop.f32.mrb[0].mxu0
        %v2458 = vadd.f32 %v541, %v2457
        %v2459 = vpop.f32.mrb[0].mxu0
        %v2460 = vpop.f32.mrb[0].mxu0
        %v2461 = vadd.f32 %v541, %v2460
        %v2462 = vpop.f32.mrb[0].mxu0
        %2463 = vmatprep.mubr.bf16.mxu0 %v1440
        %2464 = vmatmul.mubr.bf16.gmra.mrb[0].mxu0 %v1439
        %v2465 = vpop.f32.mrb[0].mxu0
        %v2466 = vadd.f32 %v541, %v2465
        %v2467 = vpop.f32.mrb[0].mxu0
        %v2468 = vpop.f32.mrb[0].mxu0
        %v2469 = vadd.f32 %v541, %v2468
        %v2470 = vpop.f32.mrb[0].mxu0
        %2471 = vmatprep.mubr.bf16.mxu0 %v1442
        %2472 = vmatmul.mubr.bf16.gmra.mrb[0].mxu0 %v1441
        %v2473 = vpop.f32.mrb[0].mxu0
        %v2474 = vadd.f32 %v541, %v2473
        %v2475 = vpop.f32.mrb[0].mxu0
        %v2476 = vpop.f32.mrb[0].mxu0
        %v2477 = vadd.f32 %v541, %v2476
        %v2478 = vpop.f32.mrb[0].mxu0
        %2479 = vmatprep.mubr.bf16.mxu0 %v1444
        %2480 = vmatmul.mubr.bf16.gmra.mrb[0].mxu0 %v1443
        %v2481 = vpop.f32.mrb[0].mxu0
        %v2482 = vadd.f32 %v541, %v2481
        %v2483 = vpop.f32.mrb[0].mxu0
        %v2484 = vpop.f32.mrb[0].mxu0
        %v2485 = vadd.f32 %v541, %v2484
        %v2486 = vpop.f32.mrb[0].mxu0
        %2487 = vmatprep.mubr.bf16.mxu0 %v1446
        %2488 = vmatmul.mubr.bf16.gmra.mrb[0].mxu0 %v1445
        %v2489 = vpop.f32.mrb[0].mxu0
        %v2490 = vadd.f32 %v541, %v2489
        %v2491 = vpop.f32.mrb[0].mxu0
        %v2492 = vpop.f32.mrb[0].mxu0
        %v2493 = vadd.f32 %v541, %v2492
        %v2494 = vpop.f32.mrb[0].mxu0
        %2495 = vmatprep.mubr.bf16.mxu0 %v1448
        %2496 = vmatmul.mubr.bf16.gmra.mrb[0].mxu0 %v1447
        %v2497 = vpop.f32.mrb[0].mxu0
        %v2498 = vadd.f32 %v541, %v2497
        %v2499 = vpop.f32.mrb[0].mxu0
        %v2500 = vpop.f32.mrb[0].mxu0
        %v2501 = vadd.f32 %v541, %v2500
        %v2502 = vpop.f32.mrb[0].mxu0
        %2503 = vmatprep.mubr.bf16.mxu0 %v1450
        %2504 = vmatmul.mubr.bf16.gmra.mrb[0].mxu0 %v1449
        %v2505 = vpop.f32.mrb[0].mxu0
        %v2506 = vadd.f32 %v541, %v2505
        %v2507 = vpop.f32.mrb[0].mxu0
        %v2508 = vpop.f32.mrb[0].mxu0
        %v2509 = vadd.f32 %v541, %v2508
        %v2510 = vpop.f32.mrb[0].mxu0
        %2511 = vmatprep.mubr.bf16.mxu0 %v1452
        %2512 = vmatmul.mubr.bf16.gmra.mrb[0].mxu0 %v1451
        %v2513 = vpop.f32.mrb[0].mxu0
        %v2514 = vadd.f32 %v541, %v2513
        %v2515 = vpop.f32.mrb[0].mxu0
        %v2516 = vpop.f32.mrb[0].mxu0
        %v2517 = vadd.f32 %v541, %v2516
        %v2518 = vpop.f32.mrb[0].mxu0
        %2519 = vmatprep.mubr.bf16.mxu0 %v1454
        %2520 = vmatmul.mubr.bf16.gmra.mrb[0].mxu0 %v1453
        %v2521 = vpop.f32.mrb[0].mxu0
        %v2522 = vadd.f32 %v541, %v2521
        %v2523 = vpop.f32.mrb[0].mxu0
        %v2524 = vpop.f32.mrb[0].mxu0
        %v2525 = vadd.f32 %v541, %v2524
        %v2526 = vpop.f32.mrb[0].mxu0
        %2527 = vmatprep.mubr.bf16.mxu0 %v1456
        %2528 = vmatmul.mubr.bf16.gmra.mrb[0].mxu0 %v1455
        %v2529 = vpop.f32.mrb[0].mxu0
        %v2530 = vadd.f32 %v541, %v2529
        %v2531 = vpop.f32.mrb[0].mxu0
        %v2532 = vpop.f32.mrb[0].mxu0
        %v2533 = vadd.f32 %v541, %v2532
        %v2534 = vpop.f32.mrb[0].mxu0
        %2535 = vmatprep.mubr.bf16.mxu0 %v1458
        %2536 = vmatmul.mubr.bf16.gmra.mrb[0].mxu0 %v1457
        %v2537 = vpop.f32.mrb[0].mxu0
        %v2538 = vadd.f32 %v541, %v2537
        %v2539 = vpop.f32.mrb[0].mxu0
        %v2540 = vpop.f32.mrb[0].mxu0
        %v2541 = vadd.f32 %v541, %v2540
        %v2542 = vpop.f32.mrb[0].mxu0
        %2543 = vmatprep.mubr.bf16.mxu0 %v1460
        %2544 = vmatmul.mubr.bf16.gmra.mrb[0].mxu0 %v1459
        %v2545 = vpop.f32.mrb[0].mxu0
        %v2546 = vadd.f32 %v541, %v2545
        %v2547 = vpop.f32.mrb[0].mxu0
        %v2548 = vpop.f32.mrb[0].mxu0
        %v2549 = vadd.f32 %v541, %v2548
        %v2550 = vpop.f32.mrb[0].mxu0
        %2551 = vmatprep.mubr.bf16.mxu0 %v1462
        %2552 = vmatmul.mubr.bf16.gmra.mrb[0].mxu0 %v1461
        %v2553 = vpop.f32.mrb[0].mxu0
        %v2554 = vadd.f32 %v541, %v2553
        %v2555 = vpop.f32.mrb[0].mxu0
        %v2556 = vpop.f32.mrb[0].mxu0
        %v2557 = vadd.f32 %v541, %v2556
        %v2558 = vpop.f32.mrb[0].mxu0
        %2559 = vmatprep.mubr.bf16.mxu0 %v1464
        %2560 = vmatmul.mubr.bf16.gmra.mrb[0].mxu0 %v1463
        %v2561 = vpop.f32.mrb[0].mxu0
        %v2562 = vadd.f32 %v541, %v2561
        %v2563 = vpop.f32.mrb[0].mxu0
        %v2564 = vpop.f32.mrb[0].mxu0
        %v2565 = vadd.f32 %v541, %v2564
        %v2566 = vpop.f32.mrb[0].mxu0
        %2567 = vmatprep.mubr.bf16.mxu0 %v1466
        %2568 = vmatmul.mubr.bf16.gmra.mrb[0].mxu0 %v1465
        %v2569 = vpop.f32.mrb[0].mxu0
        %v2570 = vadd.f32 %v541, %v2569
        %v2571 = vpop.f32.mrb[0].mxu0
        %v2572 = vpop.f32.mrb[0].mxu0
        %v2573 = vadd.f32 %v541, %v2572
        %v2574 = vpop.f32.mrb[0].mxu0
        %2575 = vmatprep.mubr.bf16.mxu0 %v1468
        %2576 = vmatmul.mubr.bf16.gmra.mrb[0].mxu0 %v1467
        %v2577 = vpop.f32.mrb[0].mxu0
        %v2578 = vadd.f32 %v541, %v2577
        %v2579 = vpop.f32.mrb[0].mxu0
        %v2580 = vpop.f32.mrb[0].mxu0
        %v2581 = vadd.f32 %v541, %v2580
        %v2582 = vpop.f32.mrb[0].mxu0
        %2583 = vmatprep.mubr.bf16.mxu0 %v1470
        %2584 = vmatmul.mubr.bf16.gmra.mrb[0].mxu0 %v1469
        %v2585 = vpop.f32.mrb[0].mxu0
        %v2586 = vadd.f32 %v541, %v2585
        %v2587 = vpop.f32.mrb[0].mxu0
        %v2588 = vpop.f32.mrb[0].mxu0
        %v2589 = vadd.f32 %v541, %v2588
        %v2590 = vpop.f32.mrb[0].mxu0
        %2591 = vmatprep.mubr.bf16.mxu0 %v1472
        %2592 = vmatmul.mubr.bf16.gmra.mrb[0].mxu0 %v1471
        %v2593 = vpop.f32.mrb[0].mxu0
        %v2594 = vadd.f32 %v541, %v2593
        %v2595 = vpop.f32.mrb[0].mxu0
        %v2596 = vpop.f32.mrb[0].mxu0
        %v2597 = vadd.f32 %v541, %v2596
        %v2598 = vpop.f32.mrb[0].mxu0
        %2599 = vmatprep.mubr.bf16.mxu0 %v1474
        %2600 = vmatmul.mubr.bf16.gmra.mrb[0].mxu0 %v1473
        %v2601 = vpop.f32.mrb[0].mxu0
        %v2602 = vadd.f32 %v541, %v2601
        %v2603 = vpop.f32.mrb[0].mxu0
        %v2604 = vpop.f32.mrb[0].mxu0
        %v2605 = vadd.f32 %v541, %v2604
        %v2606 = vpop.f32.mrb[0].mxu0
        %2607 = vmatprep.mubr.bf16.mxu0 %v1476
        %2608 = vmatmul.mubr.bf16.gmra.mrb[0].mxu0 %v1475
        %v2609 = vpop.f32.mrb[0].mxu0
        %v2610 = vadd.f32 %v541, %v2609
        %v2611 = vpop.f32.mrb[0].mxu0
        %v2612 = vpop.f32.mrb[0].mxu0
        %v2613 = vadd.f32 %v541, %v2612
        %v2614 = vpop.f32.mrb[0].mxu0
        %2615 = vmatprep.mubr.bf16.mxu0 %v1478
        %2616 = vmatmul.mubr.bf16.gmra.mrb[0].mxu0 %v1477
        %v2617 = vpop.f32.mrb[0].mxu0
        %v2618 = vadd.f32 %v541, %v2617
        %v2619 = vpop.f32.mrb[0].mxu0
        %v2620 = vpop.f32.mrb[0].mxu0
        %v2621 = vadd.f32 %v541, %v2620
        %v2622 = vpop.f32.mrb[0].mxu0
        %2623 = vmatprep.mubr.bf16.mxu0 %v1480
        %2624 = vmatmul.mubr.bf16.gmra.mrb[0].mxu0 %v1479
        %v2625 = vpop.f32.mrb[0].mxu0
        %v2626 = vadd.f32 %v541, %v2625
        %v2627 = vpop.f32.mrb[0].mxu0
        %v2628 = vpop.f32.mrb[0].mxu0
        %v2629 = vadd.f32 %v541, %v2628
        %v2630 = vpop.f32.mrb[0].mxu0
        %2631 = vmatprep.mubr.bf16.mxu0 %v1482
        %2632 = vmatmul.mubr.bf16.gmra.mrb[0].mxu0 %v1481
        %v2633 = vpop.f32.mrb[0].mxu0
        %v2634 = vadd.f32 %v541, %v2633
        %v2635 = vpop.f32.mrb[0].mxu0
        %v2636 = vpop.f32.mrb[0].mxu0
        %v2637 = vadd.f32 %v541, %v2636
        %v2638 = vpop.f32.mrb[0].mxu0
        %2639 = vmatprep.mubr.bf16.mxu0 %v1484
        %2640 = vmatmul.mubr.bf16.gmra.mrb[0].mxu0 %v1483
        %v2641 = vpop.f32.mrb[0].mxu0
        %v2642 = vadd.f32 %v541, %v2641
        %v2643 = vpop.f32.mrb[0].mxu0
        %v2644 = vpop.f32.mrb[0].mxu0
        %v2645 = vadd.f32 %v541, %v2644
        %v2646 = vpop.f32.mrb[0].mxu0
        %2647 = vmatprep.mubr.bf16.mxu0 %v1486
        %2648 = vmatmul.mubr.bf16.gmra.mrb[0].mxu0 %v1485
        %v2649 = vpop.f32.mrb[0].mxu0
        %v2650 = vadd.f32 %v541, %v2649
        %v2651 = vpop.f32.mrb[0].mxu0
        %v2652 = vpop.f32.mrb[0].mxu0
        %v2653 = vadd.f32 %v541, %v2652
        %v2654 = vpop.f32.mrb[0].mxu0
        %2655 = vmatprep.mubr.bf16.mxu0 %v1488
        %2656 = vmatmul.mubr.bf16.gmra.mrb[0].mxu0 %v1487
        %v2657 = vpop.f32.mrb[0].mxu0
        %v2658 = vadd.f32 %v541, %v2657
        %v2659 = vpop.f32.mrb[0].mxu0
        %v2660 = vpop.f32.mrb[0].mxu0
        %v2661 = vadd.f32 %v541, %v2660
        %v2662 = vpop.f32.mrb[0].mxu0
        %2663 = vmatprep.mubr.bf16.mxu0 %v1490
        %2664 = vmatmul.mubr.bf16.gmra.mrb[0].mxu0 %v1489
        %v2665 = vpop.f32.mrb[0].mxu0
        %v2666 = vadd.f32 %v541, %v2665
        %v2667 = vpop.f32.mrb[0].mxu0
        %v2668 = vpop.f32.mrb[0].mxu0
        %v2669 = vadd.f32 %v541, %v2668
        %v2670 = vpop.f32.mrb[0].mxu0
        %2671 = vmatprep.mubr.bf16.mxu0 %v1492
        %2672 = vmatmul.mubr.bf16.gmra.mrb[0].mxu0 %v1491
        %v2673 = vpop.f32.mrb[0].mxu0
        %v2674 = vadd.f32 %v541, %v2673
        %v2675 = vpop.f32.mrb[0].mxu0
        %v2676 = vpop.f32.mrb[0].mxu0
        %v2677 = vadd.f32 %v541, %v2676
        %v2678 = vpop.f32.mrb[0].mxu0
        %2679 = vmatprep.mubr.bf16.mxu0 %v1494
        %2680 = vmatmul.mubr.bf16.gmra.mrb[0].mxu0 %v1493
        %v2681 = vpop.f32.mrb[0].mxu0
        %v2682 = vadd.f32 %v541, %v2681
        %v2683 = vpop.f32.mrb[0].mxu0
        %v2684 = vpop.f32.mrb[0].mxu0
        %v2685 = vadd.f32 %v541, %v2684
        %v2686 = vpop.f32.mrb[0].mxu0
        %2687 = vmatprep.mubr.bf16.mxu0 %v1496
        %2688 = vmatmul.mubr.bf16.gmra.mrb[0].mxu0 %v1495
        %v2689 = vpop.f32.mrb[0].mxu0
        %v2690 = vadd.f32 %v541, %v2689
        %v2691 = vpop.f32.mrb[0].mxu0
        %v2692 = vpop.f32.mrb[0].mxu0
        %v2693 = vadd.f32 %v541, %v2692
        %v2694 = vpop.f32.mrb[0].mxu0
        %2695 = vmatprep.mubr.bf16.mxu0 %v1498
        %2696 = vmatmul.mubr.bf16.gmra.mrb[0].mxu0 %v1497
        %v2697 = vpop.f32.mrb[0].mxu0
        %v2698 = vadd.f32 %v541, %v2697
        %v2699 = vpop.f32.mrb[0].mxu0
        %v2700 = vpop.f32.mrb[0].mxu0
        %v2701 = vadd.f32 %v541, %v2700
        %v2702 = vpop.f32.mrb[0].mxu0
        %2703 = vmatprep.mubr.bf16.mxu0 %v1500
        %2704 = vmatmul.mubr.bf16.gmra.mrb[0].mxu0 %v1499
        %v2705 = vpop.f32.mrb[0].mxu0
        %v2706 = vadd.f32 %v541, %v2705
        %v2707 = vpop.f32.mrb[0].mxu0
        %v2708 = vpop.f32.mrb[0].mxu0
        %v2709 = vadd.f32 %v541, %v2708
        %v2710 = vpop.f32.mrb[0].mxu0
        %2711 = vmatprep.mubr.bf16.mxu0 %v1502
        %2712 = vmatmul.mubr.bf16.gmra.mrb[0].mxu0 %v1501
        %v2713 = vpop.f32.mrb[0].mxu0
        %v2714 = vadd.f32 %v541, %v2713
        %v2715 = vpop.f32.mrb[0].mxu0
        %v2716 = vpop.f32.mrb[0].mxu0
        %v2717 = vadd.f32 %v541, %v2716
        %v2718 = vpop.f32.mrb[0].mxu0
        %2719 = vmatprep.mubr.bf16.mxu0 %v1504
        %2720 = vmatmul.mubr.bf16.gmra.mrb[0].mxu0 %v1503
        %v2721 = vpop.f32.mrb[0].mxu0
        %v2722 = vadd.f32 %v541, %v2721
        %v2723 = vpop.f32.mrb[0].mxu0
        %v2724 = vpop.f32.mrb[0].mxu0
        %v2725 = vadd.f32 %v541, %v2724
        %v2726 = vpop.f32.mrb[0].mxu0
        %2727 = vmatprep.mubr.bf16.mxu0 %v1506
        %2728 = vmatmul.mubr.bf16.gmra.mrb[0].mxu0 %v1505
        %v2729 = vpop.f32.mrb[0].mxu0
        %v2730 = vadd.f32 %v541, %v2729
        %v2731 = vpop.f32.mrb[0].mxu0
        %v2732 = vpop.f32.mrb[0].mxu0
        %v2733 = vadd.f32 %v541, %v2732
        %v2734 = vpop.f32.mrb[0].mxu0
        %2735 = vmatprep.mubr.bf16.mxu0 %v1508
        %2736 = vmatmul.mubr.bf16.gmra.mrb[0].mxu0 %v1507
        %v2737 = vpop.f32.mrb[0].mxu0
        %v2738 = vadd.f32 %v541, %v2737
        %v2739 = vpop.f32.mrb[0].mxu0
        %v2740 = vpop.f32.mrb[0].mxu0
        %v2741 = vadd.f32 %v541, %v2740
        %v2742 = vpop.f32.mrb[0].mxu0
        %2743 = vmatprep.mubr.bf16.mxu0 %v1510
        %2744 = vmatmul.mubr.bf16.gmra.mrb[0].mxu0 %v1509
        %v2745 = vpop.f32.mrb[0].mxu0
        %v2746 = vadd.f32 %v541, %v2745
        %v2747 = vpop.f32.mrb[0].mxu0
        %v2748 = vpop.f32.mrb[0].mxu0
        %v2749 = vadd.f32 %v541, %v2748
        %v2750 = vpop.f32.mrb[0].mxu0
        %2751 = vmatprep.mubr.bf16.mxu0 %v1512
        %2752 = vmatmul.mubr.bf16.gmra.mrb[0].mxu0 %v1511
        %v2753 = vpop.f32.mrb[0].mxu0
        %v2754 = vadd.f32 %v541, %v2753
        %v2755 = vpop.f32.mrb[0].mxu0
        %v2756 = vpop.f32.mrb[0].mxu0
        %v2757 = vadd.f32 %v541, %v2756
        %v2758 = vpop.f32.mrb[0].mxu0
        %2759 = vmatprep.mubr.bf16.mxu0 %v1514
        %2760 = vmatmul.mubr.bf16.gmra.mrb[0].mxu0 %v1513
        %v2761 = vpop.f32.mrb[0].mxu0
        %v2762 = vadd.f32 %v541, %v2761
        %v2763 = vpop.f32.mrb[0].mxu0
        %v2764 = vpop.f32.mrb[0].mxu0
        %v2765 = vadd.f32 %v541, %v2764
        %v2766 = vpop.f32.mrb[0].mxu0
        %2767 = vmatprep.mubr.bf16.mxu0 %v1516
        %2768 = vmatmul.mubr.bf16.gmra.mrb[0].mxu0 %v1515
        %v2769 = vpop.f32.mrb[0].mxu0
        %v2770 = vadd.f32 %v541, %v2769
        %v2771 = vpop.f32.mrb[0].mxu0
        %v2772 = vpop.f32.mrb[0].mxu0
        %v2773 = vadd.f32 %v541, %v2772
        %v2774 = vpop.f32.mrb[0].mxu0
        %2775 = vmatprep.mubr.bf16.mxu0 %v1518
        %2776 = vmatmul.mubr.bf16.gmra.mrb[0].mxu0 %v1517
        %v2777 = vpop.f32.mrb[0].mxu0
        %v2778 = vadd.f32 %v541, %v2777
        %v2779 = vpop.f32.mrb[0].mxu0
        %v2780 = vpop.f32.mrb[0].mxu0
        %v2781 = vadd.f32 %v541, %v2780
        %v2782 = vpop.f32.mrb[0].mxu0
        %2783 = vmatprep.mubr.bf16.mxu0 %v1520
        %2784 = vmatmul.mubr.bf16.gmra.mrb[0].mxu0 %v1519
        %v2785 = vpop.f32.mrb[0].mxu0
        %v2786 = vadd.f32 %v541, %v2785
        %v2787 = vpop.f32.mrb[0].mxu0
        %v2788 = vpop.f32.mrb[0].mxu0
        %v2789 = vadd.f32 %v541, %v2788
        %v2790 = vpop.f32.mrb[0].mxu0
        %2791 = vmatprep.mubr.bf16.mxu0 %v1522
        %2792 = vmatmul.mubr.bf16.gmra.mrb[0].mxu0 %v1521
        %v2793 = vpop.f32.mrb[0].mxu0
        %v2794 = vadd.f32 %v541, %v2793
        %v2795 = vpop.f32.mrb[0].mxu0
        %v2796 = vpop.f32.mrb[0].mxu0
        %v2797 = vadd.f32 %v541, %v2796
        %v2798 = vpop.f32.mrb[0].mxu0
        %2799 = vmatprep.mubr.bf16.mxu0 %v1524
        %2800 = vmatmul.mubr.bf16.gmra.mrb[0].mxu0 %v1523
        %v2801 = vpop.f32.mrb[0].mxu0
        %v2802 = vadd.f32 %v541, %v2801
        %v2803 = vpop.f32.mrb[0].mxu0
        %v2804 = vpop.f32.mrb[0].mxu0
        %v2805 = vadd.f32 %v541, %v2804
        %v2806 = vpop.f32.mrb[0].mxu0
        %2807 = vmatprep.mubr.bf16.mxu0 %v1526
        %2808 = vmatmul.mubr.bf16.gmra.mrb[0].mxu0 %v1525
        %v2809 = vpop.f32.mrb[0].mxu0
        %v2810 = vadd.f32 %v541, %v2809
        %v2811 = vpop.f32.mrb[0].mxu0
        %v2812 = vpop.f32.mrb[0].mxu0
        %v2813 = vadd.f32 %v541, %v2812
        %v2814 = vpop.f32.mrb[0].mxu0
        %2815 = vmatprep.mubr.bf16.mxu0 %v1528
        %2816 = vmatmul.mubr.bf16.gmra.mrb[0].mxu0 %v1527
        %v2817 = vpop.f32.mrb[0].mxu0
        %v2818 = vadd.f32 %v541, %v2817
        %v2819 = vpop.f32.mrb[0].mxu0
        %v2820 = vpop.f32.mrb[0].mxu0
        %v2821 = vadd.f32 %v541, %v2820
        %v2822 = vpop.f32.mrb[0].mxu0
        %2823 = vmatprep.mubr.bf16.mxu0 %v1530
        %2824 = vmatmul.mubr.bf16.gmra.mrb[0].mxu0 %v1529
        %v2825 = vpop.f32.mrb[0].mxu0
        %v2826 = vadd.f32 %v541, %v2825
        %v2827 = vpop.f32.mrb[0].mxu0
        %v2828 = vpop.f32.mrb[0].mxu0
        %v2829 = vadd.f32 %v541, %v2828
        %v2830 = vpop.f32.mrb[0].mxu0
        %2831 = vmatprep.mubr.bf16.mxu0 %v1532
        %2832 = vmatmul.mubr.bf16.gmra.mrb[0].mxu0 %v1531
        %v2833 = vpop.f32.mrb[0].mxu0
        %v2834 = vadd.f32 %v541, %v2833
        %v2835 = vpop.f32.mrb[0].mxu0
        %v2836 = vpop.f32.mrb[0].mxu0
        %v2837 = vadd.f32 %v541, %v2836
        %v2838 = vpop.f32.mrb[0].mxu0
        %2839 = vmatprep.mubr.bf16.mxu0 %v1534
        %2840 = vmatmul.mubr.bf16.gmra.mrb[0].mxu0 %v1533
        %v2841 = vpop.f32.mrb[0].mxu0
        %v2842 = vadd.f32 %v541, %v2841
        %v2843 = vpop.f32.mrb[0].mxu0
        %v2844 = vpop.f32.mrb[0].mxu0
        %v2845 = vadd.f32 %v541, %v2844
        %v2846 = vpop.f32.mrb[0].mxu0
        %2847 = vmatprep.mubr.bf16.mxu0 %v1536
        %2848 = vmatmul.mubr.bf16.gmra.mrb[0].mxu0 %v1535
        %v2849 = vpop.f32.mrb[0].mxu0
        %v2850 = vadd.f32 %v541, %v2849
        %v2851 = vpop.f32.mrb[0].mxu0
        %v2852 = vpop.f32.mrb[0].mxu0
        %v2853 = vadd.f32 %v541, %v2852
        %v2854 = vpop.f32.mrb[0].mxu0
        %2855 = vmatprep.mubr.bf16.mxu0 %v1538
        %2856 = vmatmul.mubr.bf16.gmra.mrb[0].mxu0 %v1537
        %v2857 = vpop.f32.mrb[0].mxu0
        %v2858 = vadd.f32 %v541, %v2857
        %v2859 = vpop.f32.mrb[0].mxu0
        %v2860 = vpop.f32.mrb[0].mxu0
        %v2861 = vadd.f32 %v541, %v2860
        %v2862 = vpop.f32.mrb[0].mxu0
        %2863 = vmatprep.mubr.bf16.mxu0 %v1540
        %2864 = vmatmul.mubr.bf16.gmra.mrb[0].mxu0 %v1539
        %v2865 = vpop.f32.mrb[0].mxu0
        %v2866 = vadd.f32 %v541, %v2865
        %v2867 = vpop.f32.mrb[0].mxu0
        %v2868 = vpop.f32.mrb[0].mxu0
        %v2869 = vadd.f32 %v541, %v2868
        %v2870 = vpop.f32.mrb[0].mxu0
        %2871 = vmatprep.mubr.bf16.mxu0 %v1542
        %2872 = vmatmul.mubr.bf16.gmra.mrb[0].mxu0 %v1541
        %v2873 = vpop.f32.mrb[0].mxu0
        %v2874 = vadd.f32 %v541, %v2873
        %v2875 = vpop.f32.mrb[0].mxu0
        %v2876 = vpop.f32.mrb[0].mxu0
        %v2877 = vadd.f32 %v541, %v2876
        %v2878 = vpop.f32.mrb[0].mxu0
        %2879 = vmatprep.mubr.bf16.mxu0 %v1544
        %2880 = vmatmul.mubr.bf16.gmra.mrb[0].mxu0 %v1543
        %v2881 = vpop.f32.mrb[0].mxu0
        %v2882 = vadd.f32 %v541, %v2881
        %v2883 = vpop.f32.mrb[0].mxu0
        %v2884 = vpop.f32.mrb[0].mxu0
        %v2885 = vadd.f32 %v541, %v2884
        %v2886 = vpop.f32.mrb[0].mxu0
        %2887 = vmatprep.mubr.bf16.mxu0 %v1546
        %2888 = vmatmul.mubr.bf16.gmra.mrb[0].mxu0 %v1545
        %v2889 = vpop.f32.mrb[0].mxu0
        %v2890 = vadd.f32 %v541, %v2889
        %v2891 = vpop.f32.mrb[0].mxu0
        %v2892 = vpop.f32.mrb[0].mxu0
        %v2893 = vadd.f32 %v541, %v2892
        %v2894 = vpop.f32.mrb[0].mxu0
        %2895 = vmatprep.mubr.bf16.mxu0 %v1548
        %2896 = vmatmul.mubr.bf16.gmra.mrb[0].mxu0 %v1547
        %v2897 = vpop.f32.mrb[0].mxu0
        %v2898 = vadd.f32 %v541, %v2897
        %v2899 = vpop.f32.mrb[0].mxu0
        %v2900 = vpop.f32.mrb[0].mxu0
        %v2901 = vadd.f32 %v541, %v2900
        %v2902 = vpop.f32.mrb[0].mxu0
        %2903 = vmatprep.mubr.bf16.mxu0 %v1550
        %2904 = vmatmul.mubr.bf16.gmra.mrb[0].mxu0 %v1549
        %v2905 = vpop.f32.mrb[0].mxu0
        %v2906 = vadd.f32 %v541, %v2905
        %v2907 = vpop.f32.mrb[0].mxu0
        %v2908 = vpop.f32.mrb[0].mxu0
        %v2909 = vadd.f32 %v541, %v2908
        %v2910 = vpop.f32.mrb[0].mxu0
        %2911 = vmatprep.mubr.bf16.mxu0 %v1552
        %2912 = vmatmul.mubr.bf16.gmra.mrb[0].mxu0 %v1551
        %v2913 = vpop.f32.mrb[0].mxu0
        %v2914 = vadd.f32 %v541, %v2913
        %v2915 = vpop.f32.mrb[0].mxu0
        %v2916 = vpop.f32.mrb[0].mxu0
        %v2917 = vadd.f32 %v541, %v2916
        %v2918 = vpop.f32.mrb[0].mxu0
        %2919 = vmatprep.mubr.bf16.mxu0 %v1554
        %2920 = vmatmul.mubr.bf16.gmra.mrb[0].mxu0 %v1553
        %v2921 = vpop.f32.mrb[0].mxu0
        %v2922 = vadd.f32 %v541, %v2921
        %v2923 = vpop.f32.mrb[0].mxu0
        %v2924 = vpop.f32.mrb[0].mxu0
        %v2925 = vadd.f32 %v541, %v2924
        %v2926 = vpop.f32.mrb[0].mxu0
        %2927 = vmatprep.mubr.bf16.mxu0 %v1556
        %2928 = vmatmul.mubr.bf16.gmra.mrb[0].mxu0 %v1555
        %v2929 = vpop.f32.mrb[0].mxu0
        %v2930 = vadd.f32 %v541, %v2929
        %v2931 = vpop.f32.mrb[0].mxu0
        %v2932 = vpop.f32.mrb[0].mxu0
        %v2933 = vadd.f32 %v541, %v2932
        %v2934 = vpop.f32.mrb[0].mxu0
        %2935 = vmatprep.mubr.bf16.mxu0 %v1558
        %2936 = vmatmul.mubr.bf16.gmra.mrb[0].mxu0 %v1557
        %v2937 = vpop.f32.mrb[0].mxu0
        %v2938 = vadd.f32 %v541, %v2937
        %v2939 = vpop.f32.mrb[0].mxu0
        %v2940 = vpop.f32.mrb[0].mxu0
        %v2941 = vadd.f32 %v541, %v2940
        %v2942 = vpop.f32.mrb[0].mxu0
        %2943 = vmatprep.mubr.bf16.mxu0 %v1560
        %2944 = vmatmul.mubr.bf16.gmra.mrb[0].mxu0 %v1559
        %v2945 = vpop.f32.mrb[0].mxu0
        %v2946 = vadd.f32 %v541, %v2945
        %v2947 = vpop.f32.mrb[0].mxu0
        %v2948 = vpop.f32.mrb[0].mxu0
        %v2949 = vadd.f32 %v541, %v2948
        %v2950 = vpop.f32.mrb[0].mxu0
        %2951 = vmatprep.mubr.bf16.mxu0 %v1562
        %2952 = vmatmul.mubr.bf16.gmra.mrb[0].mxu0 %v1561
        %v2953 = vpop.f32.mrb[0].mxu0
        %v2954 = vadd.f32 %v541, %v2953
        %v2955 = vpop.f32.mrb[0].mxu0
        %v2956 = vpop.f32.mrb[0].mxu0
        %v2957 = vadd.f32 %v541, %v2956
        %v2958 = vpop.f32.mrb[0].mxu0
        %2959 = vmatprep.mubr.bf16.mxu0 %v1564
        %2960 = vmatmul.mubr.bf16.gmra.mrb[0].mxu0 %v1563
        %v2961 = vpop.f32.mrb[0].mxu0
        %v2962 = vadd.f32 %v541, %v2961
        %v2963 = vpop.f32.mrb[0].mxu0
        %v2964 = vpop.f32.mrb[0].mxu0
        %v2965 = vadd.f32 %v541, %v2964
        %v2966 = vpop.f32.mrb[0].mxu0
        %2967 = vmatprep.mubr.bf16.mxu0 %v1566
        %2968 = vmatmul.mubr.bf16.gmra.mrb[0].mxu0 %v1565
        %v2969 = vpop.f32.mrb[0].mxu0
        %v2970 = vadd.f32 %v541, %v2969
        %v2971 = vpop.f32.mrb[0].mxu0
        %v2972 = vpop.f32.mrb[0].mxu0
        %v2973 = vadd.f32 %v541, %v2972
        %v2974 = vpop.f32.mrb[0].mxu0
        %2975 = vdwg.mxu0
        %v2976 = vmax.f32 %v1954, 0.0
        %v2977 = vmax.f32 %v1957, 0.0
        %v2978 = vmax.f32 %v1962, 0.0
        %v2979 = vmax.f32 %v1965, 0.0
        %v2980 = vmax.f32 %v1970, 0.0
        %v2981 = vmax.f32 %v1973, 0.0
        %v2982 = vmax.f32 %v1978, 0.0
        %v2983 = vmax.f32 %v1981, 0.0
        %v2984 = vmax.f32 %v1986, 0.0
        %v2985 = vmax.f32 %v1989, 0.0
        %v2986 = vmax.f32 %v1994, 0.0
        %v2987 = vmax.f32 %v1997, 0.0
        %v2988 = vmax.f32 %v2002, 0.0
        %v2989 = vmax.f32 %v2005, 0.0
        %v2990 = vmax.f32 %v2010, 0.0
        %v2991 = vmax.f32 %v2013, 0.0
        %v2992 = vmax.f32 %v2018, 0.0
        %v2993 = vmax.f32 %v2021, 0.0
        %v2994 = vmax.f32 %v2026, 0.0
        %v2995 = vmax.f32 %v2029, 0.0
        %v2996 = vmax.f32 %v2034, 0.0
        %v2997 = vmax.f32 %v2037, 0.0
        %v2998 = vmax.f32 %v2042, 0.0
        %v2999 = vmax.f32 %v2045, 0.0
        %v3000 = vmax.f32 %v2050, 0.0
        %v3001 = vmax.f32 %v2053, 0.0
        %v3002 = vmax.f32 %v2058, 0.0
        %v3003 = vmax.f32 %v2061, 0.0
        %v3004 = vmax.f32 %v2066, 0.0
        %v3005 = vmax.f32 %v2069, 0.0
        %v3006 = vmax.f32 %v2074, 0.0
        %v3007 = vmax.f32 %v2077, 0.0
        %v3008 = vmax.f32 %v2082, 0.0
        %v3009 = vmax.f32 %v2085, 0.0
        %v3010 = vmax.f32 %v2090, 0.0
        %v3011 = vmax.f32 %v2093, 0.0
        %v3012 = vmax.f32 %v2098, 0.0
        %v3013 = vmax.f32 %v2101, 0.0
        %v3014 = vmax.f32 %v2106, 0.0
        %v3015 = vmax.f32 %v2109, 0.0
        %v3016 = vmax.f32 %v2114, 0.0
        %v3017 = vmax.f32 %v2117, 0.0
        %v3018 = vmax.f32 %v2122, 0.0
        %v3019 = vmax.f32 %v2125, 0.0
        %v3020 = vmax.f32 %v2130, 0.0
        %v3021 = vmax.f32 %v2133, 0.0
        %v3022 = vmax.f32 %v2138, 0.0
        %v3023 = vmax.f32 %v2141, 0.0
        %v3024 = vmax.f32 %v2146, 0.0
        %v3025 = vmax.f32 %v2149, 0.0
        %v3026 = vmax.f32 %v2154, 0.0
        %v3027 = vmax.f32 %v2157, 0.0
        %v3028 = vmax.f32 %v2162, 0.0
        %v3029 = vmax.f32 %v2165, 0.0
        %v3030 = vmax.f32 %v2170, 0.0
        %v3031 = vmax.f32 %v2173, 0.0
        %v3032 = vmax.f32 %v2178, 0.0
        %v3033 = vmax.f32 %v2181, 0.0
        %v3034 = vmax.f32 %v2186, 0.0
        %v3035 = vmax.f32 %v2189, 0.0
        %v3036 = vmax.f32 %v2194, 0.0
        %v3037 = vmax.f32 %v2197, 0.0
        %v3038 = vmax.f32 %v2202, 0.0
        %v3039 = vmax.f32 %v2205, 0.0
        %v3040 = vmax.f32 %v2210, 0.0
        %v3041 = vmax.f32 %v2213, 0.0
        %v3042 = vmax.f32 %v2218, 0.0
        %v3043 = vmax.f32 %v2221, 0.0
        %v3044 = vmax.f32 %v2226, 0.0
        %v3045 = vmax.f32 %v2229, 0.0
        %v3046 = vmax.f32 %v2234, 0.0
        %v3047 = vmax.f32 %v2237, 0.0
        %v3048 = vmax.f32 %v2242, 0.0
        %v3049 = vmax.f32 %v2245, 0.0
        %v3050 = vmax.f32 %v2250, 0.0
        %v3051 = vmax.f32 %v2253, 0.0
        %v3052 = vmax.f32 %v2258, 0.0
        %v3053 = vmax.f32 %v2261, 0.0
        %v3054 = vmax.f32 %v2266, 0.0
        %v3055 = vmax.f32 %v2269, 0.0
        %v3056 = vmax.f32 %v2274, 0.0
        %v3057 = vmax.f32 %v2277, 0.0
        %v3058 = vmax.f32 %v2282, 0.0
        %v3059 = vmax.f32 %v2285, 0.0
        %v3060 = vmax.f32 %v2290, 0.0
        %v3061 = vmax.f32 %v2293, 0.0
        %v3062 = vmax.f32 %v2298, 0.0
        %v3063 = vmax.f32 %v2301, 0.0
        %v3064 = vmax.f32 %v2306, 0.0
        %v3065 = vmax.f32 %v2309, 0.0
        %v3066 = vmax.f32 %v2314, 0.0
        %v3067 = vmax.f32 %v2317, 0.0
        %v3068 = vmax.f32 %v2322, 0.0
        %v3069 = vmax.f32 %v2325, 0.0
        %v3070 = vmax.f32 %v2330, 0.0
        %v3071 = vmax.f32 %v2333, 0.0
        %v3072 = vmax.f32 %v2338, 0.0
        %v3073 = vmax.f32 %v2341, 0.0
        %v3074 = vmax.f32 %v2346, 0.0
        %v3075 = vmax.f32 %v2349, 0.0
        %v3076 = vmax.f32 %v2354, 0.0
        %v3077 = vmax.f32 %v2357, 0.0
        %v3078 = vmax.f32 %v2362, 0.0
        %v3079 = vmax.f32 %v2365, 0.0
        %v3080 = vmax.f32 %v2370, 0.0
        %v3081 = vmax.f32 %v2373, 0.0
        %v3082 = vmax.f32 %v2378, 0.0
        %v3083 = vmax.f32 %v2381, 0.0
        %v3084 = vmax.f32 %v2386, 0.0
        %v3085 = vmax.f32 %v2389, 0.0
        %v3086 = vmax.f32 %v2394, 0.0
        %v3087 = vmax.f32 %v2397, 0.0
        %v3088 = vmax.f32 %v2402, 0.0
        %v3089 = vmax.f32 %v2405, 0.0
        %v3090 = vmax.f32 %v2410, 0.0
        %v3091 = vmax.f32 %v2413, 0.0
        %v3092 = vmax.f32 %v2418, 0.0
        %v3093 = vmax.f32 %v2421, 0.0
        %v3094 = vmax.f32 %v2426, 0.0
        %v3095 = vmax.f32 %v2429, 0.0
        %v3096 = vmax.f32 %v2434, 0.0
        %v3097 = vmax.f32 %v2437, 0.0
        %v3098 = vmax.f32 %v2442, 0.0
        %v3099 = vmax.f32 %v2445, 0.0
        %v3100 = vmax.f32 %v2450, 0.0
        %v3101 = vmax.f32 %v2453, 0.0
        %v3102 = vmax.f32 %v2458, 0.0
        %v3103 = vmax.f32 %v2461, 0.0
        %v3104 = vmax.f32 %v2466, 0.0
        %v3105 = vmax.f32 %v2469, 0.0
        %v3106 = vmax.f32 %v2474, 0.0
        %v3107 = vmax.f32 %v2477, 0.0
        %v3108 = vmax.f32 %v2482, 0.0
        %v3109 = vmax.f32 %v2485, 0.0
        %v3110 = vmax.f32 %v2490, 0.0
        %v3111 = vmax.f32 %v2493, 0.0
        %v3112 = vmax.f32 %v2498, 0.0
        %v3113 = vmax.f32 %v2501, 0.0
        %v3114 = vmax.f32 %v2506, 0.0
        %v3115 = vmax.f32 %v2509, 0.0
        %v3116 = vmax.f32 %v2514, 0.0
        %v3117 = vmax.f32 %v2517, 0.0
        %v3118 = vmax.f32 %v2522, 0.0
        %v3119 = vmax.f32 %v2525, 0.0
        %v3120 = vmax.f32 %v2530, 0.0
        %v3121 = vmax.f32 %v2533, 0.0
        %v3122 = vmax.f32 %v2538, 0.0
        %v3123 = vmax.f32 %v2541, 0.0
        %v3124 = vmax.f32 %v2546, 0.0
        %v3125 = vmax.f32 %v2549, 0.0
        %v3126 = vmax.f32 %v2554, 0.0
        %v3127 = vmax.f32 %v2557, 0.0
        %v3128 = vmax.f32 %v2562, 0.0
        %v3129 = vmax.f32 %v2565, 0.0
        %v3130 = vmax.f32 %v2570, 0.0
        %v3131 = vmax.f32 %v2573, 0.0
        %v3132 = vmax.f32 %v2578, 0.0
        %v3133 = vmax.f32 %v2581, 0.0
        %v3134 = vmax.f32 %v2586, 0.0
        %v3135 = vmax.f32 %v2589, 0.0
        %v3136 = vmax.f32 %v2594, 0.0
        %v3137 = vmax.f32 %v2597, 0.0
        %v3138 = vmax.f32 %v2602, 0.0
        %v3139 = vmax.f32 %v2605, 0.0
        %v3140 = vmax.f32 %v2610, 0.0
        %v3141 = vmax.f32 %v2613, 0.0
        %v3142 = vmax.f32 %v2618, 0.0
        %v3143 = vmax.f32 %v2621, 0.0
        %v3144 = vmax.f32 %v2626, 0.0
        %v3145 = vmax.f32 %v2629, 0.0
        %v3146 = vmax.f32 %v2634, 0.0
        %v3147 = vmax.f32 %v2637, 0.0
        %v3148 = vmax.f32 %v2642, 0.0
        %v3149 = vmax.f32 %v2645, 0.0
        %v3150 = vmax.f32 %v2650, 0.0
        %v3151 = vmax.f32 %v2653, 0.0
        %v3152 = vmax.f32 %v2658, 0.0
        %v3153 = vmax.f32 %v2661, 0.0
        %v3154 = vmax.f32 %v2666, 0.0
        %v3155 = vmax.f32 %v2669, 0.0
        %v3156 = vmax.f32 %v2674, 0.0
        %v3157 = vmax.f32 %v2677, 0.0
        %v3158 = vmax.f32 %v2682, 0.0
        %v3159 = vmax.f32 %v2685, 0.0
        %v3160 = vmax.f32 %v2690, 0.0
        %v3161 = vmax.f32 %v2693, 0.0
        %v3162 = vmax.f32 %v2698, 0.0
        %v3163 = vmax.f32 %v2701, 0.0
        %v3164 = vmax.f32 %v2706, 0.0
        %v3165 = vmax.f32 %v2709, 0.0
        %v3166 = vmax.f32 %v2714, 0.0
        %v3167 = vmax.f32 %v2717, 0.0
        %v3168 = vmax.f32 %v2722, 0.0
        %v3169 = vmax.f32 %v2725, 0.0
        %v3170 = vmax.f32 %v2730, 0.0
        %v3171 = vmax.f32 %v2733, 0.0
        %v3172 = vmax.f32 %v2738, 0.0
        %v3173 = vmax.f32 %v2741, 0.0
        %v3174 = vmax.f32 %v2746, 0.0
        %v3175 = vmax.f32 %v2749, 0.0
        %v3176 = vmax.f32 %v2754, 0.0
        %v3177 = vmax.f32 %v2757, 0.0
        %v3178 = vmax.f32 %v2762, 0.0
        %v3179 = vmax.f32 %v2765, 0.0
        %v3180 = vmax.f32 %v2770, 0.0
        %v3181 = vmax.f32 %v2773, 0.0
        %v3182 = vmax.f32 %v2778, 0.0
        %v3183 = vmax.f32 %v2781, 0.0
        %v3184 = vmax.f32 %v2786, 0.0
        %v3185 = vmax.f32 %v2789, 0.0
        %v3186 = vmax.f32 %v2794, 0.0
        %v3187 = vmax.f32 %v2797, 0.0
        %v3188 = vmax.f32 %v2802, 0.0
        %v3189 = vmax.f32 %v2805, 0.0
        %v3190 = vmax.f32 %v2810, 0.0
        %v3191 = vmax.f32 %v2813, 0.0
        %v3192 = vmax.f32 %v2818, 0.0
        %v3193 = vmax.f32 %v2821, 0.0
        %v3194 = vmax.f32 %v2826, 0.0
        %v3195 = vmax.f32 %v2829, 0.0
        %v3196 = vmax.f32 %v2834, 0.0
        %v3197 = vmax.f32 %v2837, 0.0
        %v3198 = vmax.f32 %v2842, 0.0
        %v3199 = vmax.f32 %v2845, 0.0
        %v3200 = vmax.f32 %v2850, 0.0
        %v3201 = vmax.f32 %v2853, 0.0
        %v3202 = vmax.f32 %v2858, 0.0
        %v3203 = vmax.f32 %v2861, 0.0
        %v3204 = vmax.f32 %v2866, 0.0
        %v3205 = vmax.f32 %v2869, 0.0
        %v3206 = vmax.f32 %v2874, 0.0
        %v3207 = vmax.f32 %v2877, 0.0
        %v3208 = vmax.f32 %v2882, 0.0
        %v3209 = vmax.f32 %v2885, 0.0
        %v3210 = vmax.f32 %v2890, 0.0
        %v3211 = vmax.f32 %v2893, 0.0
        %v3212 = vmax.f32 %v2898, 0.0
        %v3213 = vmax.f32 %v2901, 0.0
        %v3214 = vmax.f32 %v2906, 0.0
        %v3215 = vmax.f32 %v2909, 0.0
        %v3216 = vmax.f32 %v2914, 0.0
        %v3217 = vmax.f32 %v2917, 0.0
        %v3218 = vmax.f32 %v2922, 0.0
        %v3219 = vmax.f32 %v2925, 0.0
        %v3220 = vmax.f32 %v2930, 0.0
        %v3221 = vmax.f32 %v2933, 0.0
        %v3222 = vmax.f32 %v2938, 0.0
        %v3223 = vmax.f32 %v2941, 0.0
        %v3224 = vmax.f32 %v2946, 0.0
        %v3225 = vmax.f32 %v2949, 0.0
        %v3226 = vmax.f32 %v2954, 0.0
        %v3227 = vmax.f32 %v2957, 0.0
        %v3228 = vmax.f32 %v2962, 0.0
        %v3229 = vmax.f32 %v2965, 0.0
        %v3230 = vmax.f32 %v2970, 0.0
        %v3231 = vmax.f32 %v2973, 0.0
        %v3232 = vpack.c.bf16 %v2977, %v2976
        %v3233 = vpack.c.bf16 %v2979, %v2978
        %v3234 = vpack.c.bf16 %v2981, %v2980
        %v3235 = vpack.c.bf16 %v2983, %v2982
        %v3236 = vpack.c.bf16 %v2985, %v2984
        %v3237 = vpack.c.bf16 %v2987, %v2986
        %v3238 = vpack.c.bf16 %v2989, %v2988
        %v3239 = vpack.c.bf16 %v2991, %v2990
        %v3240 = vpack.c.bf16 %v2993, %v2992
        %v3241 = vpack.c.bf16 %v2995, %v2994
        %v3242 = vpack.c.bf16 %v2997, %v2996
        %v3243 = vpack.c.bf16 %v2999, %v2998
        %v3244 = vpack.c.bf16 %v3001, %v3000
        %v3245 = vpack.c.bf16 %v3003, %v3002
        %v3246 = vpack.c.bf16 %v3005, %v3004
        %v3247 = vpack.c.bf16 %v3007, %v3006
        %v3248 = vpack.c.bf16 %v3009, %v3008
        %v3249 = vpack.c.bf16 %v3011, %v3010
        %v3250 = vpack.c.bf16 %v3013, %v3012
        %v3251 = vpack.c.bf16 %v3015, %v3014
        %v3252 = vpack.c.bf16 %v3017, %v3016
        %v3253 = vpack.c.bf16 %v3019, %v3018
        %v3254 = vpack.c.bf16 %v3021, %v3020
        %v3255 = vpack.c.bf16 %v3023, %v3022
        %v3256 = vpack.c.bf16 %v3025, %v3024
        %v3257 = vpack.c.bf16 %v3027, %v3026
        %v3258 = vpack.c.bf16 %v3029, %v3028
        %v3259 = vpack.c.bf16 %v3031, %v3030
        %v3260 = vpack.c.bf16 %v3033, %v3032
        %v3261 = vpack.c.bf16 %v3035, %v3034
        %v3262 = vpack.c.bf16 %v3037, %v3036
        %v3263 = vpack.c.bf16 %v3039, %v3038
        %v3264 = vpack.c.bf16 %v3041, %v3040
        %v3265 = vpack.c.bf16 %v3043, %v3042
        %v3266 = vpack.c.bf16 %v3045, %v3044
        %v3267 = vpack.c.bf16 %v3047, %v3046
        %v3268 = vpack.c.bf16 %v3049, %v3048
        %v3269 = vpack.c.bf16 %v3051, %v3050
        %v3270 = vpack.c.bf16 %v3053, %v3052
        %v3271 = vpack.c.bf16 %v3055, %v3054
        %v3272 = vpack.c.bf16 %v3057, %v3056
        %v3273 = vpack.c.bf16 %v3059, %v3058
        %v3274 = vpack.c.bf16 %v3061, %v3060
        %v3275 = vpack.c.bf16 %v3063, %v3062
        %v3276 = vpack.c.bf16 %v3065, %v3064
        %v3277 = vpack.c.bf16 %v3067, %v3066
        %v3278 = vpack.c.bf16 %v3069, %v3068
        %v3279 = vpack.c.bf16 %v3071, %v3070
        %v3280 = vpack.c.bf16 %v3073, %v3072
        %v3281 = vpack.c.bf16 %v3075, %v3074
        %v3282 = vpack.c.bf16 %v3077, %v3076
        %v3283 = vpack.c.bf16 %v3079, %v3078
        %v3284 = vpack.c.bf16 %v3081, %v3080
        %v3285 = vpack.c.bf16 %v3083, %v3082
        %v3286 = vpack.c.bf16 %v3085, %v3084
        %v3287 = vpack.c.bf16 %v3087, %v3086
        %v3288 = vpack.c.bf16 %v3089, %v3088
        %v3289 = vpack.c.bf16 %v3091, %v3090
        %v3290 = vpack.c.bf16 %v3093, %v3092
        %v3291 = vpack.c.bf16 %v3095, %v3094
        %v3292 = vpack.c.bf16 %v3097, %v3096
        %v3293 = vpack.c.bf16 %v3099, %v3098
        %v3294 = vpack.c.bf16 %v3101, %v3100
        %v3295 = vpack.c.bf16 %v3103, %v3102
        %v3296 = vpack.c.bf16 %v3105, %v3104
        %v3297 = vpack.c.bf16 %v3107, %v3106
        %v3298 = vpack.c.bf16 %v3109, %v3108
        %v3299 = vpack.c.bf16 %v3111, %v3110
        %v3300 = vpack.c.bf16 %v3113, %v3112
        %v3301 = vpack.c.bf16 %v3115, %v3114
        %v3302 = vpack.c.bf16 %v3117, %v3116
        %v3303 = vpack.c.bf16 %v3119, %v3118
        %v3304 = vpack.c.bf16 %v3121, %v3120
        %v3305 = vpack.c.bf16 %v3123, %v3122
        %v3306 = vpack.c.bf16 %v3125, %v3124
        %v3307 = vpack.c.bf16 %v3127, %v3126
        %v3308 = vpack.c.bf16 %v3129, %v3128
        %v3309 = vpack.c.bf16 %v3131, %v3130
        %v3310 = vpack.c.bf16 %v3133, %v3132
        %v3311 = vpack.c.bf16 %v3135, %v3134
        %v3312 = vpack.c.bf16 %v3137, %v3136
        %v3313 = vpack.c.bf16 %v3139, %v3138
        %v3314 = vpack.c.bf16 %v3141, %v3140
        %v3315 = vpack.c.bf16 %v3143, %v3142
        %v3316 = vpack.c.bf16 %v3145, %v3144
        %v3317 = vpack.c.bf16 %v3147, %v3146
        %v3318 = vpack.c.bf16 %v3149, %v3148
        %v3319 = vpack.c.bf16 %v3151, %v3150
        %v3320 = vpack.c.bf16 %v3153, %v3152
        %v3321 = vpack.c.bf16 %v3155, %v3154
        %v3322 = vpack.c.bf16 %v3157, %v3156
        %v3323 = vpack.c.bf16 %v3159, %v3158
        %v3324 = vpack.c.bf16 %v3161, %v3160
        %v3325 = vpack.c.bf16 %v3163, %v3162
        %v3326 = vpack.c.bf16 %v3165, %v3164
        %v3327 = vpack.c.bf16 %v3167, %v3166
        %v3328 = vpack.c.bf16 %v3169, %v3168
        %v3329 = vpack.c.bf16 %v3171, %v3170
        %v3330 = vpack.c.bf16 %v3173, %v3172
        %v3331 = vpack.c.bf16 %v3175, %v3174
        %v3332 = vpack.c.bf16 %v3177, %v3176
        %v3333 = vpack.c.bf16 %v3179, %v3178
        %v3334 = vpack.c.bf16 %v3181, %v3180
        %v3335 = vpack.c.bf16 %v3183, %v3182
        %v3336 = vpack.c.bf16 %v3185, %v3184
        %v3337 = vpack.c.bf16 %v3187, %v3186
        %v3338 = vpack.c.bf16 %v3189, %v3188
        %v3339 = vpack.c.bf16 %v3191, %v3190
        %v3340 = vpack.c.bf16 %v3193, %v3192
        %v3341 = vpack.c.bf16 %v3195, %v3194
        %v3342 = vpack.c.bf16 %v3197, %v3196
        %v3343 = vpack.c.bf16 %v3199, %v3198
        %v3344 = vpack.c.bf16 %v3201, %v3200
        %v3345 = vpack.c.bf16 %v3203, %v3202
        %v3346 = vpack.c.bf16 %v3205, %v3204
        %v3347 = vpack.c.bf16 %v3207, %v3206
        %v3348 = vpack.c.bf16 %v3209, %v3208
        %v3349 = vpack.c.bf16 %v3211, %v3210
        %v3350 = vpack.c.bf16 %v3213, %v3212
        %v3351 = vpack.c.bf16 %v3215, %v3214
        %v3352 = vpack.c.bf16 %v3217, %v3216
        %v3353 = vpack.c.bf16 %v3219, %v3218
        %v3354 = vpack.c.bf16 %v3221, %v3220
        %v3355 = vpack.c.bf16 %v3223, %v3222
        %v3356 = vpack.c.bf16 %v3225, %v3224
        %v3357 = vpack.c.bf16 %v3227, %v3226
        %v3358 = vpack.c.bf16 %v3229, %v3228
        %v3359 = vpack.c.bf16 %v3231, %v3230
        %v3488 = vunpack.c.l.b16 %v3232
        %v3489 = vunpack.c.h.b16 %v3232
        %v3490 = vunpack.c.l.b16 %v3233
        %v3491 = vunpack.c.h.b16 %v3233
        %v3492 = vunpack.c.l.b16 %v3234
        %v3493 = vunpack.c.h.b16 %v3234
        %v3494 = vunpack.c.l.b16 %v3235
        %v3495 = vunpack.c.h.b16 %v3235
        %v3496 = vunpack.c.l.b16 %v3236
        %v3497 = vunpack.c.h.b16 %v3236
        %v3498 = vunpack.c.l.b16 %v3237
        %v3499 = vunpack.c.h.b16 %v3237
        %v3500 = vunpack.c.l.b16 %v3238
        %v3501 = vunpack.c.h.b16 %v3238
        %v3502 = vunpack.c.l.b16 %v3239
        %v3503 = vunpack.c.h.b16 %v3239
        %v3504 = vunpack.c.l.b16 %v3240
        %v3505 = vunpack.c.h.b16 %v3240
        %v3506 = vunpack.c.l.b16 %v3241
        %v3507 = vunpack.c.h.b16 %v3241
        %v3508 = vunpack.c.l.b16 %v3242
        %v3509 = vunpack.c.h.b16 %v3242
        %v3510 = vunpack.c.l.b16 %v3243
        %v3511 = vunpack.c.h.b16 %v3243
        %v3512 = vunpack.c.l.b16 %v3244
        %v3513 = vunpack.c.h.b16 %v3244
        %v3514 = vunpack.c.l.b16 %v3245
        %v3515 = vunpack.c.h.b16 %v3245
        %v3516 = vunpack.c.l.b16 %v3246
        %v3517 = vunpack.c.h.b16 %v3246
        %v3518 = vunpack.c.l.b16 %v3247
        %v3519 = vunpack.c.h.b16 %v3247
        %v3520 = vunpack.c.l.b16 %v3248
        %v3521 = vunpack.c.h.b16 %v3248
        %v3522 = vunpack.c.l.b16 %v3249
        %v3523 = vunpack.c.h.b16 %v3249
        %v3524 = vunpack.c.l.b16 %v3250
        %v3525 = vunpack.c.h.b16 %v3250
        %v3526 = vunpack.c.l.b16 %v3251
        %v3527 = vunpack.c.h.b16 %v3251
        %v3528 = vunpack.c.l.b16 %v3252
        %v3529 = vunpack.c.h.b16 %v3252
        %v3530 = vunpack.c.l.b16 %v3253
        %v3531 = vunpack.c.h.b16 %v3253
        %v3532 = vunpack.c.l.b16 %v3254
        %v3533 = vunpack.c.h.b16 %v3254
        %v3534 = vunpack.c.l.b16 %v3255
        %v3535 = vunpack.c.h.b16 %v3255
        %v3536 = vunpack.c.l.b16 %v3256
        %v3537 = vunpack.c.h.b16 %v3256
        %v3538 = vunpack.c.l.b16 %v3257
        %v3539 = vunpack.c.h.b16 %v3257
        %v3540 = vunpack.c.l.b16 %v3258
        %v3541 = vunpack.c.h.b16 %v3258
        %v3542 = vunpack.c.l.b16 %v3259
        %v3543 = vunpack.c.h.b16 %v3259
        %v3544 = vunpack.c.l.b16 %v3260
        %v3545 = vunpack.c.h.b16 %v3260
        %v3546 = vunpack.c.l.b16 %v3261
        %v3547 = vunpack.c.h.b16 %v3261
        %v3548 = vunpack.c.l.b16 %v3262
        %v3549 = vunpack.c.h.b16 %v3262
        %v3550 = vunpack.c.l.b16 %v3263
        %v3551 = vunpack.c.h.b16 %v3263
        %v3552 = vunpack.c.l.b16 %v3264
        %v3553 = vunpack.c.h.b16 %v3264
        %v3554 = vunpack.c.l.b16 %v3265
        %v3555 = vunpack.c.h.b16 %v3265
        %v3556 = vunpack.c.l.b16 %v3266
        %v3557 = vunpack.c.h.b16 %v3266
        %v3558 = vunpack.c.l.b16 %v3267
        %v3559 = vunpack.c.h.b16 %v3267
        %v3560 = vunpack.c.l.b16 %v3268
        %v3561 = vunpack.c.h.b16 %v3268
        %v3562 = vunpack.c.l.b16 %v3269
        %v3563 = vunpack.c.h.b16 %v3269
        %v3564 = vunpack.c.l.b16 %v3270
        %v3565 = vunpack.c.h.b16 %v3270
        %v3566 = vunpack.c.l.b16 %v3271
        %v3567 = vunpack.c.h.b16 %v3271
        %v3568 = vunpack.c.l.b16 %v3272
        %v3569 = vunpack.c.h.b16 %v3272
        %v3570 = vunpack.c.l.b16 %v3273
        %v3571 = vunpack.c.h.b16 %v3273
        %v3572 = vunpack.c.l.b16 %v3274
        %v3573 = vunpack.c.h.b16 %v3274
        %v3574 = vunpack.c.l.b16 %v3275
        %v3575 = vunpack.c.h.b16 %v3275
        %v3576 = vunpack.c.l.b16 %v3276
        %v3577 = vunpack.c.h.b16 %v3276
        %v3578 = vunpack.c.l.b16 %v3277
        %v3579 = vunpack.c.h.b16 %v3277
        %v3580 = vunpack.c.l.b16 %v3278
        %v3581 = vunpack.c.h.b16 %v3278
        %v3582 = vunpack.c.l.b16 %v3279
        %v3583 = vunpack.c.h.b16 %v3279
        %v3584 = vunpack.c.l.b16 %v3280
        %v3585 = vunpack.c.h.b16 %v3280
        %v3586 = vunpack.c.l.b16 %v3281
        %v3587 = vunpack.c.h.b16 %v3281
        %v3588 = vunpack.c.l.b16 %v3282
        %v3589 = vunpack.c.h.b16 %v3282
        %v3590 = vunpack.c.l.b16 %v3283
        %v3591 = vunpack.c.h.b16 %v3283
        %v3592 = vunpack.c.l.b16 %v3284
        %v3593 = vunpack.c.h.b16 %v3284
        %v3594 = vunpack.c.l.b16 %v3285
        %v3595 = vunpack.c.h.b16 %v3285
        %v3596 = vunpack.c.l.b16 %v3286
        %v3597 = vunpack.c.h.b16 %v3286
        %v3598 = vunpack.c.l.b16 %v3287
        %v3599 = vunpack.c.h.b16 %v3287
        %v3600 = vunpack.c.l.b16 %v3288
        %v3601 = vunpack.c.h.b16 %v3288
        %v3602 = vunpack.c.l.b16 %v3289
        %v3603 = vunpack.c.h.b16 %v3289
        %v3604 = vunpack.c.l.b16 %v3290
        %v3605 = vunpack.c.h.b16 %v3290
        %v3606 = vunpack.c.l.b16 %v3291
        %v3607 = vunpack.c.h.b16 %v3291
        %v3608 = vunpack.c.l.b16 %v3292
        %v3609 = vunpack.c.h.b16 %v3292
        %v3610 = vunpack.c.l.b16 %v3293
        %v3611 = vunpack.c.h.b16 %v3293
        %v3612 = vunpack.c.l.b16 %v3294
        %v3613 = vunpack.c.h.b16 %v3294
        %v3614 = vunpack.c.l.b16 %v3295
        %v3615 = vunpack.c.h.b16 %v3295
        %v3616 = vunpack.c.l.b16 %v3296
        %v3617 = vunpack.c.h.b16 %v3296
        %v3618 = vunpack.c.l.b16 %v3297
        %v3619 = vunpack.c.h.b16 %v3297
        %v3620 = vunpack.c.l.b16 %v3298
        %v3621 = vunpack.c.h.b16 %v3298
        %v3622 = vunpack.c.l.b16 %v3299
        %v3623 = vunpack.c.h.b16 %v3299
        %v3624 = vunpack.c.l.b16 %v3300
        %v3625 = vunpack.c.h.b16 %v3300
        %v3626 = vunpack.c.l.b16 %v3301
        %v3627 = vunpack.c.h.b16 %v3301
        %v3628 = vunpack.c.l.b16 %v3302
        %v3629 = vunpack.c.h.b16 %v3302
        %v3630 = vunpack.c.l.b16 %v3303
        %v3631 = vunpack.c.h.b16 %v3303
        %v3632 = vunpack.c.l.b16 %v3304
        %v3633 = vunpack.c.h.b16 %v3304
        %v3634 = vunpack.c.l.b16 %v3305
        %v3635 = vunpack.c.h.b16 %v3305
        %v3636 = vunpack.c.l.b16 %v3306
        %v3637 = vunpack.c.h.b16 %v3306
        %v3638 = vunpack.c.l.b16 %v3307
        %v3639 = vunpack.c.h.b16 %v3307
        %v3640 = vunpack.c.l.b16 %v3308
        %v3641 = vunpack.c.h.b16 %v3308
        %v3642 = vunpack.c.l.b16 %v3309
        %v3643 = vunpack.c.h.b16 %v3309
        %v3644 = vunpack.c.l.b16 %v3310
        %v3645 = vunpack.c.h.b16 %v3310
        %v3646 = vunpack.c.l.b16 %v3311
        %v3647 = vunpack.c.h.b16 %v3311
        %v3648 = vunpack.c.l.b16 %v3312
        %v3649 = vunpack.c.h.b16 %v3312
        %v3650 = vunpack.c.l.b16 %v3313
        %v3651 = vunpack.c.h.b16 %v3313
        %v3652 = vunpack.c.l.b16 %v3314
        %v3653 = vunpack.c.h.b16 %v3314
        %v3654 = vunpack.c.l.b16 %v3315
        %v3655 = vunpack.c.h.b16 %v3315
        %v3656 = vunpack.c.l.b16 %v3316
        %v3657 = vunpack.c.h.b16 %v3316
        %v3658 = vunpack.c.l.b16 %v3317
        %v3659 = vunpack.c.h.b16 %v3317
        %v3660 = vunpack.c.l.b16 %v3318
        %v3661 = vunpack.c.h.b16 %v3318
        %v3662 = vunpack.c.l.b16 %v3319
        %v3663 = vunpack.c.h.b16 %v3319
        %v3664 = vunpack.c.l.b16 %v3320
        %v3665 = vunpack.c.h.b16 %v3320
        %v3666 = vunpack.c.l.b16 %v3321
        %v3667 = vunpack.c.h.b16 %v3321
        %v3668 = vunpack.c.l.b16 %v3322
        %v3669 = vunpack.c.h.b16 %v3322
        %v3670 = vunpack.c.l.b16 %v3323
        %v3671 = vunpack.c.h.b16 %v3323
        %v3672 = vunpack.c.l.b16 %v3324
        %v3673 = vunpack.c.h.b16 %v3324
        %v3674 = vunpack.c.l.b16 %v3325
        %v3675 = vunpack.c.h.b16 %v3325
        %v3676 = vunpack.c.l.b16 %v3326
        %v3677 = vunpack.c.h.b16 %v3326
        %v3678 = vunpack.c.l.b16 %v3327
        %v3679 = vunpack.c.h.b16 %v3327
        %v3680 = vunpack.c.l.b16 %v3328
        %v3681 = vunpack.c.h.b16 %v3328
        %v3682 = vunpack.c.l.b16 %v3329
        %v3683 = vunpack.c.h.b16 %v3329
        %v3684 = vunpack.c.l.b16 %v3330
        %v3685 = vunpack.c.h.b16 %v3330
        %v3686 = vunpack.c.l.b16 %v3331
        %v3687 = vunpack.c.h.b16 %v3331
        %v3688 = vunpack.c.l.b16 %v3332
        %v3689 = vunpack.c.h.b16 %v3332
        %v3690 = vunpack.c.l.b16 %v3333
        %v3691 = vunpack.c.h.b16 %v3333
        %v3692 = vunpack.c.l.b16 %v3334
        %v3693 = vunpack.c.h.b16 %v3334
        %v3694 = vunpack.c.l.b16 %v3335
        %v3695 = vunpack.c.h.b16 %v3335
        %v3696 = vunpack.c.l.b16 %v3336
        %v3697 = vunpack.c.h.b16 %v3336
        %v3698 = vunpack.c.l.b16 %v3337
        %v3699 = vunpack.c.h.b16 %v3337
        %v3700 = vunpack.c.l.b16 %v3338
        %v3701 = vunpack.c.h.b16 %v3338
        %v3702 = vunpack.c.l.b16 %v3339
        %v3703 = vunpack.c.h.b16 %v3339
        %v3704 = vunpack.c.l.b16 %v3340
        %v3705 = vunpack.c.h.b16 %v3340
        %v3706 = vunpack.c.l.b16 %v3341
        %v3707 = vunpack.c.h.b16 %v3341
        %v3708 = vunpack.c.l.b16 %v3342
        %v3709 = vunpack.c.h.b16 %v3342
        %v3710 = vunpack.c.l.b16 %v3343
        %v3711 = vunpack.c.h.b16 %v3343
        %v3712 = vunpack.c.l.b16 %v3344
        %v3713 = vunpack.c.h.b16 %v3344
        %v3714 = vunpack.c.l.b16 %v3345
        %v3715 = vunpack.c.h.b16 %v3345
        %v3716 = vunpack.c.l.b16 %v3346
        %v3717 = vunpack.c.h.b16 %v3346
        %v3718 = vunpack.c.l.b16 %v3347
        %v3719 = vunpack.c.h.b16 %v3347
        %v3720 = vunpack.c.l.b16 %v3348
        %v3721 = vunpack.c.h.b16 %v3348
        %v3722 = vunpack.c.l.b16 %v3349
        %v3723 = vunpack.c.h.b16 %v3349
        %v3724 = vunpack.c.l.b16 %v3350
        %v3725 = vunpack.c.h.b16 %v3350
        %v3726 = vunpack.c.l.b16 %v3351
        %v3727 = vunpack.c.h.b16 %v3351
        %v3728 = vunpack.c.l.b16 %v3352
        %v3729 = vunpack.c.h.b16 %v3352
        %v3730 = vunpack.c.l.b16 %v3353
        %v3731 = vunpack.c.h.b16 %v3353
        %v3732 = vunpack.c.l.b16 %v3354
        %v3733 = vunpack.c.h.b16 %v3354
        %v3734 = vunpack.c.l.b16 %v3355
        %v3735 = vunpack.c.h.b16 %v3355
        %v3736 = vunpack.c.l.b16 %v3356
        %v3737 = vunpack.c.h.b16 %v3356
        %v3738 = vunpack.c.l.b16 %v3357
        %v3739 = vunpack.c.h.b16 %v3357
        %v3740 = vunpack.c.l.b16 %v3358
        %v3741 = vunpack.c.h.b16 %v3358
        %v3742 = vunpack.c.l.b16 %v3359
        %v3743 = vunpack.c.h.b16 %v3359
        %v3744 = vpack.c.b16 %v3488, %v3488
        %v3745 = vpack.c.b16 %v3489, %v3489
        %v3746 = vpack.c.b16 %v3490, %v3490
        %v3747 = vpack.c.b16 %v3491, %v3491
        %v3748 = vpack.c.b16 %v3492, %v3492
        %v3749 = vpack.c.b16 %v3493, %v3493
        %v3750 = vpack.c.b16 %v3494, %v3494
        %v3751 = vpack.c.b16 %v3495, %v3495
        %v3752 = vpack.c.b16 %v3496, %v3496
        %v3753 = vpack.c.b16 %v3497, %v3497
        %v3754 = vpack.c.b16 %v3498, %v3498
        %v3755 = vpack.c.b16 %v3499, %v3499
        %v3756 = vpack.c.b16 %v3500, %v3500
        %v3757 = vpack.c.b16 %v3501, %v3501
        %v3758 = vpack.c.b16 %v3502, %v3502
        %v3759 = vpack.c.b16 %v3503, %v3503
        %v3760 = vpack.c.b16 %v3504, %v3504
        %v3761 = vpack.c.b16 %v3505, %v3505
        %v3762 = vpack.c.b16 %v3506, %v3506
        %v3763 = vpack.c.b16 %v3507, %v3507
        %v3764 = vpack.c.b16 %v3508, %v3508
        %v3765 = vpack.c.b16 %v3509, %v3509
        %v3766 = vpack.c.b16 %v3510, %v3510
        %v3767 = vpack.c.b16 %v3511, %v3511
        %v3768 = vpack.c.b16 %v3512, %v3512
        %v3769 = vpack.c.b16 %v3513, %v3513
        %v3770 = vpack.c.b16 %v3514, %v3514
        %v3771 = vpack.c.b16 %v3515, %v3515
        %v3772 = vpack.c.b16 %v3516, %v3516
        %v3773 = vpack.c.b16 %v3517, %v3517
        %v3774 = vpack.c.b16 %v3518, %v3518
        %v3775 = vpack.c.b16 %v3519, %v3519
        %v3776 = vpack.c.b16 %v3520, %v3520
        %v3777 = vpack.c.b16 %v3521, %v3521
        %v3778 = vpack.c.b16 %v3522, %v3522
        %v3779 = vpack.c.b16 %v3523, %v3523
        %v3780 = vpack.c.b16 %v3524, %v3524
        %v3781 = vpack.c.b16 %v3525, %v3525
        %v3782 = vpack.c.b16 %v3526, %v3526
        %v3783 = vpack.c.b16 %v3527, %v3527
        %v3784 = vpack.c.b16 %v3528, %v3528
        %v3785 = vpack.c.b16 %v3529, %v3529
        %v3786 = vpack.c.b16 %v3530, %v3530
        %v3787 = vpack.c.b16 %v3531, %v3531
        %v3788 = vpack.c.b16 %v3532, %v3532
        %v3789 = vpack.c.b16 %v3533, %v3533
        %v3790 = vpack.c.b16 %v3534, %v3534
        %v3791 = vpack.c.b16 %v3535, %v3535
        %v3792 = vpack.c.b16 %v3536, %v3536
        %v3793 = vpack.c.b16 %v3537, %v3537
        %v3794 = vpack.c.b16 %v3538, %v3538
        %v3795 = vpack.c.b16 %v3539, %v3539
        %v3796 = vpack.c.b16 %v3540, %v3540
        %v3797 = vpack.c.b16 %v3541, %v3541
        %v3798 = vpack.c.b16 %v3542, %v3542
        %v3799 = vpack.c.b16 %v3543, %v3543
        %v3800 = vpack.c.b16 %v3544, %v3544
        %v3801 = vpack.c.b16 %v3545, %v3545
        %v3802 = vpack.c.b16 %v3546, %v3546
        %v3803 = vpack.c.b16 %v3547, %v3547
        %v3804 = vpack.c.b16 %v3548, %v3548
        %v3805 = vpack.c.b16 %v3549, %v3549
        %v3806 = vpack.c.b16 %v3550, %v3550
        %v3807 = vpack.c.b16 %v3551, %v3551
        %v3808 = vpack.c.b16 %v3552, %v3552
        %v3809 = vpack.c.b16 %v3553, %v3553
        %v3810 = vpack.c.b16 %v3554, %v3554
        %v3811 = vpack.c.b16 %v3555, %v3555
        %v3812 = vpack.c.b16 %v3556, %v3556
        %v3813 = vpack.c.b16 %v3557, %v3557
        %v3814 = vpack.c.b16 %v3558, %v3558
        %v3815 = vpack.c.b16 %v3559, %v3559
        %v3816 = vpack.c.b16 %v3560, %v3560
        %v3817 = vpack.c.b16 %v3561, %v3561
        %v3818 = vpack.c.b16 %v3562, %v3562
        %v3819 = vpack.c.b16 %v3563, %v3563
        %v3820 = vpack.c.b16 %v3564, %v3564
        %v3821 = vpack.c.b16 %v3565, %v3565
        %v3822 = vpack.c.b16 %v3566, %v3566
        %v3823 = vpack.c.b16 %v3567, %v3567
        %v3824 = vpack.c.b16 %v3568, %v3568
        %v3825 = vpack.c.b16 %v3569, %v3569
        %v3826 = vpack.c.b16 %v3570, %v3570
        %v3827 = vpack.c.b16 %v3571, %v3571
        %v3828 = vpack.c.b16 %v3572, %v3572
        %v3829 = vpack.c.b16 %v3573, %v3573
        %v3830 = vpack.c.b16 %v3574, %v3574
        %v3831 = vpack.c.b16 %v3575, %v3575
        %v3832 = vpack.c.b16 %v3576, %v3576
        %v3833 = vpack.c.b16 %v3577, %v3577
        %v3834 = vpack.c.b16 %v3578, %v3578
        %v3835 = vpack.c.b16 %v3579, %v3579
        %v3836 = vpack.c.b16 %v3580, %v3580
        %v3837 = vpack.c.b16 %v3581, %v3581
        %v3838 = vpack.c.b16 %v3582, %v3582
        %v3839 = vpack.c.b16 %v3583, %v3583
        %v3840 = vpack.c.b16 %v3584, %v3584
        %v3841 = vpack.c.b16 %v3585, %v3585
        %v3842 = vpack.c.b16 %v3586, %v3586
        %v3843 = vpack.c.b16 %v3587, %v3587
        %v3844 = vpack.c.b16 %v3588, %v3588
        %v3845 = vpack.c.b16 %v3589, %v3589
        %v3846 = vpack.c.b16 %v3590, %v3590
        %v3847 = vpack.c.b16 %v3591, %v3591
        %v3848 = vpack.c.b16 %v3592, %v3592
        %v3849 = vpack.c.b16 %v3593, %v3593
        %v3850 = vpack.c.b16 %v3594, %v3594
        %v3851 = vpack.c.b16 %v3595, %v3595
        %v3852 = vpack.c.b16 %v3596, %v3596
        %v3853 = vpack.c.b16 %v3597, %v3597
        %v3854 = vpack.c.b16 %v3598, %v3598
        %v3855 = vpack.c.b16 %v3599, %v3599
        %v3856 = vpack.c.b16 %v3600, %v3600
        %v3857 = vpack.c.b16 %v3601, %v3601
        %v3858 = vpack.c.b16 %v3602, %v3602
        %v3859 = vpack.c.b16 %v3603, %v3603
        %v3860 = vpack.c.b16 %v3604, %v3604
        %v3861 = vpack.c.b16 %v3605, %v3605
        %v3862 = vpack.c.b16 %v3606, %v3606
        %v3863 = vpack.c.b16 %v3607, %v3607
        %v3864 = vpack.c.b16 %v3608, %v3608
        %v3865 = vpack.c.b16 %v3609, %v3609
        %v3866 = vpack.c.b16 %v3610, %v3610
        %v3867 = vpack.c.b16 %v3611, %v3611
        %v3868 = vpack.c.b16 %v3612, %v3612
        %v3869 = vpack.c.b16 %v3613, %v3613
        %v3870 = vpack.c.b16 %v3614, %v3614
        %v3871 = vpack.c.b16 %v3615, %v3615
        %v3872 = vpack.c.b16 %v3616, %v3616
        %v3873 = vpack.c.b16 %v3617, %v3617
        %v3874 = vpack.c.b16 %v3618, %v3618
        %v3875 = vpack.c.b16 %v3619, %v3619
        %v3876 = vpack.c.b16 %v3620, %v3620
        %v3877 = vpack.c.b16 %v3621, %v3621
        %v3878 = vpack.c.b16 %v3622, %v3622
        %v3879 = vpack.c.b16 %v3623, %v3623
        %v3880 = vpack.c.b16 %v3624, %v3624
        %v3881 = vpack.c.b16 %v3625, %v3625
        %v3882 = vpack.c.b16 %v3626, %v3626
        %v3883 = vpack.c.b16 %v3627, %v3627
        %v3884 = vpack.c.b16 %v3628, %v3628
        %v3885 = vpack.c.b16 %v3629, %v3629
        %v3886 = vpack.c.b16 %v3630, %v3630
        %v3887 = vpack.c.b16 %v3631, %v3631
        %v3888 = vpack.c.b16 %v3632, %v3632
        %v3889 = vpack.c.b16 %v3633, %v3633
        %v3890 = vpack.c.b16 %v3634, %v3634
        %v3891 = vpack.c.b16 %v3635, %v3635
        %v3892 = vpack.c.b16 %v3636, %v3636
        %v3893 = vpack.c.b16 %v3637, %v3637
        %v3894 = vpack.c.b16 %v3638, %v3638
        %v3895 = vpack.c.b16 %v3639, %v3639
        %v3896 = vpack.c.b16 %v3640, %v3640
        %v3897 = vpack.c.b16 %v3641, %v3641
        %v3898 = vpack.c.b16 %v3642, %v3642
        %v3899 = vpack.c.b16 %v3643, %v3643
        %v3900 = vpack.c.b16 %v3644, %v3644
        %v3901 = vpack.c.b16 %v3645, %v3645
        %v3902 = vpack.c.b16 %v3646, %v3646
        %v3903 = vpack.c.b16 %v3647, %v3647
        %v3904 = vpack.c.b16 %v3648, %v3648
        %v3905 = vpack.c.b16 %v3649, %v3649
        %v3906 = vpack.c.b16 %v3650, %v3650
        %v3907 = vpack.c.b16 %v3651, %v3651
        %v3908 = vpack.c.b16 %v3652, %v3652
        %v3909 = vpack.c.b16 %v3653, %v3653
        %v3910 = vpack.c.b16 %v3654, %v3654
        %v3911 = vpack.c.b16 %v3655, %v3655
        %v3912 = vpack.c.b16 %v3656, %v3656
        %v3913 = vpack.c.b16 %v3657, %v3657
        %v3914 = vpack.c.b16 %v3658, %v3658
        %v3915 = vpack.c.b16 %v3659, %v3659
        %v3916 = vpack.c.b16 %v3660, %v3660
        %v3917 = vpack.c.b16 %v3661, %v3661
        %v3918 = vpack.c.b16 %v3662, %v3662
        %v3919 = vpack.c.b16 %v3663, %v3663
        %v3920 = vpack.c.b16 %v3664, %v3664
        %v3921 = vpack.c.b16 %v3665, %v3665
        %v3922 = vpack.c.b16 %v3666, %v3666
        %v3923 = vpack.c.b16 %v3667, %v3667
        %v3924 = vpack.c.b16 %v3668, %v3668
        %v3925 = vpack.c.b16 %v3669, %v3669
        %v3926 = vpack.c.b16 %v3670, %v3670
        %v3927 = vpack.c.b16 %v3671, %v3671
        %v3928 = vpack.c.b16 %v3672, %v3672
        %v3929 = vpack.c.b16 %v3673, %v3673
        %v3930 = vpack.c.b16 %v3674, %v3674
        %v3931 = vpack.c.b16 %v3675, %v3675
        %v3932 = vpack.c.b16 %v3676, %v3676
        %v3933 = vpack.c.b16 %v3677, %v3677
        %v3934 = vpack.c.b16 %v3678, %v3678
        %v3935 = vpack.c.b16 %v3679, %v3679
        %v3936 = vpack.c.b16 %v3680, %v3680
        %v3937 = vpack.c.b16 %v3681, %v3681
        %v3938 = vpack.c.b16 %v3682, %v3682
        %v3939 = vpack.c.b16 %v3683, %v3683
        %v3940 = vpack.c.b16 %v3684, %v3684
        %v3941 = vpack.c.b16 %v3685, %v3685
        %v3942 = vpack.c.b16 %v3686, %v3686
        %v3943 = vpack.c.b16 %v3687, %v3687
        %v3944 = vpack.c.b16 %v3688, %v3688
        %v3945 = vpack.c.b16 %v3689, %v3689
        %v3946 = vpack.c.b16 %v3690, %v3690
        %v3947 = vpack.c.b16 %v3691, %v3691
        %v3948 = vpack.c.b16 %v3692, %v3692
        %v3949 = vpack.c.b16 %v3693, %v3693
        %v3950 = vpack.c.b16 %v3694, %v3694
        %v3951 = vpack.c.b16 %v3695, %v3695
        %v3952 = vpack.c.b16 %v3696, %v3696
        %v3953 = vpack.c.b16 %v3697, %v3697
        %v3954 = vpack.c.b16 %v3698, %v3698
        %v3955 = vpack.c.b16 %v3699, %v3699
        %v3956 = vpack.c.b16 %v3700, %v3700
        %v3957 = vpack.c.b16 %v3701, %v3701
        %v3958 = vpack.c.b16 %v3702, %v3702
        %v3959 = vpack.c.b16 %v3703, %v3703
        %v3960 = vpack.c.b16 %v3704, %v3704
        %v3961 = vpack.c.b16 %v3705, %v3705
        %v3962 = vpack.c.b16 %v3706, %v3706
        %v3963 = vpack.c.b16 %v3707, %v3707
        %v3964 = vpack.c.b16 %v3708, %v3708
        %v3965 = vpack.c.b16 %v3709, %v3709
        %v3966 = vpack.c.b16 %v3710, %v3710
        %v3967 = vpack.c.b16 %v3711, %v3711
        %v3968 = vpack.c.b16 %v3712, %v3712
        %v3969 = vpack.c.b16 %v3713, %v3713
        %v3970 = vpack.c.b16 %v3714, %v3714
        %v3971 = vpack.c.b16 %v3715, %v3715
        %v3972 = vpack.c.b16 %v3716, %v3716
        %v3973 = vpack.c.b16 %v3717, %v3717
        %v3974 = vpack.c.b16 %v3718, %v3718
        %v3975 = vpack.c.b16 %v3719, %v3719
        %v3976 = vpack.c.b16 %v3720, %v3720
        %v3977 = vpack.c.b16 %v3721, %v3721
        %v3978 = vpack.c.b16 %v3722, %v3722
        %v3979 = vpack.c.b16 %v3723, %v3723
        %v3980 = vpack.c.b16 %v3724, %v3724
        %v3981 = vpack.c.b16 %v3725, %v3725
        %v3982 = vpack.c.b16 %v3726, %v3726
        %v3983 = vpack.c.b16 %v3727, %v3727
        %v3984 = vpack.c.b16 %v3728, %v3728
        %v3985 = vpack.c.b16 %v3729, %v3729
        %v3986 = vpack.c.b16 %v3730, %v3730
        %v3987 = vpack.c.b16 %v3731, %v3731
        %v3988 = vpack.c.b16 %v3732, %v3732
        %v3989 = vpack.c.b16 %v3733, %v3733
        %v3990 = vpack.c.b16 %v3734, %v3734
        %v3991 = vpack.c.b16 %v3735, %v3735
        %v3992 = vpack.c.b16 %v3736, %v3736
        %v3993 = vpack.c.b16 %v3737, %v3737
        %v3994 = vpack.c.b16 %v3738, %v3738
        %v3995 = vpack.c.b16 %v3739, %v3739
        %v3996 = vpack.c.b16 %v3740, %v3740
        %v3997 = vpack.c.b16 %v3741, %v3741
        %v3998 = vpack.c.b16 %v3742, %v3742
        %v3999 = vpack.c.b16 %v3743, %v3743
        %4256 = vst [vmem:[%s244] sm:$0xf] %v3744
        %4257 = vst [vmem:[%s244 + $0x4] sm:$0xf] %v3745
        %4258 = vst [vmem:[%s244 + $0x8] sm:$0xf] %v3746
        %4259 = vst [vmem:[%s244 + $0xc] sm:$0xf] %v3747
        %4260 = vst [vmem:[%s244 + $0x10] sm:$0xf] %v3748
        %4261 = vst [vmem:[%s244 + $0x14] sm:$0xf] %v3749
        %4262 = vst [vmem:[%s244 + $0x18] sm:$0xf] %v3750
        %4263 = vst [vmem:[%s244 + $0x1c] sm:$0xf] %v3751
        %4264 = vst [vmem:[%s244 + $0x20] sm:$0xf] %v3752
        %4265 = vst [vmem:[%s244 + $0x24] sm:$0xf] %v3753
        %4266 = vst [vmem:[%s244 + $0x28] sm:$0xf] %v3754
        %4267 = vst [vmem:[%s244 + $0x2c] sm:$0xf] %v3755
        %4268 = vst [vmem:[%s244 + $0x30] sm:$0xf] %v3756
        %4269 = vst [vmem:[%s244 + $0x34] sm:$0xf] %v3757
        %4270 = vst [vmem:[%s244 + $0x38] sm:$0xf] %v3758
        %4271 = vst [vmem:[%s244 + $0x3c] sm:$0xf] %v3759
        %4272 = vst [vmem:[%s244 + $0x40] sm:$0xf] %v3760
        %4273 = vst [vmem:[%s244 + $0x44] sm:$0xf] %v3761
        %4274 = vst [vmem:[%s244 + $0x48] sm:$0xf] %v3762
        %4275 = vst [vmem:[%s244 + $0x4c] sm:$0xf] %v3763
        %4276 = vst [vmem:[%s244 + $0x50] sm:$0xf] %v3764
        %4277 = vst [vmem:[%s244 + $0x54] sm:$0xf] %v3765
        %4278 = vst [vmem:[%s244 + $0x58] sm:$0xf] %v3766
        %4279 = vst [vmem:[%s244 + $0x5c] sm:$0xf] %v3767
        %4280 = vst [vmem:[%s244 + $0x60] sm:$0xf] %v3768
        %4281 = vst [vmem:[%s244 + $0x64] sm:$0xf] %v3769
        %4282 = vst [vmem:[%s244 + $0x68] sm:$0xf] %v3770
        %4283 = vst [vmem:[%s244 + $0x6c] sm:$0xf] %v3771
        %4284 = vst [vmem:[%s244 + $0x70] sm:$0xf] %v3772
        %4285 = vst [vmem:[%s244 + $0x74] sm:$0xf] %v3773
        %4286 = vst [vmem:[%s244 + $0x78] sm:$0xf] %v3774
        %4287 = vst [vmem:[%s244 + $0x7c] sm:$0xf] %v3775
        %4288 = vst [vmem:[%s244 + $0x80] sm:$0xf] %v3776
        %4289 = vst [vmem:[%s244 + $0x84] sm:$0xf] %v3777
        %4290 = vst [vmem:[%s244 + $0x88] sm:$0xf] %v3778
        %4291 = vst [vmem:[%s244 + $0x8c] sm:$0xf] %v3779
        %4292 = vst [vmem:[%s244 + $0x90] sm:$0xf] %v3780
        %4293 = vst [vmem:[%s244 + $0x94] sm:$0xf] %v3781
        %4294 = vst [vmem:[%s244 + $0x98] sm:$0xf] %v3782
        %4295 = vst [vmem:[%s244 + $0x9c] sm:$0xf] %v3783
        %4296 = vst [vmem:[%s244 + $0xa0] sm:$0xf] %v3784
        %4297 = vst [vmem:[%s244 + $0xa4] sm:$0xf] %v3785
        %4298 = vst [vmem:[%s244 + $0xa8] sm:$0xf] %v3786
        %4299 = vst [vmem:[%s244 + $0xac] sm:$0xf] %v3787
        %4300 = vst [vmem:[%s244 + $0xb0] sm:$0xf] %v3788
        %4301 = vst [vmem:[%s244 + $0xb4] sm:$0xf] %v3789
        %4302 = vst [vmem:[%s244 + $0xb8] sm:$0xf] %v3790
        %4303 = vst [vmem:[%s244 + $0xbc] sm:$0xf] %v3791
        %4304 = vst [vmem:[%s244 + $0xc0] sm:$0xf] %v3792
        %4305 = vst [vmem:[%s244 + $0xc4] sm:$0xf] %v3793
        %4306 = vst [vmem:[%s244 + $0xc8] sm:$0xf] %v3794
        %4307 = vst [vmem:[%s244 + $0xcc] sm:$0xf] %v3795
        %4308 = vst [vmem:[%s244 + $0xd0] sm:$0xf] %v3796
        %4309 = vst [vmem:[%s244 + $0xd4] sm:$0xf] %v3797
        %4310 = vst [vmem:[%s244 + $0xd8] sm:$0xf] %v3798
        %4311 = vst [vmem:[%s244 + $0xdc] sm:$0xf] %v3799
        %4312 = vst [vmem:[%s244 + $0xe0] sm:$0xf] %v3800
        %4313 = vst [vmem:[%s244 + $0xe4] sm:$0xf] %v3801
        %4314 = vst [vmem:[%s244 + $0xe8] sm:$0xf] %v3802
        %4315 = vst [vmem:[%s244 + $0xec] sm:$0xf] %v3803
        %4316 = vst [vmem:[%s244 + $0xf0] sm:$0xf] %v3804
        %4317 = vst [vmem:[%s244 + $0xf4] sm:$0xf] %v3805
        %4318 = vst [vmem:[%s244 + $0xf8] sm:$0xf] %v3806
        %4319 = vst [vmem:[%s244 + $0xfc] sm:$0xf] %v3807
        %4320 = vst [vmem:[%s244 + $0x100] sm:$0xf] %v3808
        %4321 = vst [vmem:[%s244 + $0x104] sm:$0xf] %v3809
        %4322 = vst [vmem:[%s244 + $0x108] sm:$0xf] %v3810
        %4323 = vst [vmem:[%s244 + $0x10c] sm:$0xf] %v3811
        %4324 = vst [vmem:[%s244 + $0x110] sm:$0xf] %v3812
        %4325 = vst [vmem:[%s244 + $0x114] sm:$0xf] %v3813
        %4326 = vst [vmem:[%s244 + $0x118] sm:$0xf] %v3814
        %4327 = vst [vmem:[%s244 + $0x11c] sm:$0xf] %v3815
        %4328 = vst [vmem:[%s244 + $0x120] sm:$0xf] %v3816
        %4329 = vst [vmem:[%s244 + $0x124] sm:$0xf] %v3817
        %4330 = vst [vmem:[%s244 + $0x128] sm:$0xf] %v3818
        %4331 = vst [vmem:[%s244 + $0x12c] sm:$0xf] %v3819
        %4332 = vst [vmem:[%s244 + $0x130] sm:$0xf] %v3820
        %4333 = vst [vmem:[%s244 + $0x134] sm:$0xf] %v3821
        %4334 = vst [vmem:[%s244 + $0x138] sm:$0xf] %v3822
        %4335 = vst [vmem:[%s244 + $0x13c] sm:$0xf] %v3823
        %4336 = vst [vmem:[%s244 + $0x140] sm:$0xf] %v3824
        %4337 = vst [vmem:[%s244 + $0x144] sm:$0xf] %v3825
        %4338 = vst [vmem:[%s244 + $0x148] sm:$0xf] %v3826
        %4339 = vst [vmem:[%s244 + $0x14c] sm:$0xf] %v3827
        %4340 = vst [vmem:[%s244 + $0x150] sm:$0xf] %v3828
        %4341 = vst [vmem:[%s244 + $0x154] sm:$0xf] %v3829
        %4342 = vst [vmem:[%s244 + $0x158] sm:$0xf] %v3830
        %4343 = vst [vmem:[%s244 + $0x15c] sm:$0xf] %v3831
        %4344 = vst [vmem:[%s244 + $0x160] sm:$0xf] %v3832
        %4345 = vst [vmem:[%s244 + $0x164] sm:$0xf] %v3833
        %4346 = vst [vmem:[%s244 + $0x168] sm:$0xf] %v3834
        %4347 = vst [vmem:[%s244 + $0x16c] sm:$0xf] %v3835
        %4348 = vst [vmem:[%s244 + $0x170] sm:$0xf] %v3836
        %4349 = vst [vmem:[%s244 + $0x174] sm:$0xf] %v3837
        %4350 = vst [vmem:[%s244 + $0x178] sm:$0xf] %v3838
        %4351 = vst [vmem:[%s244 + $0x17c] sm:$0xf] %v3839
        %4352 = vst [vmem:[%s244 + $0x180] sm:$0xf] %v3840
        %4353 = vst [vmem:[%s244 + $0x184] sm:$0xf] %v3841
        %4354 = vst [vmem:[%s244 + $0x188] sm:$0xf] %v3842
        %4355 = vst [vmem:[%s244 + $0x18c] sm:$0xf] %v3843
        %4356 = vst [vmem:[%s244 + $0x190] sm:$0xf] %v3844
        %4357 = vst [vmem:[%s244 + $0x194] sm:$0xf] %v3845
        %4358 = vst [vmem:[%s244 + $0x198] sm:$0xf] %v3846
        %4359 = vst [vmem:[%s244 + $0x19c] sm:$0xf] %v3847
        %4360 = vst [vmem:[%s244 + $0x1a0] sm:$0xf] %v3848
        %4361 = vst [vmem:[%s244 + $0x1a4] sm:$0xf] %v3849
        %4362 = vst [vmem:[%s244 + $0x1a8] sm:$0xf] %v3850
        %4363 = vst [vmem:[%s244 + $0x1ac] sm:$0xf] %v3851
        %4364 = vst [vmem:[%s244 + $0x1b0] sm:$0xf] %v3852
        %4365 = vst [vmem:[%s244 + $0x1b4] sm:$0xf] %v3853
        %4366 = vst [vmem:[%s244 + $0x1b8] sm:$0xf] %v3854
        %4367 = vst [vmem:[%s244 + $0x1bc] sm:$0xf] %v3855
        %4368 = vst [vmem:[%s244 + $0x1c0] sm:$0xf] %v3856
        %4369 = vst [vmem:[%s244 + $0x1c4] sm:$0xf] %v3857
        %4370 = vst [vmem:[%s244 + $0x1c8] sm:$0xf] %v3858
        %4371 = vst [vmem:[%s244 + $0x1cc] sm:$0xf] %v3859
        %4372 = vst [vmem:[%s244 + $0x1d0] sm:$0xf] %v3860
        %4373 = vst [vmem:[%s244 + $0x1d4] sm:$0xf] %v3861
        %4374 = vst [vmem:[%s244 + $0x1d8] sm:$0xf] %v3862
        %4375 = vst [vmem:[%s244 + $0x1dc] sm:$0xf] %v3863
        %4376 = vst [vmem:[%s244 + $0x1e0] sm:$0xf] %v3864
        %4377 = vst [vmem:[%s244 + $0x1e4] sm:$0xf] %v3865
        %4378 = vst [vmem:[%s244 + $0x1e8] sm:$0xf] %v3866
        %4379 = vst [vmem:[%s244 + $0x1ec] sm:$0xf] %v3867
        %4380 = vst [vmem:[%s244 + $0x1f0] sm:$0xf] %v3868
        %4381 = vst [vmem:[%s244 + $0x1f4] sm:$0xf] %v3869
        %4382 = vst [vmem:[%s244 + $0x1f8] sm:$0xf] %v3870
        %4383 = vst [vmem:[%s244 + $0x1fc] sm:$0xf] %v3871
        %4384 = vst [vmem:[%s244 + $0x200] sm:$0xf] %v3872
        %4385 = vst [vmem:[%s244 + $0x204] sm:$0xf] %v3873
        %4386 = vst [vmem:[%s244 + $0x208] sm:$0xf] %v3874
        %4387 = vst [vmem:[%s244 + $0x20c] sm:$0xf] %v3875
        %4388 = vst [vmem:[%s244 + $0x210] sm:$0xf] %v3876
        %4389 = vst [vmem:[%s244 + $0x214] sm:$0xf] %v3877
        %4390 = vst [vmem:[%s244 + $0x218] sm:$0xf] %v3878
        %4391 = vst [vmem:[%s244 + $0x21c] sm:$0xf] %v3879
        %4392 = vst [vmem:[%s244 + $0x220] sm:$0xf] %v3880
        %4393 = vst [vmem:[%s244 + $0x224] sm:$0xf] %v3881
        %4394 = vst [vmem:[%s244 + $0x228] sm:$0xf] %v3882
        %4395 = vst [vmem:[%s244 + $0x22c] sm:$0xf] %v3883
        %4396 = vst [vmem:[%s244 + $0x230] sm:$0xf] %v3884
        %4397 = vst [vmem:[%s244 + $0x234] sm:$0xf] %v3885
        %4398 = vst [vmem:[%s244 + $0x238] sm:$0xf] %v3886
        %4399 = vst [vmem:[%s244 + $0x23c] sm:$0xf] %v3887
        %4400 = vst [vmem:[%s244 + $0x240] sm:$0xf] %v3888
        %4401 = vst [vmem:[%s244 + $0x244] sm:$0xf] %v3889
        %4402 = vst [vmem:[%s244 + $0x248] sm:$0xf] %v3890
        %4403 = vst [vmem:[%s244 + $0x24c] sm:$0xf] %v3891
        %4404 = vst [vmem:[%s244 + $0x250] sm:$0xf] %v3892
        %4405 = vst [vmem:[%s244 + $0x254] sm:$0xf] %v3893
        %4406 = vst [vmem:[%s244 + $0x258] sm:$0xf] %v3894
        %4407 = vst [vmem:[%s244 + $0x25c] sm:$0xf] %v3895
        %4408 = vst [vmem:[%s244 + $0x260] sm:$0xf] %v3896
        %4409 = vst [vmem:[%s244 + $0x264] sm:$0xf] %v3897
        %4410 = vst [vmem:[%s244 + $0x268] sm:$0xf] %v3898
        %4411 = vst [vmem:[%s244 + $0x26c] sm:$0xf] %v3899
        %4412 = vst [vmem:[%s244 + $0x270] sm:$0xf] %v3900
        %4413 = vst [vmem:[%s244 + $0x274] sm:$0xf] %v3901
        %4414 = vst [vmem:[%s244 + $0x278] sm:$0xf] %v3902
        %4415 = vst [vmem:[%s244 + $0x27c] sm:$0xf] %v3903
        %4416 = vst [vmem:[%s244 + $0x280] sm:$0xf] %v3904
        %4417 = vst [vmem:[%s244 + $0x284] sm:$0xf] %v3905
        %4418 = vst [vmem:[%s244 + $0x288] sm:$0xf] %v3906
        %4419 = vst [vmem:[%s244 + $0x28c] sm:$0xf] %v3907
        %4420 = vst [vmem:[%s244 + $0x290] sm:$0xf] %v3908
        %4421 = vst [vmem:[%s244 + $0x294] sm:$0xf] %v3909
        %4422 = vst [vmem:[%s244 + $0x298] sm:$0xf] %v3910
        %4423 = vst [vmem:[%s244 + $0x29c] sm:$0xf] %v3911
        %4424 = vst [vmem:[%s244 + $0x2a0] sm:$0xf] %v3912
        %4425 = vst [vmem:[%s244 + $0x2a4] sm:$0xf] %v3913
        %4426 = vst [vmem:[%s244 + $0x2a8] sm:$0xf] %v3914
        %4427 = vst [vmem:[%s244 + $0x2ac] sm:$0xf] %v3915
        %4428 = vst [vmem:[%s244 + $0x2b0] sm:$0xf] %v3916
        %4429 = vst [vmem:[%s244 + $0x2b4] sm:$0xf] %v3917
        %4430 = vst [vmem:[%s244 + $0x2b8] sm:$0xf] %v3918
        %4431 = vst [vmem:[%s244 + $0x2bc] sm:$0xf] %v3919
        %4432 = vst [vmem:[%s244 + $0x2c0] sm:$0xf] %v3920
        %4433 = vst [vmem:[%s244 + $0x2c4] sm:$0xf] %v3921
        %4434 = vst [vmem:[%s244 + $0x2c8] sm:$0xf] %v3922
        %4435 = vst [vmem:[%s244 + $0x2cc] sm:$0xf] %v3923
        %4436 = vst [vmem:[%s244 + $0x2d0] sm:$0xf] %v3924
        %4437 = vst [vmem:[%s244 + $0x2d4] sm:$0xf] %v3925
        %4438 = vst [vmem:[%s244 + $0x2d8] sm:$0xf] %v3926
        %4439 = vst [vmem:[%s244 + $0x2dc] sm:$0xf] %v3927
        %4440 = vst [vmem:[%s244 + $0x2e0] sm:$0xf] %v3928
        %4441 = vst [vmem:[%s244 + $0x2e4] sm:$0xf] %v3929
        %4442 = vst [vmem:[%s244 + $0x2e8] sm:$0xf] %v3930
        %4443 = vst [vmem:[%s244 + $0x2ec] sm:$0xf] %v3931
        %4444 = vst [vmem:[%s244 + $0x2f0] sm:$0xf] %v3932
        %4445 = vst [vmem:[%s244 + $0x2f4] sm:$0xf] %v3933
        %4446 = vst [vmem:[%s244 + $0x2f8] sm:$0xf] %v3934
        %4447 = vst [vmem:[%s244 + $0x2fc] sm:$0xf] %v3935
        %4448 = vst [vmem:[%s244 + $0x300] sm:$0xf] %v3936
        %4449 = vst [vmem:[%s244 + $0x304] sm:$0xf] %v3937
        %4450 = vst [vmem:[%s244 + $0x308] sm:$0xf] %v3938
        %4451 = vst [vmem:[%s244 + $0x30c] sm:$0xf] %v3939
        %4452 = vst [vmem:[%s244 + $0x310] sm:$0xf] %v3940
        %4453 = vst [vmem:[%s244 + $0x314] sm:$0xf] %v3941
        %4454 = vst [vmem:[%s244 + $0x318] sm:$0xf] %v3942
        %4455 = vst [vmem:[%s244 + $0x31c] sm:$0xf] %v3943
        %4456 = vst [vmem:[%s244 + $0x320] sm:$0xf] %v3944
        %4457 = vst [vmem:[%s244 + $0x324] sm:$0xf] %v3945
        %4458 = vst [vmem:[%s244 + $0x328] sm:$0xf] %v3946
        %4459 = vst [vmem:[%s244 + $0x32c] sm:$0xf] %v3947
        %4460 = vst [vmem:[%s244 + $0x330] sm:$0xf] %v3948
        %4461 = vst [vmem:[%s244 + $0x334] sm:$0xf] %v3949
        %4462 = vst [vmem:[%s244 + $0x338] sm:$0xf] %v3950
        %4463 = vst [vmem:[%s244 + $0x33c] sm:$0xf] %v3951
        %4464 = vst [vmem:[%s244 + $0x340] sm:$0xf] %v3952
        %4465 = vst [vmem:[%s244 + $0x344] sm:$0xf] %v3953
        %4466 = vst [vmem:[%s244 + $0x348] sm:$0xf] %v3954
        %4467 = vst [vmem:[%s244 + $0x34c] sm:$0xf] %v3955
        %4468 = vst [vmem:[%s244 + $0x350] sm:$0xf] %v3956
        %4469 = vst [vmem:[%s244 + $0x354] sm:$0xf] %v3957
        %4470 = vst [vmem:[%s244 + $0x358] sm:$0xf] %v3958
        %4471 = vst [vmem:[%s244 + $0x35c] sm:$0xf] %v3959
        %4472 = vst [vmem:[%s244 + $0x360] sm:$0xf] %v3960
        %4473 = vst [vmem:[%s244 + $0x364] sm:$0xf] %v3961
        %4474 = vst [vmem:[%s244 + $0x368] sm:$0xf] %v3962
        %4475 = vst [vmem:[%s244 + $0x36c] sm:$0xf] %v3963
        %4476 = vst [vmem:[%s244 + $0x370] sm:$0xf] %v3964
        %4477 = vst [vmem:[%s244 + $0x374] sm:$0xf] %v3965
        %4478 = vst [vmem:[%s244 + $0x378] sm:$0xf] %v3966
        %4479 = vst [vmem:[%s244 + $0x37c] sm:$0xf] %v3967
        %4480 = vst [vmem:[%s244 + $0x380] sm:$0xf] %v3968
        %4481 = vst [vmem:[%s244 + $0x384] sm:$0xf] %v3969
        %4482 = vst [vmem:[%s244 + $0x388] sm:$0xf] %v3970
        %4483 = vst [vmem:[%s244 + $0x38c] sm:$0xf] %v3971
        %4484 = vst [vmem:[%s244 + $0x390] sm:$0xf] %v3972
        %4485 = vst [vmem:[%s244 + $0x394] sm:$0xf] %v3973
        %4486 = vst [vmem:[%s244 + $0x398] sm:$0xf] %v3974
        %4487 = vst [vmem:[%s244 + $0x39c] sm:$0xf] %v3975
        %4488 = vst [vmem:[%s244 + $0x3a0] sm:$0xf] %v3976
        %4489 = vst [vmem:[%s244 + $0x3a4] sm:$0xf] %v3977
        %4490 = vst [vmem:[%s244 + $0x3a8] sm:$0xf] %v3978
        %4491 = vst [vmem:[%s244 + $0x3ac] sm:$0xf] %v3979
        %4492 = vst [vmem:[%s244 + $0x3b0] sm:$0xf] %v3980
        %4493 = vst [vmem:[%s244 + $0x3b4] sm:$0xf] %v3981
        %4494 = vst [vmem:[%s244 + $0x3b8] sm:$0xf] %v3982
        %4495 = vst [vmem:[%s244 + $0x3bc] sm:$0xf] %v3983
        %4496 = vst [vmem:[%s244 + $0x3c0] sm:$0xf] %v3984
        %4497 = vst [vmem:[%s244 + $0x3c4] sm:$0xf] %v3985
        %4498 = vst [vmem:[%s244 + $0x3c8] sm:$0xf] %v3986
        %4499 = vst [vmem:[%s244 + $0x3cc] sm:$0xf] %v3987
        %4500 = vst [vmem:[%s244 + $0x3d0] sm:$0xf] %v3988
        %4501 = vst [vmem:[%s244 + $0x3d4] sm:$0xf] %v3989
        %4502 = vst [vmem:[%s244 + $0x3d8] sm:$0xf] %v3990
        %4503 = vst [vmem:[%s244 + $0x3dc] sm:$0xf] %v3991
        %4504 = vst [vmem:[%s244 + $0x3e0] sm:$0xf] %v3992
        %4505 = vst [vmem:[%s244 + $0x3e4] sm:$0xf] %v3993
        %4506 = vst [vmem:[%s244 + $0x3e8] sm:$0xf] %v3994
        %4507 = vst [vmem:[%s244 + $0x3ec] sm:$0xf] %v3995
        %4508 = vst [vmem:[%s244 + $0x3f0] sm:$0xf] %v3996
        %4509 = vst [vmem:[%s244 + $0x3f4] sm:$0xf] %v3997
        %4510 = vst [vmem:[%s244 + $0x3f8] sm:$0xf] %v3998
        %4511 = vst [vmem:[%s244 + $0x3fc] sm:$0xf] %v3999
        %s4512 = sand.u32 %s121, 1
        %s4513 = scalar_lea.sflag [#allocation4], %s4512
        %s4514 = sand.u32 %s121, 1
        %s4515 = smul.addr %s4514, 1024
        %s4516 = scalar_lea.vmem [#allocation8], %s4515
        // Predicated region
        $region45: #{matmul_bias_act.1} parent=31 // pred_check
          %p4517 = pneg %p131
        $region46: #{matmul_bias_act.1} parent=31 // pred_check_branch
          %4519 = sbr.rel (%p4517) target = $region48
        $region47: #{matmul_bias_act.1} parent=31 // pred_region
          %s4520 = smul.u32 256, %s25
          %s4522 = ssub.s32 16384, 16384
          %4523 = vsyncadd %s4513, %s4522
          %s4524 = sadd.s32 %s26, %s4520
          %s4525 = smul.addr %s4524, 64
          %s4526 = scalar_lea.hbm %s3, %s4525
          %s4527 = sshll.u32 %s4516, 4
          %s4528 = int_to_ptr.vmem [resolvable:$true] %s4527
          %4533 = dma.vmem_to_hbm [thread:$0]  %s4528, 16384, %s4526, %s4513, 64, 64, 4
        $region48: #{matmul_bias_act.1} parent=31 // pred_fallthru
          _
      $region32: #{matmul_bias_act.1} parent=5 // pred_fallthru
        _
      %p4534 = scmp.le.s32.totalorder 2, %s16
      // Predicated region
      $region49: #{matmul_bias_act.1} parent=5 // pred_check
        %p4535 = pneg %p4534
      $region50: #{matmul_bias_act.1} parent=5 // pred_check_branch
        %4537 = sbr.rel (%p4535) target = $region52
      $region51: #{matmul_bias_act.1} parent=5 // pred_region
        %s4538 = ssub.s32 %s16, 2
        // Predicated region
        $region53: #{matmul_bias_act.1} parent=51 // pred_check
          %p4539 = pneg %p137
        $region54: #{matmul_bias_act.1} parent=51 // pred_check_branch
          %4541 = sbr.rel (%p4539) target = $region56
        $region55: #{matmul_bias_act.1} parent=51 // pred_region
          %s4542 = sand.u32 %s122, 1
          %s4543 = scalar_lea.sflag [#allocation4], %s4542
          %s4544 = sand.u32 %s122, 1
          %s4545 = smul.addr %s4544, 1024
          %s4546 = scalar_lea.vmem [#allocation8], %s4545
          %4547 = dma.done %s4543, 16384
        $region56: #{matmul_bias_act.1} parent=51 // pred_fallthru
          _
      $region52: #{matmul_bias_act.1} parent=5 // pred_fallthru
        _
    $region6: #{matmul_bias_act.1} parent=1 // loop_footer
      %s20 = sadd.s32 1, %s16
    $region7: #{matmul_bias_act.1} parent=1 // loop_footer_branch
      %15 = sbr.rel target = $region3
    $region8: #{matmul_bias_act.1} parent=1 // loop_exit
      _
    %4548 = vsyncpa [#allocation3], 1
    %s4549 = scalar_lea.sflag [#allocation3], 1
    %4550 = vsyncpa %s4549, 1
    %4551 = vsyncpa [#allocation6], 1
    %4552 = vsyncpa [#allocation4], 1
    %s4553 = scalar_lea.sflag [#allocation4], 1
    %4554 = vsyncpa %s4553, 1

</llo_original>
